<compile_context>
chip_gen: v7x
topology: tpu7x:2x2x1
jax: 0.10.0
libtpu: 0.0.40
codegen_flags: <defaults>
</compile_context>

<pallas_src>
import functools

import jax
import jax.numpy as jnp
from jax.experimental import pallas as pl
from jax.experimental.pallas import tpu as pltpu


def stnkd_kernel(x_ref,
                 w1_ref, b1_ref, w2_ref, b2_ref, w3_ref, b3_ref,
                 w4_ref, b4_ref, w5_ref, b5_ref, w6_ref, b6_ref,
                 iden_ref, out_ref, acc_ref, *, n_points):
    n_idx = pl.program_id(1)
    tb, tn, k = x_ref.shape
    cdt = w1_ref.dtype                          # matmul compute dtype (bf16)

    # ---- pointwise conv chain: Conv1d k->64->128->1024 (folded BN) ---------
    # conv3's bias + ReLU are hoisted to the head: they commute with the max.
    x = x_ref[...].reshape(tb * tn, k)          # (TB*TN, k) bf16
    h = jnp.maximum(
        jnp.dot(x, w1_ref[...], preferred_element_type=jnp.float32)
        + b1_ref[...], 0.0)
    h = jnp.maximum(
        jnp.dot(h.astype(cdt), w2_ref[...], preferred_element_type=jnp.float32)
        + b2_ref[...], 0.0)
    h = jnp.dot(h.astype(cdt), w3_ref[...],
                preferred_element_type=jnp.float32)      # (TB*TN, 1024) f32
    h = h.reshape(tb, tn, h.shape[-1])

    @pl.when(n_idx == 0)
    def _init():
        acc_ref[...] = jnp.full(acc_ref.shape, -jnp.inf, acc_ref.dtype)

    last = pl.num_programs(1) - 1
    if n_points % tn != 0:
        # Only the last N tile holds padded point rows; mask them to -inf
        # there (pre-bias maxima can be negative, so 0-padding is not enough).
        @pl.when(n_idx != last)
        def _fast():
            acc_ref[...] = jnp.maximum(acc_ref[...], jnp.max(h, axis=1))

        @pl.when(n_idx == last)
        def _masked():
            limit = n_points - n_idx * tn
            row = jax.lax.broadcasted_iota(jnp.int32, (1, tn, 1), 1)
            hm = jnp.where(row < limit, h, -jnp.inf)
            acc_ref[...] = jnp.maximum(acc_ref[...], jnp.max(hm, axis=1))
    else:
        acc_ref[...] = jnp.maximum(acc_ref[...], jnp.max(h, axis=1))

    # ---- fc head (bn3 bias+ReLU, fc1/bn4, fc2/bn5, fc3 + identity) ---------
    @pl.when(n_idx == last)
    def _head():
        g = jnp.maximum(acc_ref[...] + b3_ref[...], 0.0)   # hoisted bias/ReLU
        f = jnp.maximum(
            jnp.dot(g.astype(cdt), w4_ref[...], preferred_element_type=jnp.float32)
            + b4_ref[...], 0.0)
        f = jnp.maximum(
            jnp.dot(f.astype(cdt), w5_ref[...], preferred_element_type=jnp.float32)
            + b5_ref[...], 0.0)
        out_ref[...] = (
            jnp.dot(f.astype(cdt), w6_ref[...], preferred_element_type=jnp.float32)
            + b6_ref[...] + iden_ref[...])


def _round_up(x, m):
    return (x + m - 1) // m * m


def _buffered_supported():
    """One-time capability probe for pipeline_mode=pl.Buffered(1)."""
    if not hasattr(pl, "Buffered"):
        return False
    try:
        mode = pl.Buffered(1)
        pl.BlockSpec((8, 128), lambda i, j: (0, 0), pipeline_mode=mode)
    except (TypeError, ValueError):
        return False
    return True


_BUFFERED_OK = _buffered_supported()


def _chip_defaults():
    """Per-generation (tile_b, tile_n, vmem_limit_bytes)."""
    try:
        vmem_cap = int(pltpu.get_tpu_info().vmem_capacity_bytes)
    except Exception:
        vmem_cap = 0
    if vmem_cap >= (100 << 20):      # v5e / v6e class: 128 MiB VMEM per core
        return 16, 512, 96 << 20
    if vmem_cap > 0:                 # v7x class: 64 MiB VMEM per core
        return 16, 128, 48 << 20
    return 16, 256, 48 << 20         # unknown hardware: conservative middle


def fold_bn(w, b, gamma, beta, mean, var, eps=1e-5):
    """Fold inference-mode BatchNorm into an (in, out) weight + bias."""
    scale = gamma / jnp.sqrt(var + eps)
    return w * scale[None, :], (b - mean) * scale + beta


def make_params(key, k):
    """Deterministic synthetic parameters (shapes from STNkd.__init__)."""
    dims = [(k, 64), (64, 128), (128, 1024), (1024, 512), (512, 256), (256, k * k)]
    keys = jax.random.split(key, len(dims) * 6)
    params = []
    ki = 0
    for li, (cin, cout) in enumerate(dims):
        w = 0.1 * jax.random.normal(keys[ki + 0], (cin, cout), jnp.float32)
        b = 0.1 * jax.random.normal(keys[ki + 1], (cout,), jnp.float32)
        if li < 5:  # conv1-3, fc1, fc2 carry BatchNorm; fc3 does not.
            gamma = 1.0 + 0.1 * jax.random.normal(keys[ki + 2], (cout,), jnp.float32)
            beta = 0.05 * jax.random.normal(keys[ki + 3], (cout,), jnp.float32)
            mean = 0.1 * jax.random.normal(keys[ki + 4], (cout,), jnp.float32)
            var = 1.0 + 0.1 * jax.random.uniform(keys[ki + 5], (cout,), jnp.float32)
            w, b = fold_bn(w, b, gamma, beta, mean, var)
        params.append((w, b.reshape(1, cout)))
        ki += 6
    iden = jnp.eye(k, dtype=jnp.float32).reshape(1, k * k)
    return params, iden


@functools.partial(
    jax.jit,
    static_argnames=("k", "compute_dtype", "tile_b", "tile_n",
                     "vmem_limit", "use_buffered"))
def _stnkd_impl(x_bkn, params, iden, *, k, compute_dtype, tile_b, tile_n,
                vmem_limit, use_buffered):
    B, kk, N = x_bkn.shape
    assert kk == k

    # ---- tile / padding choices --------------------------------------------
    sub = 16 if compute_dtype == jnp.bfloat16 else 8   # sublane packing
    n_pad = _round_up(N, sub)
    if n_pad <= tile_n:
        tn = n_pad
    else:
        tn = tile_n                      # multiple of `sub`
        n_pad = _round_up(N, tn)
    tb = B if B <= tile_b else tile_b
    b_pad = _round_up(B, tb)
    # Expose >=2 parallel batch tiles for 2-TC chips when the batch allows it.
    if b_pad // tb < 2 and tb % 16 == 0:
        tb //= 2

    # ---- prologue: (B, k, N) -> channels-last bf16, padded (fused by jit) ---
    # TODO(synk): a channels-on-sublane kernel layout would remove even this
    # single transpose pass; kept channels-last for lowering robustness.
    x = jnp.transpose(x_bkn, (0, 2, 1)).astype(compute_dtype)      # (B, N, k)
    x = jnp.pad(x, ((0, b_pad - B), (0, n_pad - N), (0, 0)))

    (w1, b1), (w2, b2), (w3, b3), (w4, b4), (w5, b5), (w6, b6) = params
    # Pad the head output width to a lane-dense multiple of 128 (zero columns,
    # sliced off below) so the (tb, k*k) output store is an unmasked vst.
    out_cols = k * k
    out_cols_pad = max(_round_up(out_cols, 128), 128)
    pad_c = out_cols_pad - out_cols
    w6p = jnp.pad(w6, ((0, 0), (0, pad_c)))
    b6p = jnp.pad(b6, ((0, 0), (0, pad_c)))
    idenp = jnp.pad(iden, ((0, 0), (0, pad_c)))

    ws = [w.astype(compute_dtype) for w in (w1, w2, w3, w4, w5, w6p)]
    bs = [b.astype(jnp.float32) for b in (b1, b2, b3, b4, b5, b6p)]

    grid = (b_pad // tb, n_pad // tn)
    kernel = functools.partial(stnkd_kernel, n_points=N)

    def cspec(shape):
        if use_buffered:
            return pl.BlockSpec(shape, lambda b, n: (0, 0),
                                pipeline_mode=pl.Buffered(1))
        return pl.BlockSpec(shape, lambda b, n: (0, 0))

    const_specs = []
    for w, bb in zip(ws, bs):
        const_specs += [cspec(w.shape), cspec(bb.shape)]
    const_specs.append(cspec(idenp.shape))

    out = pl.pallas_call(
        kernel,
        out_shape=jax.ShapeDtypeStruct((b_pad, out_cols_pad), jnp.float32),
        grid_spec=pltpu.PrefetchScalarGridSpec(
            num_scalar_prefetch=0,
            grid=grid,
            in_specs=[pl.BlockSpec((tb, tn, k), lambda b, n: (b, n, 0))]
            + const_specs,
            out_specs=pl.BlockSpec((tb, out_cols_pad), lambda b, n: (b, 0)),
            scratch_shapes=[pltpu.VMEM((tb, 1024), jnp.float32)],
        ),
        compiler_params=pltpu.CompilerParams(
            dimension_semantics=("parallel", "arbitrary"),
            vmem_limit_bytes=vmem_limit,
        ),
    )(x, ws[0], bs[0], ws[1], bs[1], ws[2], bs[2],
      ws[3], bs[3], ws[4], bs[4], ws[5], bs[5], idenp)

    return out[:B, :out_cols].reshape(B, k, k)


def stnkd_forward(x_bkn, params, iden, k, *, compute_dtype=jnp.bfloat16):
    """x_bkn: (B, k, N) float32 (PyTorch Conv1d layout). Returns (B, k, k)."""
    tile_b, tile_n, vmem_limit = _chip_defaults()
    kwargs = dict(k=k, compute_dtype=compute_dtype, tile_b=tile_b,
                  tile_n=tile_n, vmem_limit=vmem_limit)
    try:
        return _stnkd_impl(x_bkn, params, iden, use_buffered=_BUFFERED_OK,
                           **kwargs)
    except (pltpu.LoweringException, NotImplementedError, ValueError):
        if not _BUFFERED_OK:
            raise
        # Narrow fallback: this jax build accepts the pipeline_mode kwarg but
        # its lowering rejects single-buffered constants. A genuine error
        # unrelated to buffering fails again here and is re-raised.
        return _stnkd_impl(x_bkn, params, iden, use_buffered=False, **kwargs)


def stnkd_reference(x_bkn, params, iden, k, compute_dtype=jnp.bfloat16):
    """Pure-JAX reference matching the kernel's bf16-matmul / f32-accumulate."""
    x = jnp.transpose(x_bkn, (0, 2, 1))                            # (B, N, k)
    (w1, b1), (w2, b2), (w3, b3), (w4, b4), (w5, b5), (w6, b6) = params

    def mm(a, w):
        return jnp.dot(a.astype(compute_dtype), w.astype(compute_dtype),
                       preferred_element_type=jnp.float32)

    h = jax.nn.relu(mm(x, w1) + b1)
    h = jax.nn.relu(mm(h, w2) + b2)
    h = jax.nn.relu(mm(h, w3) + b3)
    g = jnp.max(h, axis=1)                                         # (B, 1024)
    f = jax.nn.relu(mm(g, w4) + b4)
    f = jax.nn.relu(mm(f, w5) + b5)
    f = mm(f, w6) + b6 + iden
    return f.reshape(x_bkn.shape[0], k, k)


if __name__ == "__main__":
    B, K, N = 2, 8, 16  # small demo shapes: batch=2, k=8 channels, 16 points
    key = jax.random.PRNGKey(0)
    kx, kp = jax.random.split(key)
    x = jax.random.normal(kx, (B, K, N), jnp.float32)              # (B, k, N)
    params, iden = make_params(kp, K)

    out = stnkd_forward(x, params, iden, K)
    out = jax.block_until_ready(out)

    ref = stnkd_reference(x, params, iden, K)
    assert out.shape == (B, K, K)
    assert jnp.allclose(out, ref, atol=2e-2, rtol=2e-2), "mismatch vs reference"
    print("KERNEL_OK")
</pallas_src>

<mosaic_0001>
module attributes {stable_mosaic.version = 11 : i64} {
  func.func @stnkd_kernel(%arg0: i32, %arg1: i32, %arg2: memref<2x16x8xbf16, #tpu.memory_space<vmem>>, %arg3: memref<8x64xbf16, #tpu.memory_space<vmem>>, %arg4: memref<1x64xf32, #tpu.memory_space<vmem>>, %arg5: memref<64x128xbf16, #tpu.memory_space<vmem>>, %arg6: memref<1x128xf32, #tpu.memory_space<vmem>>, %arg7: memref<128x1024xbf16, #tpu.memory_space<vmem>>, %arg8: memref<1x1024xf32, #tpu.memory_space<vmem>>, %arg9: memref<1024x512xbf16, #tpu.memory_space<vmem>>, %arg10: memref<1x512xf32, #tpu.memory_space<vmem>>, %arg11: memref<512x256xbf16, #tpu.memory_space<vmem>>, %arg12: memref<1x256xf32, #tpu.memory_space<vmem>>, %arg13: memref<256x128xbf16, #tpu.memory_space<vmem>>, %arg14: memref<1x128xf32, #tpu.memory_space<vmem>>, %arg15: memref<1x128xf32, #tpu.memory_space<vmem>>, %arg16: memref<2x128xf32, #tpu.memory_space<vmem>>, %arg17: memref<2x1024xf32, #tpu.memory_space<vmem>>) attributes {dimension_semantics = [#tpu.dimension_semantics<parallel>, #tpu.dimension_semantics<arbitrary>], iteration_bounds = array<i64: 1, 1>, scalar_prefetch = 0 : i64, scratch_operands = 1 : i64, tpu.core_type = #tpu.core_type<tc>, window_params = [{transform_indices = @transform_0, window_bounds = array<i64: 2, 16, 8>}, {pipeline_mode = #tpu.pipeline_mode<synchronous>, transform_indices = @transform_1, window_bounds = array<i64: 8, 64>}, {pipeline_mode = #tpu.pipeline_mode<synchronous>, transform_indices = @transform_2, window_bounds = array<i64: 1, 64>}, {pipeline_mode = #tpu.pipeline_mode<synchronous>, transform_indices = @transform_3, window_bounds = array<i64: 64, 128>}, {pipeline_mode = #tpu.pipeline_mode<synchronous>, transform_indices = @transform_4, window_bounds = array<i64: 1, 128>}, {pipeline_mode = #tpu.pipeline_mode<synchronous>, transform_indices = @transform_5, window_bounds = array<i64: 128, 1024>}, {pipeline_mode = #tpu.pipeline_mode<synchronous>, transform_indices = @transform_6, window_bounds = array<i64: 1, 1024>}, {pipeline_mode = #tpu.pipeline_mode<synchronous>, transform_indices = @transform_7, window_bounds = array<i64: 1024, 512>}, {pipeline_mode = #tpu.pipeline_mode<synchronous>, transform_indices = @transform_8, window_bounds = array<i64: 1, 512>}, {pipeline_mode = #tpu.pipeline_mode<synchronous>, transform_indices = @transform_9, window_bounds = array<i64: 512, 256>}, {pipeline_mode = #tpu.pipeline_mode<synchronous>, transform_indices = @transform_10, window_bounds = array<i64: 1, 256>}, {pipeline_mode = #tpu.pipeline_mode<synchronous>, transform_indices = @transform_11, window_bounds = array<i64: 256, 128>}, {pipeline_mode = #tpu.pipeline_mode<synchronous>, transform_indices = @transform_12, window_bounds = array<i64: 1, 128>}, {pipeline_mode = #tpu.pipeline_mode<synchronous>, transform_indices = @transform_13, window_bounds = array<i64: 1, 128>}, {transform_indices = @transform_14, window_bounds = array<i64: 2, 128>}]} {
    %c0 = arith.constant 0 : index
    %c0_0 = arith.constant 0 : index
    %c0_1 = arith.constant 0 : index
    %0 = vector.load %arg2[%c0, %c0_0, %c0_1] : memref<2x16x8xbf16, #tpu.memory_space<vmem>>, vector<2x16x8xbf16>
    %1 = vector.shape_cast %0 : vector<2x16x8xbf16> to vector<32x8xbf16>
    %c0_2 = arith.constant 0 : index
    %c0_3 = arith.constant 0 : index
    %2 = vector.load %arg3[%c0_2, %c0_3] : memref<8x64xbf16, #tpu.memory_space<vmem>>, vector<8x64xbf16>
    %cst = arith.constant dense<0.000000e+00> : vector<32x64xf32>
    %3 = tpu.matmul %1, %2, %cst {dimension_numbers = #tpu.dot_dimension_numbers<[1], [0], [0], [1], [0, 0, 1, 1], [], []>} : vector<32x8xbf16>, vector<8x64xbf16>, vector<32x64xf32> -> vector<32x64xf32>
    %c0_4 = arith.constant 0 : index
    %c0_5 = arith.constant 0 : index
    %4 = vector.load %arg4[%c0_4, %c0_5] : memref<1x64xf32, #tpu.memory_space<vmem>>, vector<1x64xf32>
    %5 = vector.broadcast %4 : vector<1x64xf32> to vector<32x64xf32>
    %6 = arith.addf %3, %5 : vector<32x64xf32>
    %cst_6 = arith.constant 0.000000e+00 : f32
    %7 = vector.broadcast %cst_6 : f32 to vector<32x64xf32>
    %8 = arith.maximumf %6, %7 : vector<32x64xf32>
    %9 = arith.truncf %8 : vector<32x64xf32> to vector<32x64xbf16>
    %c0_7 = arith.constant 0 : index
    %c0_8 = arith.constant 0 : index
    %10 = vector.load %arg5[%c0_7, %c0_8] : memref<64x128xbf16, #tpu.memory_space<vmem>>, vector<64x128xbf16>
    %cst_9 = arith.constant dense<0.000000e+00> : vector<32x128xf32>
    %11 = tpu.matmul %9, %10, %cst_9 {dimension_numbers = #tpu.dot_dimension_numbers<[1], [0], [0], [1], [0, 0, 1, 1], [], []>} : vector<32x64xbf16>, vector<64x128xbf16>, vector<32x128xf32> -> vector<32x128xf32>
    %c0_10 = arith.constant 0 : index
    %c0_11 = arith.constant 0 : index
    %12 = vector.load %arg6[%c0_10, %c0_11] : memref<1x128xf32, #tpu.memory_space<vmem>>, vector<1x128xf32>
    %13 = vector.broadcast %12 : vector<1x128xf32> to vector<32x128xf32>
    %14 = arith.addf %11, %13 : vector<32x128xf32>
    %cst_12 = arith.constant 0.000000e+00 : f32
    %15 = vector.broadcast %cst_12 : f32 to vector<32x128xf32>
    %16 = arith.maximumf %14, %15 : vector<32x128xf32>
    %17 = arith.truncf %16 : vector<32x128xf32> to vector<32x128xbf16>
    %c0_13 = arith.constant 0 : index
    %c0_14 = arith.constant 0 : index
    %18 = vector.load %arg7[%c0_13, %c0_14] : memref<128x1024xbf16, #tpu.memory_space<vmem>>, vector<128x1024xbf16>
    %cst_15 = arith.constant dense<0.000000e+00> : vector<32x1024xf32>
    %19 = tpu.matmul %17, %18, %cst_15 {dimension_numbers = #tpu.dot_dimension_numbers<[1], [0], [0], [1], [0, 0, 1, 1], [], []>} : vector<32x128xbf16>, vector<128x1024xbf16>, vector<32x1024xf32> -> vector<32x1024xf32>
    %20 = vector.shape_cast %19 : vector<32x1024xf32> to vector<2x16x1024xf32>
    %c0_i32 = arith.constant 0 : i32
    %21 = arith.cmpi eq, %arg1, %c0_i32 : i32
    %22 = arith.extui %21 : i1 to i32
    %c0_i32_16 = arith.constant 0 : i32
    %23 = arith.cmpi ne, %22, %c0_i32_16 : i32
    scf.if %23 {
      %cst_24 = arith.constant 0xFF800000 : f32
      %31 = vector.broadcast %cst_24 : f32 to vector<2x1024xf32>
      %c0_25 = arith.constant 0 : index
      %c0_26 = arith.constant 0 : index
      %32 = vector.load %arg17[%c0_25, %c0_26] : memref<2x1024xf32, #tpu.memory_space<vmem>>, vector<2x1024xf32>
      tpu.vector_store %arg17[%c0_25, %c0_26], %31 {strides = array<i32>} : memref<2x1024xf32, #tpu.memory_space<vmem>>, vector<2x1024xf32>,
    } else {
    }
    %c0_17 = arith.constant 0 : index
    %c0_18 = arith.constant 0 : index
    %24 = vector.load %arg17[%c0_17, %c0_18] : memref<2x1024xf32, #tpu.memory_space<vmem>>, vector<2x1024xf32>
    %cst_19 = arith.constant dense<0xFF800000> : vector<2x1024xf32>
    %25 = vector.multi_reduction <maximumf>, %20, %cst_19 [1] : vector<2x16x1024xf32> to vector<2x1024xf32>
    %26 = arith.maximumf %24, %25 : vector<2x1024xf32>
    %c0_20 = arith.constant 0 : index
    %c0_21 = arith.constant 0 : index
    %27 = vector.load %arg17[%c0_20, %c0_21] : memref<2x1024xf32, #tpu.memory_space<vmem>>, vector<2x1024xf32>
    tpu.vector_store %arg17[%c0_20, %c0_21], %26 {strides = array<i32>} : memref<2x1024xf32, #tpu.memory_space<vmem>>, vector<2x1024xf32>,
    %c0_i32_22 = arith.constant 0 : i32
    %28 = arith.cmpi eq, %arg1, %c0_i32_22 : i32
    %29 = arith.extui %28 : i1 to i32
    %c0_i32_23 = arith.constant 0 : i32
    %30 = arith.cmpi ne, %29, %c0_i32_23 : i32
    scf.if %30 {
      %c0_24 = arith.constant 0 : index
      %c0_25 = arith.constant 0 : index
      %31 = vector.load %arg17[%c0_24, %c0_25] : memref<2x1024xf32, #tpu.memory_space<vmem>>, vector<2x1024xf32>
      %c0_26 = arith.constant 0 : index
      %c0_27 = arith.constant 0 : index
      %32 = vector.load %arg8[%c0_26, %c0_27] : memref<1x1024xf32, #tpu.memory_space<vmem>>, vector<1x1024xf32>
      %33 = vector.broadcast %32 : vector<1x1024xf32> to vector<2x1024xf32>
      %34 = arith.addf %31, %33 : vector<2x1024xf32>
      %cst_28 = arith.constant 0.000000e+00 : f32
      %35 = vector.broadcast %cst_28 : f32 to vector<2x1024xf32>
      %36 = arith.maximumf %34, %35 : vector<2x1024xf32>
      %37 = arith.truncf %36 : vector<2x1024xf32> to vector<2x1024xbf16>
      %c0_29 = arith.constant 0 : index
      %c0_30 = arith.constant 0 : index
      %38 = vector.load %arg9[%c0_29, %c0_30] : memref<1024x512xbf16, #tpu.memory_space<vmem>>, vector<1024x512xbf16>
      %cst_31 = arith.constant dense<0.000000e+00> : vector<2x512xf32>
      %39 = tpu.matmul %37, %38, %cst_31 {dimension_numbers = #tpu.dot_dimension_numbers<[1], [0], [0], [1], [0, 0, 1, 1], [], []>} : vector<2x1024xbf16>, vector<1024x512xbf16>, vector<2x512xf32> -> vector<2x512xf32>
      %c0_32 = arith.constant 0 : index
      %c0_33 = arith.constant 0 : index
      %40 = vector.load %arg10[%c0_32, %c0_33] : memref<1x512xf32, #tpu.memory_space<vmem>>, vector<1x512xf32>
      %41 = vector.broadcast %40 : vector<1x512xf32> to vector<2x512xf32>
      %42 = arith.addf %39, %41 : vector<2x512xf32>
      %cst_34 = arith.constant 0.000000e+00 : f32
      %43 = vector.broadcast %cst_34 : f32 to vector<2x512xf32>
      %44 = arith.maximumf %42, %43 : vector<2x512xf32>
      %45 = arith.truncf %44 : vector<2x512xf32> to vector<2x512xbf16>
      %c0_35 = arith.constant 0 : index
      %c0_36 = arith.constant 0 : index
      %46 = vector.load %arg11[%c0_35, %c0_36] : memref<512x256xbf16, #tpu.memory_space<vmem>>, vector<512x256xbf16>
      %cst_37 = arith.constant dense<0.000000e+00> : vector<2x256xf32>
      %47 = tpu.matmul %45, %46, %cst_37 {dimension_numbers = #tpu.dot_dimension_numbers<[1], [0], [0], [1], [0, 0, 1, 1], [], []>} : vector<2x512xbf16>, vector<512x256xbf16>, vector<2x256xf32> -> vector<2x256xf32>
      %c0_38 = arith.constant 0 : index
      %c0_39 = arith.constant 0 : index
      %48 = vector.load %arg12[%c0_38, %c0_39] : memref<1x256xf32, #tpu.memory_space<vmem>>, vector<1x256xf32>
      %49 = vector.broadcast %48 : vector<1x256xf32> to vector<2x256xf32>
      %50 = arith.addf %47, %49 : vector<2x256xf32>
      %cst_40 = arith.constant 0.000000e+00 : f32
      %51 = vector.broadcast %cst_40 : f32 to vector<2x256xf32>
      %52 = arith.maximumf %50, %51 : vector<2x256xf32>
      %53 = arith.truncf %52 : vector<2x256xf32> to vector<2x256xbf16>
      %c0_41 = arith.constant 0 : index
      %c0_42 = arith.constant 0 : index
      %54 = vector.load %arg13[%c0_41, %c0_42] : memref<256x128xbf16, #tpu.memory_space<vmem>>, vector<256x128xbf16>
      %cst_43 = arith.constant dense<0.000000e+00> : vector<2x128xf32>
      %55 = tpu.matmul %53, %54, %cst_43 {dimension_numbers = #tpu.dot_dimension_numbers<[1], [0], [0], [1], [0, 0, 1, 1], [], []>} : vector<2x256xbf16>, vector<256x128xbf16>, vector<2x128xf32> -> vector<2x128xf32>
      %c0_44 = arith.constant 0 : index
      %c0_45 = arith.constant 0 : index
      %56 = vector.load %arg14[%c0_44, %c0_45] : memref<1x128xf32, #tpu.memory_space<vmem>>, vector<1x128xf32>
      %57 = vector.broadcast %56 : vector<1x128xf32> to vector<2x128xf32>
      %58 = arith.addf %55, %57 : vector<2x128xf32>
      %c0_46 = arith.constant 0 : index
      %c0_47 = arith.constant 0 : index
      %59 = vector.load %arg15[%c0_46, %c0_47] : memref<1x128xf32, #tpu.memory_space<vmem>>, vector<1x128xf32>
      %60 = vector.broadcast %59 : vector<1x128xf32> to vector<2x128xf32>
      %61 = arith.addf %58, %60 : vector<2x128xf32>
      %c0_48 = arith.constant 0 : index
      %c0_49 = arith.constant 0 : index
      %62 = vector.load %arg16[%c0_48, %c0_49] : memref<2x128xf32, #tpu.memory_space<vmem>>, vector<2x128xf32>
      tpu.vector_store %arg16[%c0_48, %c0_49], %61 {strides = array<i32>} : memref<2x128xf32, #tpu.memory_space<vmem>>, vector<2x128xf32>,
    } else {
    }
    return
  }
  func.func @transform_0(%arg0: i32, %arg1: i32) -> (i32, i32, i32) {
    %c0_i32 = arith.constant 0 : i32
    %c0_i32_0 = arith.constant 0 : i32
    return %arg0, %arg1, %c0_i32 : i32, i32, i32
  }
  func.func @transform_1(%arg0: i32, %arg1: i32) -> (i32, i32) {
    %c0_i32 = arith.constant 0 : i32
    %c0_i32_0 = arith.constant 0 : i32
    %c0_i32_1 = arith.constant 0 : i32
    return %c0_i32, %c0_i32_0 : i32, i32
  }
  func.func @transform_2(%arg0: i32, %arg1: i32) -> (i32, i32) {
    %c0_i32 = arith.constant 0 : i32
    %c0_i32_0 = arith.constant 0 : i32
    %c0_i32_1 = arith.constant 0 : i32
    return %c0_i32, %c0_i32_0 : i32, i32
  }
  func.func @transform_3(%arg0: i32, %arg1: i32) -> (i32, i32) {
    %c0_i32 = arith.constant 0 : i32
    %c0_i32_0 = arith.constant 0 : i32
    %c0_i32_1 = arith.constant 0 : i32
    return %c0_i32, %c0_i32_0 : i32, i32
  }
  func.func @transform_4(%arg0: i32, %arg1: i32) -> (i32, i32) {
    %c0_i32 = arith.constant 0 : i32
    %c0_i32_0 = arith.constant 0 : i32
    %c0_i32_1 = arith.constant 0 : i32
    return %c0_i32, %c0_i32_0 : i32, i32
  }
  func.func @transform_5(%arg0: i32, %arg1: i32) -> (i32, i32) {
    %c0_i32 = arith.constant 0 : i32
    %c0_i32_0 = arith.constant 0 : i32
    %c0_i32_1 = arith.constant 0 : i32
    return %c0_i32, %c0_i32_0 : i32, i32
  }
  func.func @transform_6(%arg0: i32, %arg1: i32) -> (i32, i32) {
    %c0_i32 = arith.constant 0 : i32
    %c0_i32_0 = arith.constant 0 : i32
    %c0_i32_1 = arith.constant 0 : i32
    return %c0_i32, %c0_i32_0 : i32, i32
  }
  func.func @transform_7(%arg0: i32, %arg1: i32) -> (i32, i32) {
    %c0_i32 = arith.constant 0 : i32
    %c0_i32_0 = arith.constant 0 : i32
    %c0_i32_1 = arith.constant 0 : i32
    return %c0_i32, %c0_i32_0 : i32, i32
  }
  func.func @transform_8(%arg0: i32, %arg1: i32) -> (i32, i32) {
    %c0_i32 = arith.constant 0 : i32
    %c0_i32_0 = arith.constant 0 : i32
    %c0_i32_1 = arith.constant 0 : i32
    return %c0_i32, %c0_i32_0 : i32, i32
  }
  func.func @transform_9(%arg0: i32, %arg1: i32) -> (i32, i32) {
    %c0_i32 = arith.constant 0 : i32
    %c0_i32_0 = arith.constant 0 : i32
    %c0_i32_1 = arith.constant 0 : i32
    return %c0_i32, %c0_i32_0 : i32, i32
  }
  func.func @transform_10(%arg0: i32, %arg1: i32) -> (i32, i32) {
    %c0_i32 = arith.constant 0 : i32
    %c0_i32_0 = arith.constant 0 : i32
    %c0_i32_1 = arith.constant 0 : i32
    return %c0_i32, %c0_i32_0 : i32, i32
  }
  func.func @transform_11(%arg0: i32, %arg1: i32) -> (i32, i32) {
    %c0_i32 = arith.constant 0 : i32
    %c0_i32_0 = arith.constant 0 : i32
    %c0_i32_1 = arith.constant 0 : i32
    return %c0_i32, %c0_i32_0 : i32, i32
  }
  func.func @transform_12(%arg0: i32, %arg1: i32) -> (i32, i32) {
    %c0_i32 = arith.constant 0 : i32
    %c0_i32_0 = arith.constant 0 : i32
    %c0_i32_1 = arith.constant 0 : i32
    return %c0_i32, %c0_i32_0 : i32, i32
  }
  func.func @transform_13(%arg0: i32, %arg1: i32) -> (i32, i32) {
    %c0_i32 = arith.constant 0 : i32
    %c0_i32_0 = arith.constant 0 : i32
    %c0_i32_1 = arith.constant 0 : i32
    return %c0_i32, %c0_i32_0 : i32, i32
  }
  func.func @transform_14(%arg0: i32, %arg1: i32) -> (i32, i32) {
    %c0_i32 = arith.constant 0 : i32
    %c0_i32_0 = arith.constant 0 : i32
    return %arg0, %c0_i32 : i32, i32
  }
}

</mosaic_0001>

<llo_original>
// kernel: _stnkd_impl.1
$region0: #{_stnkd_impl.1}
  #allocation0 [shape = 'u32[]', space=smem, size = 0x4, offset = 0x4, fixed_abs, tag = 'smem constant byte address 0x4 - core index']
  #allocation1 [shape = 'u32[144,128]{1,0:T(1,128)}', space=vmem, size = 0x12000, scoped, tag = 'internal scratch']
  #allocation2 [shape = 'f32[2,1024]{1,0:T(2,128)}', space=vmem, size = 0x2000, scoped, tag = 'scratch operand']
  %s0 = inlined_call_operand.vmem [shape: bf16[2,16,8], index: 0, kind: input, shape index: {}]
  %s1 = inlined_call_operand.vmem [shape: bf16[8,64], index: 1, kind: input, shape index: {}]
  %s2 = inlined_call_operand.vmem [shape: f32[1,64], index: 2, kind: input, shape index: {}]
  %s3 = inlined_call_operand.vmem [shape: bf16[64,128], index: 3, kind: input, shape index: {}]
  %s4 = inlined_call_operand.vmem [shape: f32[1,128], index: 4, kind: input, shape index: {}]
  %s5 = inlined_call_operand.vmem [shape: bf16[128,1024], index: 5, kind: input, shape index: {}]
  %s6 = inlined_call_operand.vmem [shape: f32[1,1024], index: 6, kind: input, shape index: {}]
  %s7 = inlined_call_operand.vmem [shape: bf16[1024,512], index: 7, kind: input, shape index: {}]
  %s8 = inlined_call_operand.vmem [shape: f32[1,512], index: 8, kind: input, shape index: {}]
  %s9 = inlined_call_operand.vmem [shape: bf16[512,256], index: 9, kind: input, shape index: {}]
  %s10 = inlined_call_operand.vmem [shape: f32[1,256], index: 10, kind: input, shape index: {}]
  %s11 = inlined_call_operand.vmem [shape: bf16[256,128], index: 11, kind: input, shape index: {}]
  %s12 = inlined_call_operand.vmem [shape: f32[1,128], index: 12, kind: input, shape index: {}]
  %s13 = inlined_call_operand.vmem [shape: f32[1,128], index: 13, kind: input, shape index: {}]
  %s14 = inlined_call_operand.vmem [shape: f32[2,128], index: 14, kind: output, shape index: {}]
  %s15 = sld [smem:[#allocation0]]
  $region74: #{_stnkd_impl.1} parent=0
    _
  %s17 = ssub.s32 1, %s15
  %s18 = scalar_select 0, %s17, %s15
  // Predicated region
  $region2: #{_stnkd_impl.1} parent=0 // pred_check
    _
  $region3: #{_stnkd_impl.1} parent=0 // pred_check_branch
    %20 = sbr.rel (0) target = $region5
  $region4: #{_stnkd_impl.1} parent=0 // pred_region
    _
  $region5: #{_stnkd_impl.1} parent=0 // pred_fallthru
    _
  // Predicated region
  $region6: #{_stnkd_impl.1} parent=0 // pred_check
    _
  $region7: #{_stnkd_impl.1} parent=0 // pred_check_branch
    %22 = sbr.rel (0) target = $region9
  $region8: #{_stnkd_impl.1} parent=0 // pred_region
    _
  $region9: #{_stnkd_impl.1} parent=0 // pred_fallthru
    _
  // Predicated region
  $region10: #{_stnkd_impl.1} parent=0 // pred_check
    _
  $region11: #{_stnkd_impl.1} parent=0 // pred_check_branch
    %24 = sbr.rel (0) target = $region13
  $region12: #{_stnkd_impl.1} parent=0 // pred_region
    _
  $region13: #{_stnkd_impl.1} parent=0 // pred_fallthru
    _
  // Predicated region
  $region14: #{_stnkd_impl.1} parent=0 // pred_check
    _
  $region15: #{_stnkd_impl.1} parent=0 // pred_check_branch
    %26 = sbr.rel (0) target = $region17
  $region16: #{_stnkd_impl.1} parent=0 // pred_region
    _
  $region17: #{_stnkd_impl.1} parent=0 // pred_fallthru
    _
  // Predicated region
  $region18: #{_stnkd_impl.1} parent=0 // pred_check
    _
  $region19: #{_stnkd_impl.1} parent=0 // pred_check_branch
    %28 = sbr.rel (0) target = $region21
  $region20: #{_stnkd_impl.1} parent=0 // pred_region
    _
  $region21: #{_stnkd_impl.1} parent=0 // pred_fallthru
    _
  // Predicated region
  $region22: #{_stnkd_impl.1} parent=0 // pred_check
    _
  $region23: #{_stnkd_impl.1} parent=0 // pred_check_branch
    %30 = sbr.rel (0) target = $region25
  $region24: #{_stnkd_impl.1} parent=0 // pred_region
    _
  $region25: #{_stnkd_impl.1} parent=0 // pred_fallthru
    _
  // Predicated region
  $region26: #{_stnkd_impl.1} parent=0 // pred_check
    _
  $region27: #{_stnkd_impl.1} parent=0 // pred_check_branch
    %32 = sbr.rel (0) target = $region29
  $region28: #{_stnkd_impl.1} parent=0 // pred_region
    _
  $region29: #{_stnkd_impl.1} parent=0 // pred_fallthru
    _
  // Predicated region
  $region30: #{_stnkd_impl.1} parent=0 // pred_check
    _
  $region31: #{_stnkd_impl.1} parent=0 // pred_check_branch
    %34 = sbr.rel (0) target = $region33
  $region32: #{_stnkd_impl.1} parent=0 // pred_region
    _
  $region33: #{_stnkd_impl.1} parent=0 // pred_fallthru
    _
  // Predicated region
  $region34: #{_stnkd_impl.1} parent=0 // pred_check
    _
  $region35: #{_stnkd_impl.1} parent=0 // pred_check_branch
    %36 = sbr.rel (0) target = $region37
  $region36: #{_stnkd_impl.1} parent=0 // pred_region
    _
  $region37: #{_stnkd_impl.1} parent=0 // pred_fallthru
    _
  // Predicated region
  $region38: #{_stnkd_impl.1} parent=0 // pred_check
    _
  $region39: #{_stnkd_impl.1} parent=0 // pred_check_branch
    %38 = sbr.rel (0) target = $region41
  $region40: #{_stnkd_impl.1} parent=0 // pred_region
    _
  $region41: #{_stnkd_impl.1} parent=0 // pred_fallthru
    _
  // Predicated region
  $region42: #{_stnkd_impl.1} parent=0 // pred_check
    _
  $region43: #{_stnkd_impl.1} parent=0 // pred_check_branch
    %40 = sbr.rel (0) target = $region45
  $region44: #{_stnkd_impl.1} parent=0 // pred_region
    _
  $region45: #{_stnkd_impl.1} parent=0 // pred_fallthru
    _
  // Predicated region
  $region46: #{_stnkd_impl.1} parent=0 // pred_check
    _
  $region47: #{_stnkd_impl.1} parent=0 // pred_check_branch
    %42 = sbr.rel (0) target = $region49
  $region48: #{_stnkd_impl.1} parent=0 // pred_region
    _
  $region49: #{_stnkd_impl.1} parent=0 // pred_fallthru
    _
  // Predicated region
  $region50: #{_stnkd_impl.1} parent=0 // pred_check
    _
  $region51: #{_stnkd_impl.1} parent=0 // pred_check_branch
    %44 = sbr.rel (0) target = $region53
  $region52: #{_stnkd_impl.1} parent=0 // pred_region
    _
  $region53: #{_stnkd_impl.1} parent=0 // pred_fallthru
    _
  // Predicated region
  $region54: #{_stnkd_impl.1} parent=0 // pred_check
    _
  $region55: #{_stnkd_impl.1} parent=0 // pred_check_branch
    %46 = sbr.rel (0) target = $region57
  $region56: #{_stnkd_impl.1} parent=0 // pred_region
    _
  $region57: #{_stnkd_impl.1} parent=0 // pred_fallthru
    _
  %v48 = vld [vmem:[%s0] sm:$0xf]
  %v49 = vld [vmem:[%s0 + $0x4] sm:$0xf]
  %v50 = vld [vmem:[%s0 + $0x8] sm:$0xf]
  %v51 = vld [vmem:[%s0 + $0xc] sm:$0xf]
  %v52 = vld [vmem:[%s1] sm:$0xf]
  %v53 = vld [vmem:[%s2] sm:$0x1]
  %v55 = vlaneseq
  %v56 = vshrl.u32 %v55, 7
  %v57 = vsub.s32 0, %v56
  %v58 = vrot.slane %v53, %v57
  %v64 = vunpack.c.l.b16 %v48
  %v65 = vunpack.c.l.b16 %v49
  %v66 = vunpack.c.l.b16 %v50
  %v67 = vunpack.c.l.b16 %v51
  %v68 = vpack.c.b16 %v65, %v64
  %v69 = vpack.c.b16 %v67, %v66
  %vm70 = vcmask 64512
  %v72 = vsel %vm70, %v68, 0
  %v75 = vsel %vm70, %v69, 0
  %vm77 = vcmask 1043456
  %v79 = vsel %vm77, %v52, 0
  %81 = vmatprep.subr.bf16.mxu0 0
  %82 = vmatpush1.bf16.msra.mxu0 %v79
  %83 = vmatprep.subr.bf16.mxu0 0
  %84 = vmatpush1.bf16.msra.mxu0 0
  %85 = vmatprep.subr.bf16.mxu0 0
  %86 = vmatpush1.bf16.msra.mxu0 0
  %87 = vmatprep.subr.bf16.mxu0 0
  %88 = vmatpush1.bf16.msra.mxu0 0
  %89 = vmatprep.subr.bf16.mxu0 0
  %90 = vmatpush1.bf16.msra.mxu0 0
  %91 = vmatprep.subr.bf16.mxu0 0
  %92 = vmatpush1.bf16.msra.mxu0 0
  %93 = vmatprep.subr.bf16.mxu0 0
  %94 = vmatpush1.bf16.msra.mxu0 0
  %95 = vmatprep.subr.bf16.mxu0 0
  %96 = vmatpush1.bf16.msra.mxu0 0
  %97 = vmatprep.subr.bf16.mxu0 0
  %98 = vmatpush1.bf16.msra.mxu0 0
  %99 = vmatprep.subr.bf16.mxu0 0
  %100 = vmatpush1.bf16.msra.mxu0 0
  %101 = vmatprep.subr.bf16.mxu0 0
  %102 = vmatpush1.bf16.msra.mxu0 0
  %103 = vmatprep.subr.bf16.mxu0 0
  %104 = vmatpush1.bf16.msra.mxu0 0
  %105 = vmatprep.subr.bf16.mxu0 0
  %106 = vmatpush1.bf16.msra.mxu0 0
  %107 = vmatprep.subr.bf16.mxu0 0
  %108 = vmatpush1.bf16.msra.mxu0 0
  %109 = vmatprep.subr.bf16.mxu0 0
  %110 = vmatpush1.bf16.msra.mxu0 0
  %111 = vmatprep.subr.bf16.mxu0 0
  %112 = vmatpush1.bf16.msra.mxu0 0
  %113 = vmatprep.mubr.bf16.mxu0 0
  %114 = vmatmul.mubr.bf16.gmra.mrb[0].mxu0 %v72
  %v115 = vpop.f32.mrb[0].mxu0
  %v116 = vadd.f32 %v58, %v115
  %v117 = vpop.f32.mrb[0].mxu0
  %v118 = vpop.f32.mrb[0].mxu0
  %v119 = vadd.f32 %v58, %v118
  %v120 = vpop.f32.mrb[0].mxu0
  %121 = vmatprep.mubr.bf16.mxu0 0
  %122 = vmatmul.mubr.bf16.gmra.mrb[0].mxu0 %v75
  %v123 = vpop.f32.mrb[0].mxu0
  %v124 = vadd.f32 %v58, %v123
  %v125 = vpop.f32.mrb[0].mxu0
  %v126 = vpop.f32.mrb[0].mxu0
  %v127 = vadd.f32 %v58, %v126
  %v128 = vpop.f32.mrb[0].mxu0
  %129 = vdwg.mxu0
  %v130 = vmax.f32 %v116, 0.0
  %v131 = vmax.f32 %v119, 0.0
  %v132 = vmax.f32 %v124, 0.0
  %v133 = vmax.f32 %v127, 0.0
  %v134 = vpack.c.bf16 %v131, %v130
  %v135 = vpack.c.bf16 %v133, %v132
  %v136 = vld [vmem:[%s3] sm:$0xf]
  %v137 = vld [vmem:[%s3 + $0x4] sm:$0xf]
  %v138 = vld [vmem:[%s3 + $0x8] sm:$0xf]
  %v139 = vld [vmem:[%s3 + $0xc] sm:$0xf]
  %v140 = vld [vmem:[%s3 + $0x10] sm:$0xf]
  %v141 = vld [vmem:[%s3 + $0x14] sm:$0xf]
  %v142 = vld [vmem:[%s3 + $0x18] sm:$0xf]
  %v143 = vld [vmem:[%s3 + $0x1c] sm:$0xf]
  %v144 = vld [vmem:[%s4] sm:$0x1]
  %v146 = vlaneseq
  %v147 = vshrl.u32 %v146, 7
  %v148 = vsub.s32 0, %v147
  %v149 = vrot.slane %v144, %v148
  %v159 = vunpack.c.l.b16 %v136
  %v160 = vunpack.c.l.b16 %v137
  %v161 = vunpack.c.l.b16 %v138
  %v162 = vunpack.c.l.b16 %v139
  %v163 = vunpack.c.l.b16 %v140
  %v164 = vunpack.c.l.b16 %v141
  %v165 = vunpack.c.l.b16 %v142
  %v166 = vunpack.c.l.b16 %v143
  %v167 = vpack.c.b16 %v160, %v159
  %v168 = vpack.c.b16 %v162, %v161
  %v169 = vpack.c.b16 %v164, %v163
  %v170 = vpack.c.b16 %v166, %v165
  %vm175 = vcmask 523264
  %v177 = vsel %vm175, %v134, 0
  %v180 = vsel %vm175, %v135, 0
  %182 = vmatprep.subr.bf16.mxu0 0
  %183 = vmatpush1.bf16.msra.mxu0 %v167
  %184 = vmatprep.subr.bf16.mxu0 0
  %185 = vmatpush1.bf16.msra.mxu0 %v168
  %186 = vmatprep.subr.bf16.mxu0 0
  %187 = vmatpush1.bf16.msra.mxu0 %v169
  %188 = vmatprep.subr.bf16.mxu0 0
  %189 = vmatpush1.bf16.msra.mxu0 %v170
  %190 = vmatprep.subr.bf16.mxu0 0
  %191 = vmatpush1.bf16.msra.mxu0 0
  %192 = vmatprep.subr.bf16.mxu0 0
  %193 = vmatpush1.bf16.msra.mxu0 0
  %194 = vmatprep.subr.bf16.mxu0 0
  %195 = vmatpush1.bf16.msra.mxu0 0
  %196 = vmatprep.subr.bf16.mxu0 0
  %197 = vmatpush1.bf16.msra.mxu0 0
  %198 = vmatprep.subr.bf16.mxu0 0
  %199 = vmatpush1.bf16.msra.mxu0 0
  %200 = vmatprep.subr.bf16.mxu0 0
  %201 = vmatpush1.bf16.msra.mxu0 0
  %202 = vmatprep.subr.bf16.mxu0 0
  %203 = vmatpush1.bf16.msra.mxu0 0
  %204 = vmatprep.subr.bf16.mxu0 0
  %205 = vmatpush1.bf16.msra.mxu0 0
  %206 = vmatprep.subr.bf16.mxu0 0
  %207 = vmatpush1.bf16.msra.mxu0 0
  %208 = vmatprep.subr.bf16.mxu0 0
  %209 = vmatpush1.bf16.msra.mxu0 0
  %210 = vmatprep.subr.bf16.mxu0 0
  %211 = vmatpush1.bf16.msra.mxu0 0
  %212 = vmatprep.subr.bf16.mxu0 0
  %213 = vmatpush1.bf16.msra.mxu0 0
  %214 = vmatprep.mubr.bf16.mxu0 0
  %215 = vmatmul.mubr.bf16.gmra.mrb[0].mxu0 %v177
  %v216 = vpop.f32.mrb[0].mxu0
  %v217 = vadd.f32 %v149, %v216
  %v218 = vpop.f32.mrb[0].mxu0
  %v219 = vpop.f32.mrb[0].mxu0
  %v220 = vadd.f32 %v149, %v219
  %v221 = vpop.f32.mrb[0].mxu0
  %222 = vmatprep.mubr.bf16.mxu0 0
  %223 = vmatmul.mubr.bf16.gmra.mrb[0].mxu0 %v180
  %v224 = vpop.f32.mrb[0].mxu0
  %v225 = vadd.f32 %v149, %v224
  %v226 = vpop.f32.mrb[0].mxu0
  %v227 = vpop.f32.mrb[0].mxu0
  %v228 = vadd.f32 %v149, %v227
  %v229 = vpop.f32.mrb[0].mxu0
  %230 = vdwg.mxu0
  %v231 = vmax.f32 %v217, 0.0
  %v232 = vmax.f32 %v220, 0.0
  %v233 = vmax.f32 %v225, 0.0
  %v234 = vmax.f32 %v228, 0.0
  %v235 = vpack.c.bf16 %v232, %v231
  %v236 = vpack.c.bf16 %v234, %v233
  %v237 = vld [vmem:[%s5] sm:$0xff]
  %v238 = vld [vmem:[%s5 + $0x8] sm:$0xff]
  %v239 = vld [vmem:[%s5 + $0x10] sm:$0xff]
  %v240 = vld [vmem:[%s5 + $0x18] sm:$0xff]
  %v241 = vld [vmem:[%s5 + $0x20] sm:$0xff]
  %v242 = vld [vmem:[%s5 + $0x28] sm:$0xff]
  %v243 = vld [vmem:[%s5 + $0x30] sm:$0xff]
  %v244 = vld [vmem:[%s5 + $0x38] sm:$0xff]
  %v245 = vld [vmem:[%s5 + $0x40] sm:$0xff]
  %v246 = vld [vmem:[%s5 + $0x48] sm:$0xff]
  %v247 = vld [vmem:[%s5 + $0x50] sm:$0xff]
  %v248 = vld [vmem:[%s5 + $0x58] sm:$0xff]
  %v249 = vld [vmem:[%s5 + $0x60] sm:$0xff]
  %v250 = vld [vmem:[%s5 + $0x68] sm:$0xff]
  %v251 = vld [vmem:[%s5 + $0x70] sm:$0xff]
  %v252 = vld [vmem:[%s5 + $0x78] sm:$0xff]
  %v253 = vld [vmem:[%s5 + $0x80] sm:$0xff]
  %v254 = vld [vmem:[%s5 + $0x88] sm:$0xff]
  %v255 = vld [vmem:[%s5 + $0x90] sm:$0xff]
  %v256 = vld [vmem:[%s5 + $0x98] sm:$0xff]
  %v257 = vld [vmem:[%s5 + $0xa0] sm:$0xff]
  %v258 = vld [vmem:[%s5 + $0xa8] sm:$0xff]
  %v259 = vld [vmem:[%s5 + $0xb0] sm:$0xff]
  %v260 = vld [vmem:[%s5 + $0xb8] sm:$0xff]
  %v261 = vld [vmem:[%s5 + $0xc0] sm:$0xff]
  %v262 = vld [vmem:[%s5 + $0xc8] sm:$0xff]
  %v263 = vld [vmem:[%s5 + $0xd0] sm:$0xff]
  %v264 = vld [vmem:[%s5 + $0xd8] sm:$0xff]
  %v265 = vld [vmem:[%s5 + $0xe0] sm:$0xff]
  %v266 = vld [vmem:[%s5 + $0xe8] sm:$0xff]
  %v267 = vld [vmem:[%s5 + $0xf0] sm:$0xff]
  %v268 = vld [vmem:[%s5 + $0xf8] sm:$0xff]
  %v269 = vld [vmem:[%s5 + $0x100] sm:$0xff]
  %v270 = vld [vmem:[%s5 + $0x108] sm:$0xff]
  %v271 = vld [vmem:[%s5 + $0x110] sm:$0xff]
  %v272 = vld [vmem:[%s5 + $0x118] sm:$0xff]
  %v273 = vld [vmem:[%s5 + $0x120] sm:$0xff]
  %v274 = vld [vmem:[%s5 + $0x128] sm:$0xff]
  %v275 = vld [vmem:[%s5 + $0x130] sm:$0xff]
  %v276 = vld [vmem:[%s5 + $0x138] sm:$0xff]
  %v277 = vld [vmem:[%s5 + $0x140] sm:$0xff]
  %v278 = vld [vmem:[%s5 + $0x148] sm:$0xff]
  %v279 = vld [vmem:[%s5 + $0x150] sm:$0xff]
  %v280 = vld [vmem:[%s5 + $0x158] sm:$0xff]
  %v281 = vld [vmem:[%s5 + $0x160] sm:$0xff]
  %v282 = vld [vmem:[%s5 + $0x168] sm:$0xff]
  %v283 = vld [vmem:[%s5 + $0x170] sm:$0xff]
  %v284 = vld [vmem:[%s5 + $0x178] sm:$0xff]
  %v285 = vld [vmem:[%s5 + $0x180] sm:$0xff]
  %v286 = vld [vmem:[%s5 + $0x188] sm:$0xff]
  %v287 = vld [vmem:[%s5 + $0x190] sm:$0xff]
  %v288 = vld [vmem:[%s5 + $0x198] sm:$0xff]
  %v289 = vld [vmem:[%s5 + $0x1a0] sm:$0xff]
  %v290 = vld [vmem:[%s5 + $0x1a8] sm:$0xff]
  %v291 = vld [vmem:[%s5 + $0x1b0] sm:$0xff]
  %v292 = vld [vmem:[%s5 + $0x1b8] sm:$0xff]
  %v293 = vld [vmem:[%s5 + $0x1c0] sm:$0xff]
  %v294 = vld [vmem:[%s5 + $0x1c8] sm:$0xff]
  %v295 = vld [vmem:[%s5 + $0x1d0] sm:$0xff]
  %v296 = vld [vmem:[%s5 + $0x1d8] sm:$0xff]
  %v297 = vld [vmem:[%s5 + $0x1e0] sm:$0xff]
  %v298 = vld [vmem:[%s5 + $0x1e8] sm:$0xff]
  %v299 = vld [vmem:[%s5 + $0x1f0] sm:$0xff]
  %v300 = vld [vmem:[%s5 + $0x1f8] sm:$0xff]
  %v365 = vunpack.c.l.b16 %v237
  %v366 = vunpack.c.h.b16 %v237
  %v367 = vunpack.c.l.b16 %v238
  %v368 = vunpack.c.h.b16 %v238
  %v369 = vunpack.c.l.b16 %v239
  %v370 = vunpack.c.h.b16 %v239
  %v371 = vunpack.c.l.b16 %v240
  %v372 = vunpack.c.h.b16 %v240
  %v373 = vunpack.c.l.b16 %v241
  %v374 = vunpack.c.h.b16 %v241
  %v375 = vunpack.c.l.b16 %v242
  %v376 = vunpack.c.h.b16 %v242
  %v377 = vunpack.c.l.b16 %v243
  %v378 = vunpack.c.h.b16 %v243
  %v379 = vunpack.c.l.b16 %v244
  %v380 = vunpack.c.h.b16 %v244
  %v381 = vunpack.c.l.b16 %v245
  %v382 = vunpack.c.h.b16 %v245
  %v383 = vunpack.c.l.b16 %v246
  %v384 = vunpack.c.h.b16 %v246
  %v385 = vunpack.c.l.b16 %v247
  %v386 = vunpack.c.h.b16 %v247
  %v387 = vunpack.c.l.b16 %v248
  %v388 = vunpack.c.h.b16 %v248
  %v389 = vunpack.c.l.b16 %v249
  %v390 = vunpack.c.h.b16 %v249
  %v391 = vunpack.c.l.b16 %v250
  %v392 = vunpack.c.h.b16 %v250
  %v393 = vunpack.c.l.b16 %v251
  %v394 = vunpack.c.h.b16 %v251
  %v395 = vunpack.c.l.b16 %v252
  %v396 = vunpack.c.h.b16 %v252
  %v397 = vunpack.c.l.b16 %v253
  %v398 = vunpack.c.h.b16 %v253
  %v399 = vunpack.c.l.b16 %v254
  %v400 = vunpack.c.h.b16 %v254
  %v401 = vunpack.c.l.b16 %v255
  %v402 = vunpack.c.h.b16 %v255
  %v403 = vunpack.c.l.b16 %v256
  %v404 = vunpack.c.h.b16 %v256
  %v405 = vunpack.c.l.b16 %v257
  %v406 = vunpack.c.h.b16 %v257
  %v407 = vunpack.c.l.b16 %v258
  %v408 = vunpack.c.h.b16 %v258
  %v409 = vunpack.c.l.b16 %v259
  %v410 = vunpack.c.h.b16 %v259
  %v411 = vunpack.c.l.b16 %v260
  %v412 = vunpack.c.h.b16 %v260
  %v413 = vunpack.c.l.b16 %v261
  %v414 = vunpack.c.h.b16 %v261
  %v415 = vunpack.c.l.b16 %v262
  %v416 = vunpack.c.h.b16 %v262
  %v417 = vunpack.c.l.b16 %v263
  %v418 = vunpack.c.h.b16 %v263
  %v419 = vunpack.c.l.b16 %v264
  %v420 = vunpack.c.h.b16 %v264
  %v421 = vunpack.c.l.b16 %v265
  %v422 = vunpack.c.h.b16 %v265
  %v423 = vunpack.c.l.b16 %v266
  %v424 = vunpack.c.h.b16 %v266
  %v425 = vunpack.c.l.b16 %v267
  %v426 = vunpack.c.h.b16 %v267
  %v427 = vunpack.c.l.b16 %v268
  %v428 = vunpack.c.h.b16 %v268
  %v429 = vunpack.c.l.b16 %v269
  %v430 = vunpack.c.h.b16 %v269
  %v431 = vunpack.c.l.b16 %v270
  %v432 = vunpack.c.h.b16 %v270
  %v433 = vunpack.c.l.b16 %v271
  %v434 = vunpack.c.h.b16 %v271
  %v435 = vunpack.c.l.b16 %v272
  %v436 = vunpack.c.h.b16 %v272
  %v437 = vunpack.c.l.b16 %v273
  %v438 = vunpack.c.h.b16 %v273
  %v439 = vunpack.c.l.b16 %v274
  %v440 = vunpack.c.h.b16 %v274
  %v441 = vunpack.c.l.b16 %v275
  %v442 = vunpack.c.h.b16 %v275
  %v443 = vunpack.c.l.b16 %v276
  %v444 = vunpack.c.h.b16 %v276
  %v445 = vunpack.c.l.b16 %v277
  %v446 = vunpack.c.h.b16 %v277
  %v447 = vunpack.c.l.b16 %v278
  %v448 = vunpack.c.h.b16 %v278
  %v449 = vunpack.c.l.b16 %v279
  %v450 = vunpack.c.h.b16 %v279
  %v451 = vunpack.c.l.b16 %v280
  %v452 = vunpack.c.h.b16 %v280
  %v453 = vunpack.c.l.b16 %v281
  %v454 = vunpack.c.h.b16 %v281
  %v455 = vunpack.c.l.b16 %v282
  %v456 = vunpack.c.h.b16 %v282
  %v457 = vunpack.c.l.b16 %v283
  %v458 = vunpack.c.h.b16 %v283
  %v459 = vunpack.c.l.b16 %v284
  %v460 = vunpack.c.h.b16 %v284
  %v461 = vunpack.c.l.b16 %v285
  %v462 = vunpack.c.h.b16 %v285
  %v463 = vunpack.c.l.b16 %v286
  %v464 = vunpack.c.h.b16 %v286
  %v465 = vunpack.c.l.b16 %v287
  %v466 = vunpack.c.h.b16 %v287
  %v467 = vunpack.c.l.b16 %v288
  %v468 = vunpack.c.h.b16 %v288
  %v469 = vunpack.c.l.b16 %v289
  %v470 = vunpack.c.h.b16 %v289
  %v471 = vunpack.c.l.b16 %v290
  %v472 = vunpack.c.h.b16 %v290
  %v473 = vunpack.c.l.b16 %v291
  %v474 = vunpack.c.h.b16 %v291
  %v475 = vunpack.c.l.b16 %v292
  %v476 = vunpack.c.h.b16 %v292
  %v477 = vunpack.c.l.b16 %v293
  %v478 = vunpack.c.h.b16 %v293
  %v479 = vunpack.c.l.b16 %v294
  %v480 = vunpack.c.h.b16 %v294
  %v481 = vunpack.c.l.b16 %v295
  %v482 = vunpack.c.h.b16 %v295
  %v483 = vunpack.c.l.b16 %v296
  %v484 = vunpack.c.h.b16 %v296
  %v485 = vunpack.c.l.b16 %v297
  %v486 = vunpack.c.h.b16 %v297
  %v487 = vunpack.c.l.b16 %v298
  %v488 = vunpack.c.h.b16 %v298
  %v489 = vunpack.c.l.b16 %v299
  %v490 = vunpack.c.h.b16 %v299
  %v491 = vunpack.c.l.b16 %v300
  %v492 = vunpack.c.h.b16 %v300
  %v493 = vpack.c.b16 %v373, %v365
  %v494 = vpack.c.b16 %v374, %v366
  %v495 = vpack.c.b16 %v375, %v367
  %v496 = vpack.c.b16 %v376, %v368
  %v497 = vpack.c.b16 %v377, %v369
  %v498 = vpack.c.b16 %v378, %v370
  %v499 = vpack.c.b16 %v379, %v371
  %v500 = vpack.c.b16 %v380, %v372
  %v501 = vpack.c.b16 %v389, %v381
  %v502 = vpack.c.b16 %v390, %v382
  %v503 = vpack.c.b16 %v391, %v383
  %v504 = vpack.c.b16 %v392, %v384
  %v505 = vpack.c.b16 %v393, %v385
  %v506 = vpack.c.b16 %v394, %v386
  %v507 = vpack.c.b16 %v395, %v387
  %v508 = vpack.c.b16 %v396, %v388
  %v509 = vpack.c.b16 %v405, %v397
  %v510 = vpack.c.b16 %v406, %v398
  %v511 = vpack.c.b16 %v407, %v399
  %v512 = vpack.c.b16 %v408, %v400
  %v513 = vpack.c.b16 %v409, %v401
  %v514 = vpack.c.b16 %v410, %v402
  %v515 = vpack.c.b16 %v411, %v403
  %v516 = vpack.c.b16 %v412, %v404
  %v517 = vpack.c.b16 %v421, %v413
  %v518 = vpack.c.b16 %v422, %v414
  %v519 = vpack.c.b16 %v423, %v415
  %v520 = vpack.c.b16 %v424, %v416
  %v521 = vpack.c.b16 %v425, %v417
  %v522 = vpack.c.b16 %v426, %v418
  %v523 = vpack.c.b16 %v427, %v419
  %v524 = vpack.c.b16 %v428, %v420
  %v525 = vpack.c.b16 %v437, %v429
  %v526 = vpack.c.b16 %v438, %v430
  %v527 = vpack.c.b16 %v439, %v431
  %v528 = vpack.c.b16 %v440, %v432
  %v529 = vpack.c.b16 %v441, %v433
  %v530 = vpack.c.b16 %v442, %v434
  %v531 = vpack.c.b16 %v443, %v435
  %v532 = vpack.c.b16 %v444, %v436
  %v533 = vpack.c.b16 %v453, %v445
  %v534 = vpack.c.b16 %v454, %v446
  %v535 = vpack.c.b16 %v455, %v447
  %v536 = vpack.c.b16 %v456, %v448
  %v537 = vpack.c.b16 %v457, %v449
  %v538 = vpack.c.b16 %v458, %v450
  %v539 = vpack.c.b16 %v459, %v451
  %v540 = vpack.c.b16 %v460, %v452
  %v541 = vpack.c.b16 %v469, %v461
  %v542 = vpack.c.b16 %v470, %v462
  %v543 = vpack.c.b16 %v471, %v463
  %v544 = vpack.c.b16 %v472, %v464
  %v545 = vpack.c.b16 %v473, %v465
  %v546 = vpack.c.b16 %v474, %v466
  %v547 = vpack.c.b16 %v475, %v467
  %v548 = vpack.c.b16 %v476, %v468
  %v549 = vpack.c.b16 %v485, %v477
  %v550 = vpack.c.b16 %v486, %v478
  %v551 = vpack.c.b16 %v487, %v479
  %v552 = vpack.c.b16 %v488, %v480
  %v553 = vpack.c.b16 %v489, %v481
  %v554 = vpack.c.b16 %v490, %v482
  %v555 = vpack.c.b16 %v491, %v483
  %v556 = vpack.c.b16 %v492, %v484
  %621 = vmatprep.subr.bf16.mxu0 %v494
  %622 = vmatpush1.bf16.msra.mxu0 %v493
  %623 = vmatprep.subr.bf16.mxu0 %v502
  %624 = vmatpush1.bf16.msra.mxu0 %v501
  %625 = vmatprep.subr.bf16.mxu0 %v510
  %626 = vmatpush1.bf16.msra.mxu0 %v509
  %627 = vmatprep.subr.bf16.mxu0 %v518
  %628 = vmatpush1.bf16.msra.mxu0 %v517
  %629 = vmatprep.subr.bf16.mxu0 %v526
  %630 = vmatpush1.bf16.msra.mxu0 %v525
  %631 = vmatprep.subr.bf16.mxu0 %v534
  %632 = vmatpush1.bf16.msra.mxu0 %v533
  %633 = vmatprep.subr.bf16.mxu0 %v542
  %634 = vmatpush1.bf16.msra.mxu0 %v541
  %635 = vmatprep.subr.bf16.mxu0 %v550
  %636 = vmatpush1.bf16.msra.mxu0 %v549
  %637 = vmatprep.subr.bf16.mxu0 0
  %638 = vmatpush1.bf16.msra.mxu0 0
  %639 = vmatprep.subr.bf16.mxu0 0
  %640 = vmatpush1.bf16.msra.mxu0 0
  %641 = vmatprep.subr.bf16.mxu0 0
  %642 = vmatpush1.bf16.msra.mxu0 0
  %643 = vmatprep.subr.bf16.mxu0 0
  %644 = vmatpush1.bf16.msra.mxu0 0
  %645 = vmatprep.subr.bf16.mxu0 0
  %646 = vmatpush1.bf16.msra.mxu0 0
  %647 = vmatprep.subr.bf16.mxu0 0
  %648 = vmatpush1.bf16.msra.mxu0 0
  %649 = vmatprep.subr.bf16.mxu0 0
  %650 = vmatpush1.bf16.msra.mxu0 0
  %651 = vmatprep.subr.bf16.mxu0 0
  %652 = vmatpush1.bf16.msra.mxu0 0
  %653 = vmatprep.mubr.bf16.mxu0 0
  %654 = vmatmul.mubr.bf16.gmra.mrb[0].mxu0 %v235
  %v655 = vpop.f32.mrb[0].mxu0
  %v656 = vadd.f32 0.0, %v655
  %v657 = vpop.f32.mrb[0].mxu0
  %v658 = vadd.f32 0.0, %v657
  %v659 = vpop.f32.mrb[0].mxu0
  %v660 = vadd.f32 0.0, %v659
  %v661 = vpop.f32.mrb[0].mxu0
  %v662 = vadd.f32 0.0, %v661
  %663 = vmatprep.mubr.bf16.mxu0 0
  %664 = vmatmul.mubr.bf16.gmra.mrb[0].mxu0 %v236
  %v665 = vpop.f32.mrb[0].mxu0
  %v666 = vadd.f32 0.0, %v665
  %v667 = vpop.f32.mrb[0].mxu0
  %v668 = vadd.f32 0.0, %v667
  %v669 = vpop.f32.mrb[0].mxu0
  %v670 = vadd.f32 0.0, %v669
  %v671 = vpop.f32.mrb[0].mxu0
  %v672 = vadd.f32 0.0, %v671
  %673 = vdwg.mxu0
  %674 = vmatprep.subr.bf16.mxu0 %v496
  %675 = vmatpush1.bf16.msra.mxu0 %v495
  %676 = vmatprep.subr.bf16.mxu0 %v504
  %677 = vmatpush1.bf16.msra.mxu0 %v503
  %678 = vmatprep.subr.bf16.mxu0 %v512
  %679 = vmatpush1.bf16.msra.mxu0 %v511
  %680 = vmatprep.subr.bf16.mxu0 %v520
  %681 = vmatpush1.bf16.msra.mxu0 %v519
  %682 = vmatprep.subr.bf16.mxu0 %v528
  %683 = vmatpush1.bf16.msra.mxu0 %v527
  %684 = vmatprep.subr.bf16.mxu0 %v536
  %685 = vmatpush1.bf16.msra.mxu0 %v535
  %686 = vmatprep.subr.bf16.mxu0 %v544
  %687 = vmatpush1.bf16.msra.mxu0 %v543
  %688 = vmatprep.subr.bf16.mxu0 %v552
  %689 = vmatpush1.bf16.msra.mxu0 %v551
  %690 = vmatprep.subr.bf16.mxu0 0
  %691 = vmatpush1.bf16.msra.mxu0 0
  %692 = vmatprep.subr.bf16.mxu0 0
  %693 = vmatpush1.bf16.msra.mxu0 0
  %694 = vmatprep.subr.bf16.mxu0 0
  %695 = vmatpush1.bf16.msra.mxu0 0
  %696 = vmatprep.subr.bf16.mxu0 0
  %697 = vmatpush1.bf16.msra.mxu0 0
  %698 = vmatprep.subr.bf16.mxu0 0
  %699 = vmatpush1.bf16.msra.mxu0 0
  %700 = vmatprep.subr.bf16.mxu0 0
  %701 = vmatpush1.bf16.msra.mxu0 0
  %702 = vmatprep.subr.bf16.mxu0 0
  %703 = vmatpush1.bf16.msra.mxu0 0
  %704 = vmatprep.subr.bf16.mxu0 0
  %705 = vmatpush1.bf16.msra.mxu0 0
  %706 = vmatprep.mubr.bf16.mxu0 0
  %707 = vmatmul.mubr.bf16.gmra.mrb[0].mxu0 %v235
  %v708 = vpop.f32.mrb[0].mxu0
  %v709 = vadd.f32 0.0, %v708
  %v710 = vpop.f32.mrb[0].mxu0
  %v711 = vadd.f32 0.0, %v710
  %v712 = vpop.f32.mrb[0].mxu0
  %v713 = vadd.f32 0.0, %v712
  %v714 = vpop.f32.mrb[0].mxu0
  %v715 = vadd.f32 0.0, %v714
  %716 = vmatprep.mubr.bf16.mxu0 0
  %717 = vmatmul.mubr.bf16.gmra.mrb[0].mxu0 %v236
  %v718 = vpop.f32.mrb[0].mxu0
  %v719 = vadd.f32 0.0, %v718
  %v720 = vpop.f32.mrb[0].mxu0
  %v721 = vadd.f32 0.0, %v720
  %v722 = vpop.f32.mrb[0].mxu0
  %v723 = vadd.f32 0.0, %v722
  %v724 = vpop.f32.mrb[0].mxu0
  %v725 = vadd.f32 0.0, %v724
  %726 = vdwg.mxu0
  %727 = vmatprep.subr.bf16.mxu0 %v498
  %728 = vmatpush1.bf16.msra.mxu0 %v497
  %729 = vmatprep.subr.bf16.mxu0 %v506
  %730 = vmatpush1.bf16.msra.mxu0 %v505
  %731 = vmatprep.subr.bf16.mxu0 %v514
  %732 = vmatpush1.bf16.msra.mxu0 %v513
  %733 = vmatprep.subr.bf16.mxu0 %v522
  %734 = vmatpush1.bf16.msra.mxu0 %v521
  %735 = vmatprep.subr.bf16.mxu0 %v530
  %736 = vmatpush1.bf16.msra.mxu0 %v529
  %737 = vmatprep.subr.bf16.mxu0 %v538
  %738 = vmatpush1.bf16.msra.mxu0 %v537
  %739 = vmatprep.subr.bf16.mxu0 %v546
  %740 = vmatpush1.bf16.msra.mxu0 %v545
  %741 = vmatprep.subr.bf16.mxu0 %v554
  %742 = vmatpush1.bf16.msra.mxu0 %v553
  %743 = vmatprep.subr.bf16.mxu0 0
  %744 = vmatpush1.bf16.msra.mxu0 0
  %745 = vmatprep.subr.bf16.mxu0 0
  %746 = vmatpush1.bf16.msra.mxu0 0
  %747 = vmatprep.subr.bf16.mxu0 0
  %748 = vmatpush1.bf16.msra.mxu0 0
  %749 = vmatprep.subr.bf16.mxu0 0
  %750 = vmatpush1.bf16.msra.mxu0 0
  %751 = vmatprep.subr.bf16.mxu0 0
  %752 = vmatpush1.bf16.msra.mxu0 0
  %753 = vmatprep.subr.bf16.mxu0 0
  %754 = vmatpush1.bf16.msra.mxu0 0
  %755 = vmatprep.subr.bf16.mxu0 0
  %756 = vmatpush1.bf16.msra.mxu0 0
  %757 = vmatprep.subr.bf16.mxu0 0
  %758 = vmatpush1.bf16.msra.mxu0 0
  %759 = vmatprep.mubr.bf16.mxu0 0
  %760 = vmatmul.mubr.bf16.gmra.mrb[0].mxu0 %v235
  %v761 = vpop.f32.mrb[0].mxu0
  %v762 = vadd.f32 0.0, %v761
  %v763 = vpop.f32.mrb[0].mxu0
  %v764 = vadd.f32 0.0, %v763
  %v765 = vpop.f32.mrb[0].mxu0
  %v766 = vadd.f32 0.0, %v765
  %v767 = vpop.f32.mrb[0].mxu0
  %v768 = vadd.f32 0.0, %v767
  %769 = vmatprep.mubr.bf16.mxu0 0
  %770 = vmatmul.mubr.bf16.gmra.mrb[0].mxu0 %v236
  %v771 = vpop.f32.mrb[0].mxu0
  %v772 = vadd.f32 0.0, %v771
  %v773 = vpop.f32.mrb[0].mxu0
  %v774 = vadd.f32 0.0, %v773
  %v775 = vpop.f32.mrb[0].mxu0
  %v776 = vadd.f32 0.0, %v775
  %v777 = vpop.f32.mrb[0].mxu0
  %v778 = vadd.f32 0.0, %v777
  %779 = vdwg.mxu0
  %780 = vmatprep.subr.bf16.mxu0 %v500
  %781 = vmatpush1.bf16.msra.mxu0 %v499
  %782 = vmatprep.subr.bf16.mxu0 %v508
  %783 = vmatpush1.bf16.msra.mxu0 %v507
  %784 = vmatprep.subr.bf16.mxu0 %v516
  %785 = vmatpush1.bf16.msra.mxu0 %v515
  %786 = vmatprep.subr.bf16.mxu0 %v524
  %787 = vmatpush1.bf16.msra.mxu0 %v523
  %788 = vmatprep.subr.bf16.mxu0 %v532
  %789 = vmatpush1.bf16.msra.mxu0 %v531
  %790 = vmatprep.subr.bf16.mxu0 %v540
  %791 = vmatpush1.bf16.msra.mxu0 %v539
  %792 = vmatprep.subr.bf16.mxu0 %v548
  %793 = vmatpush1.bf16.msra.mxu0 %v547
  %794 = vmatprep.subr.bf16.mxu0 %v556
  %795 = vmatpush1.bf16.msra.mxu0 %v555
  %796 = vmatprep.subr.bf16.mxu0 0
  %797 = vmatpush1.bf16.msra.mxu0 0
  %798 = vmatprep.subr.bf16.mxu0 0
  %799 = vmatpush1.bf16.msra.mxu0 0
  %800 = vmatprep.subr.bf16.mxu0 0
  %801 = vmatpush1.bf16.msra.mxu0 0
  %802 = vmatprep.subr.bf16.mxu0 0
  %803 = vmatpush1.bf16.msra.mxu0 0
  %804 = vmatprep.subr.bf16.mxu0 0
  %805 = vmatpush1.bf16.msra.mxu0 0
  %806 = vmatprep.subr.bf16.mxu0 0
  %807 = vmatpush1.bf16.msra.mxu0 0
  %808 = vmatprep.subr.bf16.mxu0 0
  %809 = vmatpush1.bf16.msra.mxu0 0
  %810 = vmatprep.subr.bf16.mxu0 0
  %811 = vmatpush1.bf16.msra.mxu0 0
  %812 = vmatprep.mubr.bf16.mxu0 0
  %813 = vmatmul.mubr.bf16.gmra.mrb[0].mxu0 %v235
  %v814 = vpop.f32.mrb[0].mxu0
  %v815 = vadd.f32 0.0, %v814
  %v816 = vpop.f32.mrb[0].mxu0
  %v817 = vadd.f32 0.0, %v816
  %v818 = vpop.f32.mrb[0].mxu0
  %v819 = vadd.f32 0.0, %v818
  %v820 = vpop.f32.mrb[0].mxu0
  %v821 = vadd.f32 0.0, %v820
  %822 = vmatprep.mubr.bf16.mxu0 0
  %823 = vmatmul.mubr.bf16.gmra.mrb[0].mxu0 %v236
  %v824 = vpop.f32.mrb[0].mxu0
  %v825 = vadd.f32 0.0, %v824
  %v826 = vpop.f32.mrb[0].mxu0
  %v827 = vadd.f32 0.0, %v826
  %v828 = vpop.f32.mrb[0].mxu0
  %v829 = vadd.f32 0.0, %v828
  %v830 = vpop.f32.mrb[0].mxu0
  %v831 = vadd.f32 0.0, %v830
  %832 = vdwg.mxu0
  %p833 = scmp.eq.s32.totalorder 0, 0
  // Predicated region
  $region58: #{_stnkd_impl.1} parent=0 // pred_check
    %p834 = pneg %p833
  $region59: #{_stnkd_impl.1} parent=0 // pred_check_branch
    %836 = sbr.rel (%p834) target = $region61
  $region60: #{_stnkd_impl.1} parent=0 // pred_region
    %837 = vst [vmem:[#allocation2] sm:$0xff] -inf
    %838 = vst [vmem:[#allocation2 + $0x8] sm:$0xff] -inf
  $region61: #{_stnkd_impl.1} parent=0 // pred_fallthru
    _
  %v839 = vld [vmem:[#allocation2] sm:$0xff]
  %v840 = vld [vmem:[#allocation2 + $0x8] sm:$0xff]
  %v841 = vmax.f32 %v656, %v660
  %v842 = vrot.slane %v841, 4
  %v843 = vmax.f32 %v841, %v842
  %v844 = vrot.slane %v843, 2
  %v845 = vmax.f32 %v843, %v844
  %v846 = vrot.slane %v845, 1
  %v847 = vmax.f32 %v845, %v846
  %v848 = vmax.f32 %v658, %v662
  %v849 = vrot.slane %v848, 4
  %v850 = vmax.f32 %v848, %v849
  %v851 = vrot.slane %v850, 2
  %v852 = vmax.f32 %v850, %v851
  %v853 = vrot.slane %v852, 1
  %v854 = vmax.f32 %v852, %v853
  %v855 = vmax.f32 %v709, %v713
  %v856 = vrot.slane %v855, 4
  %v857 = vmax.f32 %v855, %v856
  %v858 = vrot.slane %v857, 2
  %v859 = vmax.f32 %v857, %v858
  %v860 = vrot.slane %v859, 1
  %v861 = vmax.f32 %v859, %v860
  %v862 = vmax.f32 %v711, %v715
  %v863 = vrot.slane %v862, 4
  %v864 = vmax.f32 %v862, %v863
  %v865 = vrot.slane %v864, 2
  %v866 = vmax.f32 %v864, %v865
  %v867 = vrot.slane %v866, 1
  %v868 = vmax.f32 %v866, %v867
  %v869 = vmax.f32 %v762, %v766
  %v870 = vrot.slane %v869, 4
  %v871 = vmax.f32 %v869, %v870
  %v872 = vrot.slane %v871, 2
  %v873 = vmax.f32 %v871, %v872
  %v874 = vrot.slane %v873, 1
  %v875 = vmax.f32 %v873, %v874
  %v876 = vmax.f32 %v764, %v768
  %v877 = vrot.slane %v876, 4
  %v878 = vmax.f32 %v876, %v877
  %v879 = vrot.slane %v878, 2
  %v880 = vmax.f32 %v878, %v879
  %v881 = vrot.slane %v880, 1
  %v882 = vmax.f32 %v880, %v881
  %v883 = vmax.f32 %v815, %v819
  %v884 = vrot.slane %v883, 4
  %v885 = vmax.f32 %v883, %v884
  %v886 = vrot.slane %v885, 2
  %v887 = vmax.f32 %v885, %v886
  %v888 = vrot.slane %v887, 1
  %v889 = vmax.f32 %v887, %v888
  %v890 = vmax.f32 %v817, %v821
  %v891 = vrot.slane %v890, 4
  %v892 = vmax.f32 %v890, %v891
  %v893 = vrot.slane %v892, 2
  %v894 = vmax.f32 %v892, %v893
  %v895 = vrot.slane %v894, 1
  %v896 = vmax.f32 %v894, %v895
  %v897 = vmax.f32 %v666, %v670
  %v898 = vrot.slane %v897, 4
  %v899 = vmax.f32 %v897, %v898
  %v900 = vrot.slane %v899, 2
  %v901 = vmax.f32 %v899, %v900
  %v902 = vrot.slane %v901, 1
  %v903 = vmax.f32 %v901, %v902
  %v904 = vmax.f32 %v668, %v672
  %v905 = vrot.slane %v904, 4
  %v906 = vmax.f32 %v904, %v905
  %v907 = vrot.slane %v906, 2
  %v908 = vmax.f32 %v906, %v907
  %v909 = vrot.slane %v908, 1
  %v910 = vmax.f32 %v908, %v909
  %v911 = vmax.f32 %v719, %v723
  %v912 = vrot.slane %v911, 4
  %v913 = vmax.f32 %v911, %v912
  %v914 = vrot.slane %v913, 2
  %v915 = vmax.f32 %v913, %v914
  %v916 = vrot.slane %v915, 1
  %v917 = vmax.f32 %v915, %v916
  %v918 = vmax.f32 %v721, %v725
  %v919 = vrot.slane %v918, 4
  %v920 = vmax.f32 %v918, %v919
  %v921 = vrot.slane %v920, 2
  %v922 = vmax.f32 %v920, %v921
  %v923 = vrot.slane %v922, 1
  %v924 = vmax.f32 %v922, %v923
  %v925 = vmax.f32 %v772, %v776
  %v926 = vrot.slane %v925, 4
  %v927 = vmax.f32 %v925, %v926
  %v928 = vrot.slane %v927, 2
  %v929 = vmax.f32 %v927, %v928
  %v930 = vrot.slane %v929, 1
  %v931 = vmax.f32 %v929, %v930
  %v932 = vmax.f32 %v774, %v778
  %v933 = vrot.slane %v932, 4
  %v934 = vmax.f32 %v932, %v933
  %v935 = vrot.slane %v934, 2
  %v936 = vmax.f32 %v934, %v935
  %v937 = vrot.slane %v936, 1
  %v938 = vmax.f32 %v936, %v937
  %v939 = vmax.f32 %v825, %v829
  %v940 = vrot.slane %v939, 4
  %v941 = vmax.f32 %v939, %v940
  %v942 = vrot.slane %v941, 2
  %v943 = vmax.f32 %v941, %v942
  %v944 = vrot.slane %v943, 1
  %v945 = vmax.f32 %v943, %v944
  %v946 = vmax.f32 %v827, %v831
  %v947 = vrot.slane %v946, 4
  %v948 = vmax.f32 %v946, %v947
  %v949 = vrot.slane %v948, 2
  %v950 = vmax.f32 %v948, %v949
  %v951 = vrot.slane %v950, 1
  %v952 = vmax.f32 %v950, %v951
  %v969 = vcombine.low %v847, %v854
  %v970 = vcombine.low %v861, %v868
  %v972 = vunpack.c.l.s4 1983009808
  %v973 = vunpack.c.0.s8 %v972
  %v974 = vlaneseq
  %v975 = vshrl.u32 %v974, 7
  %v976 = vsub.s32 %v973, %v975
  %v977 = vrot.slane %v969, %v976
  %v979 = vunpack.c.l.s4 1983009808
  %v980 = vunpack.c.0.s8 %v979
  %v981 = vlaneseq
  %v982 = vshrl.u32 %v981, 7
  %v983 = vsub.s32 %v980, %v982
  %v984 = vrot.slane %v970, %v983
  %v985 = vcombine.low %v977, %v984
  %v986 = vcombine.low %v875, %v882
  %v987 = vcombine.low %v889, %v896
  %v989 = vunpack.c.l.s4 1983009808
  %v990 = vunpack.c.0.s8 %v989
  %v991 = vlaneseq
  %v992 = vshrl.u32 %v991, 7
  %v993 = vsub.s32 %v990, %v992
  %v994 = vrot.slane %v986, %v993
  %v996 = vunpack.c.l.s4 1983009808
  %v997 = vunpack.c.0.s8 %v996
  %v998 = vlaneseq
  %v999 = vshrl.u32 %v998, 7
  %v1000 = vsub.s32 %v997, %v999
  %v1001 = vrot.slane %v987, %v1000
  %v1002 = vcombine.low %v994, %v1001
  %v1003 = vcombine.low %v903, %v910
  %v1004 = vcombine.low %v917, %v924
  %v1006 = vunpack.c.l.s4 1983009808
  %v1007 = vunpack.c.0.s8 %v1006
  %v1008 = vlaneseq
  %v1009 = vshrl.u32 %v1008, 7
  %v1010 = vsub.s32 %v1007, %v1009
  %v1011 = vrot.slane %v1003, %v1010
  %v1013 = vunpack.c.l.s4 1983009808
  %v1014 = vunpack.c.0.s8 %v1013
  %v1015 = vlaneseq
  %v1016 = vshrl.u32 %v1015, 7
  %v1017 = vsub.s32 %v1014, %v1016
  %v1018 = vrot.slane %v1004, %v1017
  %v1019 = vcombine.low %v1011, %v1018
  %v1020 = vcombine.low %v931, %v938
  %v1021 = vcombine.low %v945, %v952
  %v1023 = vunpack.c.l.s4 1983009808
  %v1024 = vunpack.c.0.s8 %v1023
  %v1025 = vlaneseq
  %v1026 = vshrl.u32 %v1025, 7
  %v1027 = vsub.s32 %v1024, %v1026
  %v1028 = vrot.slane %v1020, %v1027
  %v1030 = vunpack.c.l.s4 1983009808
  %v1031 = vunpack.c.0.s8 %v1030
  %v1032 = vlaneseq
  %v1033 = vshrl.u32 %v1032, 7
  %v1034 = vsub.s32 %v1031, %v1033
  %v1035 = vrot.slane %v1021, %v1034
  %v1036 = vcombine.low %v1028, %v1035
  %vm1037 = vcmask 1044484
  %v1038 = vsel %vm1037, %v985, %v985
  %vm1039 = vcmask 1046534
  %v1040 = vsel %vm1039, %v985, %v1038
  %v1041 = vrot.slane %v1019, 7
  %vm1042 = vcmask 1041409
  %v1043 = vsel %vm1042, %v1041, %v1040
  %vm1044 = vcmask 1043459
  %v1045 = vsel %vm1044, %v1041, %v1043
  %vm1046 = vcmask 1045509
  %v1047 = vsel %vm1046, %v1041, %v1045
  %vm1048 = vcmask 1047559
  %v1049 = vsel %vm1048, %v1041, %v1047
  %v1050 = vsel %vm1037, %v1002, %v1002
  %v1051 = vsel %vm1039, %v1002, %v1050
  %v1052 = vrot.slane %v1036, 7
  %v1053 = vsel %vm1042, %v1052, %v1051
  %v1054 = vsel %vm1044, %v1052, %v1053
  %v1055 = vsel %vm1046, %v1052, %v1054
  %v1056 = vsel %vm1048, %v1052, %v1055
  %v1059 = vmax.f32 %v839, %v1049
  %v1060 = vmax.f32 %v840, %v1056
  %1061 = vst [vmem:[#allocation2] sm:$0xff] %v1059
  %1062 = vst [vmem:[#allocation2 + $0x8] sm:$0xff] %v1060
  // Predicated region
  $region62: #{_stnkd_impl.1} parent=0 // pred_check
    %p1063 = pneg %p833
  $region63: #{_stnkd_impl.1} parent=0 // pred_check_branch
    %1065 = sbr.rel (%p1063) target = $region65
  $region64: #{_stnkd_impl.1} parent=0 // pred_region
    %v1066 = vld [vmem:[#allocation2] sm:$0xff]
    %v1067 = vld [vmem:[#allocation2 + $0x8] sm:$0xff]
    %v1068 = vld [vmem:[%s6] sm:$0xff]
    %v1070 = vlaneseq
    %v1071 = vshrl.u32 %v1070, 7
    %v1072 = vsub.s32 0, %v1071
    %v1073 = vrot.slane %v1068, %v1072
    %v1074 = vlaneseq
    %v1075 = vshrl.u32 %v1074, 7
    %v1076 = vsub.s32 1, %v1075
    %v1077 = vrot.slane %v1068, %v1076
    %v1078 = vlaneseq
    %v1079 = vshrl.u32 %v1078, 7
    %v1080 = vsub.s32 2, %v1079
    %v1081 = vrot.slane %v1068, %v1080
    %v1082 = vlaneseq
    %v1083 = vshrl.u32 %v1082, 7
    %v1084 = vsub.s32 3, %v1083
    %v1085 = vrot.slane %v1068, %v1084
    %v1086 = vlaneseq
    %v1087 = vshrl.u32 %v1086, 7
    %v1088 = vsub.s32 4, %v1087
    %v1089 = vrot.slane %v1068, %v1088
    %v1090 = vlaneseq
    %v1091 = vshrl.u32 %v1090, 7
    %v1092 = vsub.s32 5, %v1091
    %v1093 = vrot.slane %v1068, %v1092
    %v1094 = vlaneseq
    %v1095 = vshrl.u32 %v1094, 7
    %v1096 = vsub.s32 6, %v1095
    %v1097 = vrot.slane %v1068, %v1096
    %v1098 = vlaneseq
    %v1099 = vshrl.u32 %v1098, 7
    %v1100 = vsub.s32 7, %v1099
    %v1101 = vrot.slane %v1068, %v1100
    %v1102 = vcombine.low %v1073, %v1077
    %v1103 = vcombine.low %v1081, %v1085
    %v1105 = vunpack.c.l.s4 1983009808
    %v1106 = vunpack.c.0.s8 %v1105
    %v1107 = vlaneseq
    %v1108 = vshrl.u32 %v1107, 7
    %v1109 = vsub.s32 %v1106, %v1108
    %v1110 = vrot.slane %v1102, %v1109
    %v1112 = vunpack.c.l.s4 1983009808
    %v1113 = vunpack.c.0.s8 %v1112
    %v1114 = vlaneseq
    %v1115 = vshrl.u32 %v1114, 7
    %v1116 = vsub.s32 %v1113, %v1115
    %v1117 = vrot.slane %v1103, %v1116
    %v1118 = vcombine.low %v1110, %v1117
    %v1119 = vcombine.low %v1089, %v1093
    %v1120 = vcombine.low %v1097, %v1101
    %v1122 = vunpack.c.l.s4 1983009808
    %v1123 = vunpack.c.0.s8 %v1122
    %v1124 = vlaneseq
    %v1125 = vshrl.u32 %v1124, 7
    %v1126 = vsub.s32 %v1123, %v1125
    %v1127 = vrot.slane %v1119, %v1126
    %v1129 = vunpack.c.l.s4 1983009808
    %v1130 = vunpack.c.0.s8 %v1129
    %v1131 = vlaneseq
    %v1132 = vshrl.u32 %v1131, 7
    %v1133 = vsub.s32 %v1130, %v1132
    %v1134 = vrot.slane %v1120, %v1133
    %v1135 = vcombine.low %v1127, %v1134
    %v1138 = vadd.f32 %v1066, %v1118
    %v1139 = vadd.f32 %v1067, %v1135
    %v1140 = vmax.f32 %v1138, 0.0
    %v1141 = vmax.f32 %v1139, 0.0
    %v1144 = vcombine.high %v1140, %v1140
    %v1146 = vunpack.c.l.s4 1983009808
    %v1147 = vunpack.c.0.s8 %v1146
    %v1148 = vlaneseq
    %v1149 = vshrl.u32 %v1148, 7
    %v1150 = vsub.s32 %v1147, %v1149
    %v1151 = vrot.slane %v1140, %v1150
    %v1153 = vunpack.c.l.s4 1983009808
    %v1154 = vunpack.c.0.s8 %v1153
    %v1155 = vlaneseq
    %v1156 = vshrl.u32 %v1155, 7
    %v1157 = vsub.s32 %v1154, %v1156
    %v1158 = vrot.slane %v1144, %v1157
    %v1159 = vcombine.high %v1151, %v1151
    %v1160 = vcombine.high %v1158, %v1158
    %v1161 = vcombine.high %v1141, %v1141
    %v1163 = vunpack.c.l.s4 1983009808
    %v1164 = vunpack.c.0.s8 %v1163
    %v1165 = vlaneseq
    %v1166 = vshrl.u32 %v1165, 7
    %v1167 = vsub.s32 %v1164, %v1166
    %v1168 = vrot.slane %v1141, %v1167
    %v1170 = vunpack.c.l.s4 1983009808
    %v1171 = vunpack.c.0.s8 %v1170
    %v1172 = vlaneseq
    %v1173 = vshrl.u32 %v1172, 7
    %v1174 = vsub.s32 %v1171, %v1173
    %v1175 = vrot.slane %v1161, %v1174
    %v1176 = vcombine.high %v1168, %v1168
    %v1177 = vcombine.high %v1175, %v1175
    %v1186 = vpack.c.bf16 %v1151, %v1151
    %v1187 = vpack.c.bf16 %v1159, %v1159
    %v1188 = vpack.c.bf16 %v1158, %v1158
    %v1189 = vpack.c.bf16 %v1160, %v1160
    %v1190 = vpack.c.bf16 %v1168, %v1168
    %v1191 = vpack.c.bf16 %v1176, %v1176
    %v1192 = vpack.c.bf16 %v1175, %v1175
    %v1193 = vpack.c.bf16 %v1177, %v1177
    %v1194 = vld [vmem:[%s7] sm:$0xff]
    %v1195 = vld [vmem:[%s7 + $0x8] sm:$0xff]
    %v1196 = vld [vmem:[%s7 + $0x10] sm:$0xff]
    %v1197 = vld [vmem:[%s7 + $0x18] sm:$0xff]
    %v1198 = vld [vmem:[%s7 + $0x20] sm:$0xff]
    %v1199 = vld [vmem:[%s7 + $0x28] sm:$0xff]
    %v1200 = vld [vmem:[%s7 + $0x30] sm:$0xff]
    %v1201 = vld [vmem:[%s7 + $0x38] sm:$0xff]
    %v1202 = vld [vmem:[%s7 + $0x40] sm:$0xff]
    %v1203 = vld [vmem:[%s7 + $0x48] sm:$0xff]
    %v1204 = vld [vmem:[%s7 + $0x50] sm:$0xff]
    %v1205 = vld [vmem:[%s7 + $0x58] sm:$0xff]
    %v1206 = vld [vmem:[%s7 + $0x60] sm:$0xff]
    %v1207 = vld [vmem:[%s7 + $0x68] sm:$0xff]
    %v1208 = vld [vmem:[%s7 + $0x70] sm:$0xff]
    %v1209 = vld [vmem:[%s7 + $0x78] sm:$0xff]
    %v1210 = vld [vmem:[%s7 + $0x80] sm:$0xff]
    %v1211 = vld [vmem:[%s7 + $0x88] sm:$0xff]
    %v1212 = vld [vmem:[%s7 + $0x90] sm:$0xff]
    %v1213 = vld [vmem:[%s7 + $0x98] sm:$0xff]
    %v1214 = vld [vmem:[%s7 + $0xa0] sm:$0xff]
    %v1215 = vld [vmem:[%s7 + $0xa8] sm:$0xff]
    %v1216 = vld [vmem:[%s7 + $0xb0] sm:$0xff]
    %v1217 = vld [vmem:[%s7 + $0xb8] sm:$0xff]
    %v1218 = vld [vmem:[%s7 + $0xc0] sm:$0xff]
    %v1219 = vld [vmem:[%s7 + $0xc8] sm:$0xff]
    %v1220 = vld [vmem:[%s7 + $0xd0] sm:$0xff]
    %v1221 = vld [vmem:[%s7 + $0xd8] sm:$0xff]
    %v1222 = vld [vmem:[%s7 + $0xe0] sm:$0xff]
    %v1223 = vld [vmem:[%s7 + $0xe8] sm:$0xff]
    %v1224 = vld [vmem:[%s7 + $0xf0] sm:$0xff]
    %v1225 = vld [vmem:[%s7 + $0xf8] sm:$0xff]
    %v1226 = vld [vmem:[%s7 + $0x100] sm:$0xff]
    %v1227 = vld [vmem:[%s7 + $0x108] sm:$0xff]
    %v1228 = vld [vmem:[%s7 + $0x110] sm:$0xff]
    %v1229 = vld [vmem:[%s7 + $0x118] sm:$0xff]
    %v1230 = vld [vmem:[%s7 + $0x120] sm:$0xff]
    %v1231 = vld [vmem:[%s7 + $0x128] sm:$0xff]
    %v1232 = vld [vmem:[%s7 + $0x130] sm:$0xff]
    %v1233 = vld [vmem:[%s7 + $0x138] sm:$0xff]
    %v1234 = vld [vmem:[%s7 + $0x140] sm:$0xff]
    %v1235 = vld [vmem:[%s7 + $0x148] sm:$0xff]
    %v1236 = vld [vmem:[%s7 + $0x150] sm:$0xff]
    %v1237 = vld [vmem:[%s7 + $0x158] sm:$0xff]
    %v1238 = vld [vmem:[%s7 + $0x160] sm:$0xff]
    %v1239 = vld [vmem:[%s7 + $0x168] sm:$0xff]
    %v1240 = vld [vmem:[%s7 + $0x170] sm:$0xff]
    %v1241 = vld [vmem:[%s7 + $0x178] sm:$0xff]
    %v1242 = vld [vmem:[%s7 + $0x180] sm:$0xff]
    %v1243 = vld [vmem:[%s7 + $0x188] sm:$0xff]
    %v1244 = vld [vmem:[%s7 + $0x190] sm:$0xff]
    %v1245 = vld [vmem:[%s7 + $0x198] sm:$0xff]
    %v1246 = vld [vmem:[%s7 + $0x1a0] sm:$0xff]
    %v1247 = vld [vmem:[%s7 + $0x1a8] sm:$0xff]
    %v1248 = vld [vmem:[%s7 + $0x1b0] sm:$0xff]
    %v1249 = vld [vmem:[%s7 + $0x1b8] sm:$0xff]
    %v1250 = vld [vmem:[%s7 + $0x1c0] sm:$0xff]
    %v1251 = vld [vmem:[%s7 + $0x1c8] sm:$0xff]
    %v1252 = vld [vmem:[%s7 + $0x1d0] sm:$0xff]
    %v1253 = vld [vmem:[%s7 + $0x1d8] sm:$0xff]
    %v1254 = vld [vmem:[%s7 + $0x1e0] sm:$0xff]
    %v1255 = vld [vmem:[%s7 + $0x1e8] sm:$0xff]
    %v1256 = vld [vmem:[%s7 + $0x1f0] sm:$0xff]
    %v1257 = vld [vmem:[%s7 + $0x1f8] sm:$0xff]
    %v1258 = vld [vmem:[%s7 + $0x200] sm:$0xff]
    %v1259 = vld [vmem:[%s7 + $0x208] sm:$0xff]
    %v1260 = vld [vmem:[%s7 + $0x210] sm:$0xff]
    %v1261 = vld [vmem:[%s7 + $0x218] sm:$0xff]
    %v1262 = vld [vmem:[%s7 + $0x220] sm:$0xff]
    %v1263 = vld [vmem:[%s7 + $0x228] sm:$0xff]
    %v1264 = vld [vmem:[%s7 + $0x230] sm:$0xff]
    %v1265 = vld [vmem:[%s7 + $0x238] sm:$0xff]
    %v1266 = vld [vmem:[%s7 + $0x240] sm:$0xff]
    %v1267 = vld [vmem:[%s7 + $0x248] sm:$0xff]
    %v1268 = vld [vmem:[%s7 + $0x250] sm:$0xff]
    %v1269 = vld [vmem:[%s7 + $0x258] sm:$0xff]
    %v1270 = vld [vmem:[%s7 + $0x260] sm:$0xff]
    %v1271 = vld [vmem:[%s7 + $0x268] sm:$0xff]
    %v1272 = vld [vmem:[%s7 + $0x270] sm:$0xff]
    %v1273 = vld [vmem:[%s7 + $0x278] sm:$0xff]
    %v1274 = vld [vmem:[%s7 + $0x280] sm:$0xff]
    %v1275 = vld [vmem:[%s7 + $0x288] sm:$0xff]
    %v1276 = vld [vmem:[%s7 + $0x290] sm:$0xff]
    %v1277 = vld [vmem:[%s7 + $0x298] sm:$0xff]
    %v1278 = vld [vmem:[%s7 + $0x2a0] sm:$0xff]
    %v1279 = vld [vmem:[%s7 + $0x2a8] sm:$0xff]
    %v1280 = vld [vmem:[%s7 + $0x2b0] sm:$0xff]
    %v1281 = vld [vmem:[%s7 + $0x2b8] sm:$0xff]
    %v1282 = vld [vmem:[%s7 + $0x2c0] sm:$0xff]
    %v1283 = vld [vmem:[%s7 + $0x2c8] sm:$0xff]
    %v1284 = vld [vmem:[%s7 + $0x2d0] sm:$0xff]
    %v1285 = vld [vmem:[%s7 + $0x2d8] sm:$0xff]
    %v1286 = vld [vmem:[%s7 + $0x2e0] sm:$0xff]
    %v1287 = vld [vmem:[%s7 + $0x2e8] sm:$0xff]
    %v1288 = vld [vmem:[%s7 + $0x2f0] sm:$0xff]
    %v1289 = vld [vmem:[%s7 + $0x2f8] sm:$0xff]
    %v1290 = vld [vmem:[%s7 + $0x300] sm:$0xff]
    %v1291 = vld [vmem:[%s7 + $0x308] sm:$0xff]
    %v1292 = vld [vmem:[%s7 + $0x310] sm:$0xff]
    %v1293 = vld [vmem:[%s7 + $0x318] sm:$0xff]
    %v1294 = vld [vmem:[%s7 + $0x320] sm:$0xff]
    %v1295 = vld [vmem:[%s7 + $0x328] sm:$0xff]
    %v1296 = vld [vmem:[%s7 + $0x330] sm:$0xff]
    %v1297 = vld [vmem:[%s7 + $0x338] sm:$0xff]
    %v1298 = vld [vmem:[%s7 + $0x340] sm:$0xff]
    %v1299 = vld [vmem:[%s7 + $0x348] sm:$0xff]
    %v1300 = vld [vmem:[%s7 + $0x350] sm:$0xff]
    %v1301 = vld [vmem:[%s7 + $0x358] sm:$0xff]
    %v1302 = vld [vmem:[%s7 + $0x360] sm:$0xff]
    %v1303 = vld [vmem:[%s7 + $0x368] sm:$0xff]
    %v1304 = vld [vmem:[%s7 + $0x370] sm:$0xff]
    %v1305 = vld [vmem:[%s7 + $0x378] sm:$0xff]
    %v1306 = vld [vmem:[%s7 + $0x380] sm:$0xff]
    %v1307 = vld [vmem:[%s7 + $0x388] sm:$0xff]
    %v1308 = vld [vmem:[%s7 + $0x390] sm:$0xff]
    %v1309 = vld [vmem:[%s7 + $0x398] sm:$0xff]
    %v1310 = vld [vmem:[%s7 + $0x3a0] sm:$0xff]
    %v1311 = vld [vmem:[%s7 + $0x3a8] sm:$0xff]
    %v1312 = vld [vmem:[%s7 + $0x3b0] sm:$0xff]
    %v1313 = vld [vmem:[%s7 + $0x3b8] sm:$0xff]
    %v1314 = vld [vmem:[%s7 + $0x3c0] sm:$0xff]
    %v1315 = vld [vmem:[%s7 + $0x3c8] sm:$0xff]
    %v1316 = vld [vmem:[%s7 + $0x3d0] sm:$0xff]
    %v1317 = vld [vmem:[%s7 + $0x3d8] sm:$0xff]
    %v1318 = vld [vmem:[%s7 + $0x3e0] sm:$0xff]
    %v1319 = vld [vmem:[%s7 + $0x3e8] sm:$0xff]
    %v1320 = vld [vmem:[%s7 + $0x3f0] sm:$0xff]
    %v1321 = vld [vmem:[%s7 + $0x3f8] sm:$0xff]
    %v1322 = vld [vmem:[%s7 + $0x400] sm:$0xff]
    %v1323 = vld [vmem:[%s7 + $0x408] sm:$0xff]
    %v1324 = vld [vmem:[%s7 + $0x410] sm:$0xff]
    %v1325 = vld [vmem:[%s7 + $0x418] sm:$0xff]
    %v1326 = vld [vmem:[%s7 + $0x420] sm:$0xff]
    %v1327 = vld [vmem:[%s7 + $0x428] sm:$0xff]
    %v1328 = vld [vmem:[%s7 + $0x430] sm:$0xff]
    %v1329 = vld [vmem:[%s7 + $0x438] sm:$0xff]
    %v1330 = vld [vmem:[%s7 + $0x440] sm:$0xff]
    %v1331 = vld [vmem:[%s7 + $0x448] sm:$0xff]
    %v1332 = vld [vmem:[%s7 + $0x450] sm:$0xff]
    %v1333 = vld [vmem:[%s7 + $0x458] sm:$0xff]
    %v1334 = vld [vmem:[%s7 + $0x460] sm:$0xff]
    %v1335 = vld [vmem:[%s7 + $0x468] sm:$0xff]
    %v1336 = vld [vmem:[%s7 + $0x470] sm:$0xff]
    %v1337 = vld [vmem:[%s7 + $0x478] sm:$0xff]
    %v1338 = vld [vmem:[%s7 + $0x480] sm:$0xff]
    %v1339 = vld [vmem:[%s7 + $0x488] sm:$0xff]
    %v1340 = vld [vmem:[%s7 + $0x490] sm:$0xff]
    %v1341 = vld [vmem:[%s7 + $0x498] sm:$0xff]
    %v1342 = vld [vmem:[%s7 + $0x4a0] sm:$0xff]
    %v1343 = vld [vmem:[%s7 + $0x4a8] sm:$0xff]
    %v1344 = vld [vmem:[%s7 + $0x4b0] sm:$0xff]
    %v1345 = vld [vmem:[%s7 + $0x4b8] sm:$0xff]
    %v1346 = vld [vmem:[%s7 + $0x4c0] sm:$0xff]
    %v1347 = vld [vmem:[%s7 + $0x4c8] sm:$0xff]
    %v1348 = vld [vmem:[%s7 + $0x4d0] sm:$0xff]
    %v1349 = vld [vmem:[%s7 + $0x4d8] sm:$0xff]
    %v1350 = vld [vmem:[%s7 + $0x4e0] sm:$0xff]
    %v1351 = vld [vmem:[%s7 + $0x4e8] sm:$0xff]
    %v1352 = vld [vmem:[%s7 + $0x4f0] sm:$0xff]
    %v1353 = vld [vmem:[%s7 + $0x4f8] sm:$0xff]
    %v1354 = vld [vmem:[%s7 + $0x500] sm:$0xff]
    %v1355 = vld [vmem:[%s7 + $0x508] sm:$0xff]
    %v1356 = vld [vmem:[%s7 + $0x510] sm:$0xff]
    %v1357 = vld [vmem:[%s7 + $0x518] sm:$0xff]
    %v1358 = vld [vmem:[%s7 + $0x520] sm:$0xff]
    %v1359 = vld [vmem:[%s7 + $0x528] sm:$0xff]
    %v1360 = vld [vmem:[%s7 + $0x530] sm:$0xff]
    %v1361 = vld [vmem:[%s7 + $0x538] sm:$0xff]
    %v1362 = vld [vmem:[%s7 + $0x540] sm:$0xff]
    %v1363 = vld [vmem:[%s7 + $0x548] sm:$0xff]
    %v1364 = vld [vmem:[%s7 + $0x550] sm:$0xff]
    %v1365 = vld [vmem:[%s7 + $0x558] sm:$0xff]
    %v1366 = vld [vmem:[%s7 + $0x560] sm:$0xff]
    %v1367 = vld [vmem:[%s7 + $0x568] sm:$0xff]
    %v1368 = vld [vmem:[%s7 + $0x570] sm:$0xff]
    %v1369 = vld [vmem:[%s7 + $0x578] sm:$0xff]
    %v1370 = vld [vmem:[%s7 + $0x580] sm:$0xff]
    %v1371 = vld [vmem:[%s7 + $0x588] sm:$0xff]
    %v1372 = vld [vmem:[%s7 + $0x590] sm:$0xff]
    %v1373 = vld [vmem:[%s7 + $0x598] sm:$0xff]
    %v1374 = vld [vmem:[%s7 + $0x5a0] sm:$0xff]
    %v1375 = vld [vmem:[%s7 + $0x5a8] sm:$0xff]
    %v1376 = vld [vmem:[%s7 + $0x5b0] sm:$0xff]
    %v1377 = vld [vmem:[%s7 + $0x5b8] sm:$0xff]
    %v1378 = vld [vmem:[%s7 + $0x5c0] sm:$0xff]
    %v1379 = vld [vmem:[%s7 + $0x5c8] sm:$0xff]
    %v1380 = vld [vmem:[%s7 + $0x5d0] sm:$0xff]
    %v1381 = vld [vmem:[%s7 + $0x5d8] sm:$0xff]
    %v1382 = vld [vmem:[%s7 + $0x5e0] sm:$0xff]
    %v1383 = vld [vmem:[%s7 + $0x5e8] sm:$0xff]
    %v1384 = vld [vmem:[%s7 + $0x5f0] sm:$0xff]
    %v1385 = vld [vmem:[%s7 + $0x5f8] sm:$0xff]
    %v1386 = vld [vmem:[%s7 + $0x600] sm:$0xff]
    %v1387 = vld [vmem:[%s7 + $0x608] sm:$0xff]
    %v1388 = vld [vmem:[%s7 + $0x610] sm:$0xff]
    %v1389 = vld [vmem:[%s7 + $0x618] sm:$0xff]
    %v1390 = vld [vmem:[%s7 + $0x620] sm:$0xff]
    %v1391 = vld [vmem:[%s7 + $0x628] sm:$0xff]
    %v1392 = vld [vmem:[%s7 + $0x630] sm:$0xff]
    %v1393 = vld [vmem:[%s7 + $0x638] sm:$0xff]
    %v1394 = vld [vmem:[%s7 + $0x640] sm:$0xff]
    %v1395 = vld [vmem:[%s7 + $0x648] sm:$0xff]
    %v1396 = vld [vmem:[%s7 + $0x650] sm:$0xff]
    %v1397 = vld [vmem:[%s7 + $0x658] sm:$0xff]
    %v1398 = vld [vmem:[%s7 + $0x660] sm:$0xff]
    %v1399 = vld [vmem:[%s7 + $0x668] sm:$0xff]
    %v1400 = vld [vmem:[%s7 + $0x670] sm:$0xff]
    %v1401 = vld [vmem:[%s7 + $0x678] sm:$0xff]
    %v1402 = vld [vmem:[%s7 + $0x680] sm:$0xff]
    %v1403 = vld [vmem:[%s7 + $0x688] sm:$0xff]
    %v1404 = vld [vmem:[%s7 + $0x690] sm:$0xff]
    %v1405 = vld [vmem:[%s7 + $0x698] sm:$0xff]
    %v1406 = vld [vmem:[%s7 + $0x6a0] sm:$0xff]
    %v1407 = vld [vmem:[%s7 + $0x6a8] sm:$0xff]
    %v1408 = vld [vmem:[%s7 + $0x6b0] sm:$0xff]
    %v1409 = vld [vmem:[%s7 + $0x6b8] sm:$0xff]
    %v1410 = vld [vmem:[%s7 + $0x6c0] sm:$0xff]
    %v1411 = vld [vmem:[%s7 + $0x6c8] sm:$0xff]
    %v1412 = vld [vmem:[%s7 + $0x6d0] sm:$0xff]
    %v1413 = vld [vmem:[%s7 + $0x6d8] sm:$0xff]
    %v1414 = vld [vmem:[%s7 + $0x6e0] sm:$0xff]
    %v1415 = vld [vmem:[%s7 + $0x6e8] sm:$0xff]
    %v1416 = vld [vmem:[%s7 + $0x6f0] sm:$0xff]
    %v1417 = vld [vmem:[%s7 + $0x6f8] sm:$0xff]
    %v1418 = vld [vmem:[%s7 + $0x700] sm:$0xff]
    %v1419 = vld [vmem:[%s7 + $0x708] sm:$0xff]
    %v1420 = vld [vmem:[%s7 + $0x710] sm:$0xff]
    %v1421 = vld [vmem:[%s7 + $0x718] sm:$0xff]
    %v1422 = vld [vmem:[%s7 + $0x720] sm:$0xff]
    %v1423 = vld [vmem:[%s7 + $0x728] sm:$0xff]
    %v1424 = vld [vmem:[%s7 + $0x730] sm:$0xff]
    %v1425 = vld [vmem:[%s7 + $0x738] sm:$0xff]
    %v1426 = vld [vmem:[%s7 + $0x740] sm:$0xff]
    %v1427 = vld [vmem:[%s7 + $0x748] sm:$0xff]
    %v1428 = vld [vmem:[%s7 + $0x750] sm:$0xff]
    %v1429 = vld [vmem:[%s7 + $0x758] sm:$0xff]
    %v1430 = vld [vmem:[%s7 + $0x760] sm:$0xff]
    %v1431 = vld [vmem:[%s7 + $0x768] sm:$0xff]
    %v1432 = vld [vmem:[%s7 + $0x770] sm:$0xff]
    %v1433 = vld [vmem:[%s7 + $0x778] sm:$0xff]
    %v1434 = vld [vmem:[%s7 + $0x780] sm:$0xff]
    %v1435 = vld [vmem:[%s7 + $0x788] sm:$0xff]
    %v1436 = vld [vmem:[%s7 + $0x790] sm:$0xff]
    %v1437 = vld [vmem:[%s7 + $0x798] sm:$0xff]
    %v1438 = vld [vmem:[%s7 + $0x7a0] sm:$0xff]
    %v1439 = vld [vmem:[%s7 + $0x7a8] sm:$0xff]
    %v1440 = vld [vmem:[%s7 + $0x7b0] sm:$0xff]
    %v1441 = vld [vmem:[%s7 + $0x7b8] sm:$0xff]
    %v1442 = vld [vmem:[%s7 + $0x7c0] sm:$0xff]
    %v1443 = vld [vmem:[%s7 + $0x7c8] sm:$0xff]
    %v1444 = vld [vmem:[%s7 + $0x7d0] sm:$0xff]
    %v1445 = vld [vmem:[%s7 + $0x7d8] sm:$0xff]
    %v1446 = vld [vmem:[%s7 + $0x7e0] sm:$0xff]
    %v1447 = vld [vmem:[%s7 + $0x7e8] sm:$0xff]
    %v1448 = vld [vmem:[%s7 + $0x7f0] sm:$0xff]
    %v1449 = vld [vmem:[%s7 + $0x7f8] sm:$0xff]
    %v1450 = vld [vmem:[%s8] sm:$0xf]
    %v1452 = vlaneseq
    %v1453 = vshrl.u32 %v1452, 7
    %v1454 = vsub.s32 0, %v1453
    %v1455 = vrot.slane %v1450, %v1454
    %v1456 = vlaneseq
    %v1457 = vshrl.u32 %v1456, 7
    %v1458 = vsub.s32 1, %v1457
    %v1459 = vrot.slane %v1450, %v1458
    %v1460 = vlaneseq
    %v1461 = vshrl.u32 %v1460, 7
    %v1462 = vsub.s32 2, %v1461
    %v1463 = vrot.slane %v1450, %v1462
    %v1464 = vlaneseq
    %v1465 = vshrl.u32 %v1464, 7
    %v1466 = vsub.s32 3, %v1465
    %v1467 = vrot.slane %v1450, %v1466
    %v1728 = vunpack.c.l.b16 %v1194
    %v1729 = vunpack.c.h.b16 %v1194
    %v1730 = vunpack.c.l.b16 %v1195
    %v1731 = vunpack.c.h.b16 %v1195
    %v1732 = vunpack.c.l.b16 %v1196
    %v1733 = vunpack.c.h.b16 %v1196
    %v1734 = vunpack.c.l.b16 %v1197
    %v1735 = vunpack.c.h.b16 %v1197
    %v1736 = vunpack.c.l.b16 %v1198
    %v1737 = vunpack.c.h.b16 %v1198
    %v1738 = vunpack.c.l.b16 %v1199
    %v1739 = vunpack.c.h.b16 %v1199
    %v1740 = vunpack.c.l.b16 %v1200
    %v1741 = vunpack.c.h.b16 %v1200
    %v1742 = vunpack.c.l.b16 %v1201
    %v1743 = vunpack.c.h.b16 %v1201
    %v1744 = vunpack.c.l.b16 %v1202
    %v1745 = vunpack.c.h.b16 %v1202
    %v1746 = vunpack.c.l.b16 %v1203
    %v1747 = vunpack.c.h.b16 %v1203
    %v1748 = vunpack.c.l.b16 %v1204
    %v1749 = vunpack.c.h.b16 %v1204
    %v1750 = vunpack.c.l.b16 %v1205
    %v1751 = vunpack.c.h.b16 %v1205
    %v1752 = vunpack.c.l.b16 %v1206
    %v1753 = vunpack.c.h.b16 %v1206
    %v1754 = vunpack.c.l.b16 %v1207
    %v1755 = vunpack.c.h.b16 %v1207
    %v1756 = vunpack.c.l.b16 %v1208
    %v1757 = vunpack.c.h.b16 %v1208
    %v1758 = vunpack.c.l.b16 %v1209
    %v1759 = vunpack.c.h.b16 %v1209
    %v1760 = vunpack.c.l.b16 %v1210
    %v1761 = vunpack.c.h.b16 %v1210
    %v1762 = vunpack.c.l.b16 %v1211
    %v1763 = vunpack.c.h.b16 %v1211
    %v1764 = vunpack.c.l.b16 %v1212
    %v1765 = vunpack.c.h.b16 %v1212
    %v1766 = vunpack.c.l.b16 %v1213
    %v1767 = vunpack.c.h.b16 %v1213
    %v1768 = vunpack.c.l.b16 %v1214
    %v1769 = vunpack.c.h.b16 %v1214
    %v1770 = vunpack.c.l.b16 %v1215
    %v1771 = vunpack.c.h.b16 %v1215
    %v1772 = vunpack.c.l.b16 %v1216
    %v1773 = vunpack.c.h.b16 %v1216
    %v1774 = vunpack.c.l.b16 %v1217
    %v1775 = vunpack.c.h.b16 %v1217
    %v1776 = vunpack.c.l.b16 %v1218
    %v1777 = vunpack.c.h.b16 %v1218
    %v1778 = vunpack.c.l.b16 %v1219
    %v1779 = vunpack.c.h.b16 %v1219
    %v1780 = vunpack.c.l.b16 %v1220
    %v1781 = vunpack.c.h.b16 %v1220
    %v1782 = vunpack.c.l.b16 %v1221
    %v1783 = vunpack.c.h.b16 %v1221
    %v1784 = vunpack.c.l.b16 %v1222
    %v1785 = vunpack.c.h.b16 %v1222
    %v1786 = vunpack.c.l.b16 %v1223
    %v1787 = vunpack.c.h.b16 %v1223
    %v1788 = vunpack.c.l.b16 %v1224
    %v1789 = vunpack.c.h.b16 %v1224
    %v1790 = vunpack.c.l.b16 %v1225
    %v1791 = vunpack.c.h.b16 %v1225
    %v1792 = vunpack.c.l.b16 %v1226
    %v1793 = vunpack.c.h.b16 %v1226
    %v1794 = vunpack.c.l.b16 %v1227
    %v1795 = vunpack.c.h.b16 %v1227
    %v1796 = vunpack.c.l.b16 %v1228
    %v1797 = vunpack.c.h.b16 %v1228
    %v1798 = vunpack.c.l.b16 %v1229
    %v1799 = vunpack.c.h.b16 %v1229
    %v1800 = vunpack.c.l.b16 %v1230
    %v1801 = vunpack.c.h.b16 %v1230
    %v1802 = vunpack.c.l.b16 %v1231
    %v1803 = vunpack.c.h.b16 %v1231
    %v1804 = vunpack.c.l.b16 %v1232
    %v1805 = vunpack.c.h.b16 %v1232
    %v1806 = vunpack.c.l.b16 %v1233
    %v1807 = vunpack.c.h.b16 %v1233
    %v1808 = vunpack.c.l.b16 %v1234
    %v1809 = vunpack.c.h.b16 %v1234
    %v1810 = vunpack.c.l.b16 %v1235
    %v1811 = vunpack.c.h.b16 %v1235
    %v1812 = vunpack.c.l.b16 %v1236
    %v1813 = vunpack.c.h.b16 %v1236
    %v1814 = vunpack.c.l.b16 %v1237
    %v1815 = vunpack.c.h.b16 %v1237
    %v1816 = vunpack.c.l.b16 %v1238
    %v1817 = vunpack.c.h.b16 %v1238
    %v1818 = vunpack.c.l.b16 %v1239
    %v1819 = vunpack.c.h.b16 %v1239
    %v1820 = vunpack.c.l.b16 %v1240
    %v1821 = vunpack.c.h.b16 %v1240
    %v1822 = vunpack.c.l.b16 %v1241
    %v1823 = vunpack.c.h.b16 %v1241
    %v1824 = vunpack.c.l.b16 %v1242
    %v1825 = vunpack.c.h.b16 %v1242
    %v1826 = vunpack.c.l.b16 %v1243
    %v1827 = vunpack.c.h.b16 %v1243
    %v1828 = vunpack.c.l.b16 %v1244
    %v1829 = vunpack.c.h.b16 %v1244
    %v1830 = vunpack.c.l.b16 %v1245
    %v1831 = vunpack.c.h.b16 %v1245
    %v1832 = vunpack.c.l.b16 %v1246
    %v1833 = vunpack.c.h.b16 %v1246
    %v1834 = vunpack.c.l.b16 %v1247
    %v1835 = vunpack.c.h.b16 %v1247
    %v1836 = vunpack.c.l.b16 %v1248
    %v1837 = vunpack.c.h.b16 %v1248
    %v1838 = vunpack.c.l.b16 %v1249
    %v1839 = vunpack.c.h.b16 %v1249
    %v1840 = vunpack.c.l.b16 %v1250
    %v1841 = vunpack.c.h.b16 %v1250
    %v1842 = vunpack.c.l.b16 %v1251
    %v1843 = vunpack.c.h.b16 %v1251
    %v1844 = vunpack.c.l.b16 %v1252
    %v1845 = vunpack.c.h.b16 %v1252
    %v1846 = vunpack.c.l.b16 %v1253
    %v1847 = vunpack.c.h.b16 %v1253
    %v1848 = vunpack.c.l.b16 %v1254
    %v1849 = vunpack.c.h.b16 %v1254
    %v1850 = vunpack.c.l.b16 %v1255
    %v1851 = vunpack.c.h.b16 %v1255
    %v1852 = vunpack.c.l.b16 %v1256
    %v1853 = vunpack.c.h.b16 %v1256
    %v1854 = vunpack.c.l.b16 %v1257
    %v1855 = vunpack.c.h.b16 %v1257
    %v1856 = vunpack.c.l.b16 %v1258
    %v1857 = vunpack.c.h.b16 %v1258
    %v1858 = vunpack.c.l.b16 %v1259
    %v1859 = vunpack.c.h.b16 %v1259
    %v1860 = vunpack.c.l.b16 %v1260
    %v1861 = vunpack.c.h.b16 %v1260
    %v1862 = vunpack.c.l.b16 %v1261
    %v1863 = vunpack.c.h.b16 %v1261
    %v1864 = vunpack.c.l.b16 %v1262
    %v1865 = vunpack.c.h.b16 %v1262
    %v1866 = vunpack.c.l.b16 %v1263
    %v1867 = vunpack.c.h.b16 %v1263
    %v1868 = vunpack.c.l.b16 %v1264
    %v1869 = vunpack.c.h.b16 %v1264
    %v1870 = vunpack.c.l.b16 %v1265
    %v1871 = vunpack.c.h.b16 %v1265
    %v1872 = vunpack.c.l.b16 %v1266
    %v1873 = vunpack.c.h.b16 %v1266
    %v1874 = vunpack.c.l.b16 %v1267
    %v1875 = vunpack.c.h.b16 %v1267
    %v1876 = vunpack.c.l.b16 %v1268
    %v1877 = vunpack.c.h.b16 %v1268
    %v1878 = vunpack.c.l.b16 %v1269
    %v1879 = vunpack.c.h.b16 %v1269
    %v1880 = vunpack.c.l.b16 %v1270
    %v1881 = vunpack.c.h.b16 %v1270
    %v1882 = vunpack.c.l.b16 %v1271
    %v1883 = vunpack.c.h.b16 %v1271
    %v1884 = vunpack.c.l.b16 %v1272
    %v1885 = vunpack.c.h.b16 %v1272
    %v1886 = vunpack.c.l.b16 %v1273
    %v1887 = vunpack.c.h.b16 %v1273
    %v1888 = vunpack.c.l.b16 %v1274
    %v1889 = vunpack.c.h.b16 %v1274
    %v1890 = vunpack.c.l.b16 %v1275
    %v1891 = vunpack.c.h.b16 %v1275
    %v1892 = vunpack.c.l.b16 %v1276
    %v1893 = vunpack.c.h.b16 %v1276
    %v1894 = vunpack.c.l.b16 %v1277
    %v1895 = vunpack.c.h.b16 %v1277
    %v1896 = vunpack.c.l.b16 %v1278
    %v1897 = vunpack.c.h.b16 %v1278
    %v1898 = vunpack.c.l.b16 %v1279
    %v1899 = vunpack.c.h.b16 %v1279
    %v1900 = vunpack.c.l.b16 %v1280
    %v1901 = vunpack.c.h.b16 %v1280
    %v1902 = vunpack.c.l.b16 %v1281
    %v1903 = vunpack.c.h.b16 %v1281
    %v1904 = vunpack.c.l.b16 %v1282
    %v1905 = vunpack.c.h.b16 %v1282
    %v1906 = vunpack.c.l.b16 %v1283
    %v1907 = vunpack.c.h.b16 %v1283
    %v1908 = vunpack.c.l.b16 %v1284
    %v1909 = vunpack.c.h.b16 %v1284
    %v1910 = vunpack.c.l.b16 %v1285
    %v1911 = vunpack.c.h.b16 %v1285
    %v1912 = vunpack.c.l.b16 %v1286
    %v1913 = vunpack.c.h.b16 %v1286
    %v1914 = vunpack.c.l.b16 %v1287
    %v1915 = vunpack.c.h.b16 %v1287
    %v1916 = vunpack.c.l.b16 %v1288
    %v1917 = vunpack.c.h.b16 %v1288
    %v1918 = vunpack.c.l.b16 %v1289
    %v1919 = vunpack.c.h.b16 %v1289
    %v1920 = vunpack.c.l.b16 %v1290
    %v1921 = vunpack.c.h.b16 %v1290
    %v1922 = vunpack.c.l.b16 %v1291
    %v1923 = vunpack.c.h.b16 %v1291
    %v1924 = vunpack.c.l.b16 %v1292
    %v1925 = vunpack.c.h.b16 %v1292
    %v1926 = vunpack.c.l.b16 %v1293
    %v1927 = vunpack.c.h.b16 %v1293
    %v1928 = vunpack.c.l.b16 %v1294
    %v1929 = vunpack.c.h.b16 %v1294
    %v1930 = vunpack.c.l.b16 %v1295
    %v1931 = vunpack.c.h.b16 %v1295
    %v1932 = vunpack.c.l.b16 %v1296
    %v1933 = vunpack.c.h.b16 %v1296
    %v1934 = vunpack.c.l.b16 %v1297
    %v1935 = vunpack.c.h.b16 %v1297
    %v1936 = vunpack.c.l.b16 %v1298
    %v1937 = vunpack.c.h.b16 %v1298
    %v1938 = vunpack.c.l.b16 %v1299
    %v1939 = vunpack.c.h.b16 %v1299
    %v1940 = vunpack.c.l.b16 %v1300
    %v1941 = vunpack.c.h.b16 %v1300
    %v1942 = vunpack.c.l.b16 %v1301
    %v1943 = vunpack.c.h.b16 %v1301
    %v1944 = vunpack.c.l.b16 %v1302
    %v1945 = vunpack.c.h.b16 %v1302
    %v1946 = vunpack.c.l.b16 %v1303
    %v1947 = vunpack.c.h.b16 %v1303
    %v1948 = vunpack.c.l.b16 %v1304
    %v1949 = vunpack.c.h.b16 %v1304
    %v1950 = vunpack.c.l.b16 %v1305
    %v1951 = vunpack.c.h.b16 %v1305
    %v1952 = vunpack.c.l.b16 %v1306
    %v1953 = vunpack.c.h.b16 %v1306
    %v1954 = vunpack.c.l.b16 %v1307
    %v1955 = vunpack.c.h.b16 %v1307
    %v1956 = vunpack.c.l.b16 %v1308
    %v1957 = vunpack.c.h.b16 %v1308
    %v1958 = vunpack.c.l.b16 %v1309
    %v1959 = vunpack.c.h.b16 %v1309
    %v1960 = vunpack.c.l.b16 %v1310
    %v1961 = vunpack.c.h.b16 %v1310
    %v1962 = vunpack.c.l.b16 %v1311
    %v1963 = vunpack.c.h.b16 %v1311
    %v1964 = vunpack.c.l.b16 %v1312
    %v1965 = vunpack.c.h.b16 %v1312
    %v1966 = vunpack.c.l.b16 %v1313
    %v1967 = vunpack.c.h.b16 %v1313
    %v1968 = vunpack.c.l.b16 %v1314
    %v1969 = vunpack.c.h.b16 %v1314
    %v1970 = vunpack.c.l.b16 %v1315
    %v1971 = vunpack.c.h.b16 %v1315
    %v1972 = vunpack.c.l.b16 %v1316
    %v1973 = vunpack.c.h.b16 %v1316
    %v1974 = vunpack.c.l.b16 %v1317
    %v1975 = vunpack.c.h.b16 %v1317
    %v1976 = vunpack.c.l.b16 %v1318
    %v1977 = vunpack.c.h.b16 %v1318
    %v1978 = vunpack.c.l.b16 %v1319
    %v1979 = vunpack.c.h.b16 %v1319
    %v1980 = vunpack.c.l.b16 %v1320
    %v1981 = vunpack.c.h.b16 %v1320
    %v1982 = vunpack.c.l.b16 %v1321
    %v1983 = vunpack.c.h.b16 %v1321
    %v1984 = vunpack.c.l.b16 %v1322
    %v1985 = vunpack.c.h.b16 %v1322
    %v1986 = vunpack.c.l.b16 %v1323
    %v1987 = vunpack.c.h.b16 %v1323
    %v1988 = vunpack.c.l.b16 %v1324
    %v1989 = vunpack.c.h.b16 %v1324
    %v1990 = vunpack.c.l.b16 %v1325
    %v1991 = vunpack.c.h.b16 %v1325
    %v1992 = vunpack.c.l.b16 %v1326
    %v1993 = vunpack.c.h.b16 %v1326
    %v1994 = vunpack.c.l.b16 %v1327
    %v1995 = vunpack.c.h.b16 %v1327
    %v1996 = vunpack.c.l.b16 %v1328
    %v1997 = vunpack.c.h.b16 %v1328
    %v1998 = vunpack.c.l.b16 %v1329
    %v1999 = vunpack.c.h.b16 %v1329
    %v2000 = vunpack.c.l.b16 %v1330
    %v2001 = vunpack.c.h.b16 %v1330
    %v2002 = vunpack.c.l.b16 %v1331
    %v2003 = vunpack.c.h.b16 %v1331
    %v2004 = vunpack.c.l.b16 %v1332
    %v2005 = vunpack.c.h.b16 %v1332
    %v2006 = vunpack.c.l.b16 %v1333
    %v2007 = vunpack.c.h.b16 %v1333
    %v2008 = vunpack.c.l.b16 %v1334
    %v2009 = vunpack.c.h.b16 %v1334
    %v2010 = vunpack.c.l.b16 %v1335
    %v2011 = vunpack.c.h.b16 %v1335
    %v2012 = vunpack.c.l.b16 %v1336
    %v2013 = vunpack.c.h.b16 %v1336
    %v2014 = vunpack.c.l.b16 %v1337
    %v2015 = vunpack.c.h.b16 %v1337
    %v2016 = vunpack.c.l.b16 %v1338
    %v2017 = vunpack.c.h.b16 %v1338
    %v2018 = vunpack.c.l.b16 %v1339
    %v2019 = vunpack.c.h.b16 %v1339
    %v2020 = vunpack.c.l.b16 %v1340
    %v2021 = vunpack.c.h.b16 %v1340
    %v2022 = vunpack.c.l.b16 %v1341
    %v2023 = vunpack.c.h.b16 %v1341
    %v2024 = vunpack.c.l.b16 %v1342
    %v2025 = vunpack.c.h.b16 %v1342
    %v2026 = vunpack.c.l.b16 %v1343
    %v2027 = vunpack.c.h.b16 %v1343
    %v2028 = vunpack.c.l.b16 %v1344
    %v2029 = vunpack.c.h.b16 %v1344
    %v2030 = vunpack.c.l.b16 %v1345
    %v2031 = vunpack.c.h.b16 %v1345
    %v2032 = vunpack.c.l.b16 %v1346
    %v2033 = vunpack.c.h.b16 %v1346
    %v2034 = vunpack.c.l.b16 %v1347
    %v2035 = vunpack.c.h.b16 %v1347
    %v2036 = vunpack.c.l.b16 %v1348
    %v2037 = vunpack.c.h.b16 %v1348
    %v2038 = vunpack.c.l.b16 %v1349
    %v2039 = vunpack.c.h.b16 %v1349
    %v2040 = vunpack.c.l.b16 %v1350
    %v2041 = vunpack.c.h.b16 %v1350
    %v2042 = vunpack.c.l.b16 %v1351
    %v2043 = vunpack.c.h.b16 %v1351
    %v2044 = vunpack.c.l.b16 %v1352
    %v2045 = vunpack.c.h.b16 %v1352
    %v2046 = vunpack.c.l.b16 %v1353
    %v2047 = vunpack.c.h.b16 %v1353
    %v2048 = vunpack.c.l.b16 %v1354
    %v2049 = vunpack.c.h.b16 %v1354
    %v2050 = vunpack.c.l.b16 %v1355
    %v2051 = vunpack.c.h.b16 %v1355
    %v2052 = vunpack.c.l.b16 %v1356
    %v2053 = vunpack.c.h.b16 %v1356
    %v2054 = vunpack.c.l.b16 %v1357
    %v2055 = vunpack.c.h.b16 %v1357
    %v2056 = vunpack.c.l.b16 %v1358
    %v2057 = vunpack.c.h.b16 %v1358
    %v2058 = vunpack.c.l.b16 %v1359
    %v2059 = vunpack.c.h.b16 %v1359
    %v2060 = vunpack.c.l.b16 %v1360
    %v2061 = vunpack.c.h.b16 %v1360
    %v2062 = vunpack.c.l.b16 %v1361
    %v2063 = vunpack.c.h.b16 %v1361
    %v2064 = vunpack.c.l.b16 %v1362
    %v2065 = vunpack.c.h.b16 %v1362
    %v2066 = vunpack.c.l.b16 %v1363
    %v2067 = vunpack.c.h.b16 %v1363
    %v2068 = vunpack.c.l.b16 %v1364
    %v2069 = vunpack.c.h.b16 %v1364
    %v2070 = vunpack.c.l.b16 %v1365
    %v2071 = vunpack.c.h.b16 %v1365
    %v2072 = vunpack.c.l.b16 %v1366
    %v2073 = vunpack.c.h.b16 %v1366
    %v2074 = vunpack.c.l.b16 %v1367
    %v2075 = vunpack.c.h.b16 %v1367
    %v2076 = vunpack.c.l.b16 %v1368
    %v2077 = vunpack.c.h.b16 %v1368
    %v2078 = vunpack.c.l.b16 %v1369
    %v2079 = vunpack.c.h.b16 %v1369
    %v2080 = vunpack.c.l.b16 %v1370
    %v2081 = vunpack.c.h.b16 %v1370
    %v2082 = vunpack.c.l.b16 %v1371
    %v2083 = vunpack.c.h.b16 %v1371
    %v2084 = vunpack.c.l.b16 %v1372
    %v2085 = vunpack.c.h.b16 %v1372
    %v2086 = vunpack.c.l.b16 %v1373
    %v2087 = vunpack.c.h.b16 %v1373
    %v2088 = vunpack.c.l.b16 %v1374
    %v2089 = vunpack.c.h.b16 %v1374
    %v2090 = vunpack.c.l.b16 %v1375
    %v2091 = vunpack.c.h.b16 %v1375
    %v2092 = vunpack.c.l.b16 %v1376
    %v2093 = vunpack.c.h.b16 %v1376
    %v2094 = vunpack.c.l.b16 %v1377
    %v2095 = vunpack.c.h.b16 %v1377
    %v2096 = vunpack.c.l.b16 %v1378
    %v2097 = vunpack.c.h.b16 %v1378
    %v2098 = vunpack.c.l.b16 %v1379
    %v2099 = vunpack.c.h.b16 %v1379
    %v2100 = vunpack.c.l.b16 %v1380
    %v2101 = vunpack.c.h.b16 %v1380
    %v2102 = vunpack.c.l.b16 %v1381
    %v2103 = vunpack.c.h.b16 %v1381
    %v2104 = vunpack.c.l.b16 %v1382
    %v2105 = vunpack.c.h.b16 %v1382
    %v2106 = vunpack.c.l.b16 %v1383
    %v2107 = vunpack.c.h.b16 %v1383
    %v2108 = vunpack.c.l.b16 %v1384
    %v2109 = vunpack.c.h.b16 %v1384
    %v2110 = vunpack.c.l.b16 %v1385
    %v2111 = vunpack.c.h.b16 %v1385
    %v2112 = vunpack.c.l.b16 %v1386
    %v2113 = vunpack.c.h.b16 %v1386
    %v2114 = vunpack.c.l.b16 %v1387
    %v2115 = vunpack.c.h.b16 %v1387
    %v2116 = vunpack.c.l.b16 %v1388
    %v2117 = vunpack.c.h.b16 %v1388
    %v2118 = vunpack.c.l.b16 %v1389
    %v2119 = vunpack.c.h.b16 %v1389
    %v2120 = vunpack.c.l.b16 %v1390
    %v2121 = vunpack.c.h.b16 %v1390
    %v2122 = vunpack.c.l.b16 %v1391
    %v2123 = vunpack.c.h.b16 %v1391
    %v2124 = vunpack.c.l.b16 %v1392
    %v2125 = vunpack.c.h.b16 %v1392
    %v2126 = vunpack.c.l.b16 %v1393
    %v2127 = vunpack.c.h.b16 %v1393
    %v2128 = vunpack.c.l.b16 %v1394
    %v2129 = vunpack.c.h.b16 %v1394
    %v2130 = vunpack.c.l.b16 %v1395
    %v2131 = vunpack.c.h.b16 %v1395
    %v2132 = vunpack.c.l.b16 %v1396
    %v2133 = vunpack.c.h.b16 %v1396
    %v2134 = vunpack.c.l.b16 %v1397
    %v2135 = vunpack.c.h.b16 %v1397
    %v2136 = vunpack.c.l.b16 %v1398
    %v2137 = vunpack.c.h.b16 %v1398
    %v2138 = vunpack.c.l.b16 %v1399
    %v2139 = vunpack.c.h.b16 %v1399
    %v2140 = vunpack.c.l.b16 %v1400
    %v2141 = vunpack.c.h.b16 %v1400
    %v2142 = vunpack.c.l.b16 %v1401
    %v2143 = vunpack.c.h.b16 %v1401
    %v2144 = vunpack.c.l.b16 %v1402
    %v2145 = vunpack.c.h.b16 %v1402
    %v2146 = vunpack.c.l.b16 %v1403
    %v2147 = vunpack.c.h.b16 %v1403
    %v2148 = vunpack.c.l.b16 %v1404
    %v2149 = vunpack.c.h.b16 %v1404
    %v2150 = vunpack.c.l.b16 %v1405
    %v2151 = vunpack.c.h.b16 %v1405
    %v2152 = vunpack.c.l.b16 %v1406
    %v2153 = vunpack.c.h.b16 %v1406
    %v2154 = vunpack.c.l.b16 %v1407
    %v2155 = vunpack.c.h.b16 %v1407
    %v2156 = vunpack.c.l.b16 %v1408
    %v2157 = vunpack.c.h.b16 %v1408
    %v2158 = vunpack.c.l.b16 %v1409
    %v2159 = vunpack.c.h.b16 %v1409
    %v2160 = vunpack.c.l.b16 %v1410
    %v2161 = vunpack.c.h.b16 %v1410
    %v2162 = vunpack.c.l.b16 %v1411
    %v2163 = vunpack.c.h.b16 %v1411
    %v2164 = vunpack.c.l.b16 %v1412
    %v2165 = vunpack.c.h.b16 %v1412
    %v2166 = vunpack.c.l.b16 %v1413
    %v2167 = vunpack.c.h.b16 %v1413
    %v2168 = vunpack.c.l.b16 %v1414
    %v2169 = vunpack.c.h.b16 %v1414
    %v2170 = vunpack.c.l.b16 %v1415
    %v2171 = vunpack.c.h.b16 %v1415
    %v2172 = vunpack.c.l.b16 %v1416
    %v2173 = vunpack.c.h.b16 %v1416
    %v2174 = vunpack.c.l.b16 %v1417
    %v2175 = vunpack.c.h.b16 %v1417
    %v2176 = vunpack.c.l.b16 %v1418
    %v2177 = vunpack.c.h.b16 %v1418
    %v2178 = vunpack.c.l.b16 %v1419
    %v2179 = vunpack.c.h.b16 %v1419
    %v2180 = vunpack.c.l.b16 %v1420
    %v2181 = vunpack.c.h.b16 %v1420
    %v2182 = vunpack.c.l.b16 %v1421
    %v2183 = vunpack.c.h.b16 %v1421
    %v2184 = vunpack.c.l.b16 %v1422
    %v2185 = vunpack.c.h.b16 %v1422
    %v2186 = vunpack.c.l.b16 %v1423
    %v2187 = vunpack.c.h.b16 %v1423
    %v2188 = vunpack.c.l.b16 %v1424
    %v2189 = vunpack.c.h.b16 %v1424
    %v2190 = vunpack.c.l.b16 %v1425
    %v2191 = vunpack.c.h.b16 %v1425
    %v2192 = vunpack.c.l.b16 %v1426
    %v2193 = vunpack.c.h.b16 %v1426
    %v2194 = vunpack.c.l.b16 %v1427
    %v2195 = vunpack.c.h.b16 %v1427
    %v2196 = vunpack.c.l.b16 %v1428
    %v2197 = vunpack.c.h.b16 %v1428
    %v2198 = vunpack.c.l.b16 %v1429
    %v2199 = vunpack.c.h.b16 %v1429
    %v2200 = vunpack.c.l.b16 %v1430
    %v2201 = vunpack.c.h.b16 %v1430
    %v2202 = vunpack.c.l.b16 %v1431
    %v2203 = vunpack.c.h.b16 %v1431
    %v2204 = vunpack.c.l.b16 %v1432
    %v2205 = vunpack.c.h.b16 %v1432
    %v2206 = vunpack.c.l.b16 %v1433
    %v2207 = vunpack.c.h.b16 %v1433
    %v2208 = vunpack.c.l.b16 %v1434
    %v2209 = vunpack.c.h.b16 %v1434
    %v2210 = vunpack.c.l.b16 %v1435
    %v2211 = vunpack.c.h.b16 %v1435
    %v2212 = vunpack.c.l.b16 %v1436
    %v2213 = vunpack.c.h.b16 %v1436
    %v2214 = vunpack.c.l.b16 %v1437
    %v2215 = vunpack.c.h.b16 %v1437
    %v2216 = vunpack.c.l.b16 %v1438
    %v2217 = vunpack.c.h.b16 %v1438
    %v2218 = vunpack.c.l.b16 %v1439
    %v2219 = vunpack.c.h.b16 %v1439
    %v2220 = vunpack.c.l.b16 %v1440
    %v2221 = vunpack.c.h.b16 %v1440
    %v2222 = vunpack.c.l.b16 %v1441
    %v2223 = vunpack.c.h.b16 %v1441
    %v2224 = vunpack.c.l.b16 %v1442
    %v2225 = vunpack.c.h.b16 %v1442
    %v2226 = vunpack.c.l.b16 %v1443
    %v2227 = vunpack.c.h.b16 %v1443
    %v2228 = vunpack.c.l.b16 %v1444
    %v2229 = vunpack.c.h.b16 %v1444
    %v2230 = vunpack.c.l.b16 %v1445
    %v2231 = vunpack.c.h.b16 %v1445
    %v2232 = vunpack.c.l.b16 %v1446
    %v2233 = vunpack.c.h.b16 %v1446
    %v2234 = vunpack.c.l.b16 %v1447
    %v2235 = vunpack.c.h.b16 %v1447
    %v2236 = vunpack.c.l.b16 %v1448
    %v2237 = vunpack.c.h.b16 %v1448
    %v2238 = vunpack.c.l.b16 %v1449
    %v2239 = vunpack.c.h.b16 %v1449
    %v2240 = vpack.c.b16 %v1732, %v1728
    %v2241 = vpack.c.b16 %v1733, %v1729
    %v2242 = vpack.c.b16 %v1734, %v1730
    %v2243 = vpack.c.b16 %v1735, %v1731
    %v2244 = vpack.c.b16 %v1740, %v1736
    %v2245 = vpack.c.b16 %v1741, %v1737
    %v2246 = vpack.c.b16 %v1742, %v1738
    %v2247 = vpack.c.b16 %v1743, %v1739
    %v2248 = vpack.c.b16 %v1748, %v1744
    %v2249 = vpack.c.b16 %v1749, %v1745
    %v2250 = vpack.c.b16 %v1750, %v1746
    %v2251 = vpack.c.b16 %v1751, %v1747
    %v2252 = vpack.c.b16 %v1756, %v1752
    %v2253 = vpack.c.b16 %v1757, %v1753
    %v2254 = vpack.c.b16 %v1758, %v1754
    %v2255 = vpack.c.b16 %v1759, %v1755
    %v2256 = vpack.c.b16 %v1764, %v1760
    %v2257 = vpack.c.b16 %v1765, %v1761
    %v2258 = vpack.c.b16 %v1766, %v1762
    %v2259 = vpack.c.b16 %v1767, %v1763
    %v2260 = vpack.c.b16 %v1772, %v1768
    %v2261 = vpack.c.b16 %v1773, %v1769
    %v2262 = vpack.c.b16 %v1774, %v1770
    %v2263 = vpack.c.b16 %v1775, %v1771
    %v2264 = vpack.c.b16 %v1780, %v1776
    %v2265 = vpack.c.b16 %v1781, %v1777
    %v2266 = vpack.c.b16 %v1782, %v1778
    %v2267 = vpack.c.b16 %v1783, %v1779
    %v2268 = vpack.c.b16 %v1788, %v1784
    %v2269 = vpack.c.b16 %v1789, %v1785
    %v2270 = vpack.c.b16 %v1790, %v1786
    %v2271 = vpack.c.b16 %v1791, %v1787
    %v2272 = vpack.c.b16 %v1796, %v1792
    %v2273 = vpack.c.b16 %v1797, %v1793
    %v2274 = vpack.c.b16 %v1798, %v1794
    %v2275 = vpack.c.b16 %v1799, %v1795
    %v2276 = vpack.c.b16 %v1804, %v1800
    %v2277 = vpack.c.b16 %v1805, %v1801
    %v2278 = vpack.c.b16 %v1806, %v1802
    %v2279 = vpack.c.b16 %v1807, %v1803
    %v2280 = vpack.c.b16 %v1812, %v1808
    %v2281 = vpack.c.b16 %v1813, %v1809
    %v2282 = vpack.c.b16 %v1814, %v1810
    %v2283 = vpack.c.b16 %v1815, %v1811
    %v2284 = vpack.c.b16 %v1820, %v1816
    %v2285 = vpack.c.b16 %v1821, %v1817
    %v2286 = vpack.c.b16 %v1822, %v1818
    %v2287 = vpack.c.b16 %v1823, %v1819
    %v2288 = vpack.c.b16 %v1828, %v1824
    %v2289 = vpack.c.b16 %v1829, %v1825
    %v2290 = vpack.c.b16 %v1830, %v1826
    %v2291 = vpack.c.b16 %v1831, %v1827
    %v2292 = vpack.c.b16 %v1836, %v1832
    %v2293 = vpack.c.b16 %v1837, %v1833
    %v2294 = vpack.c.b16 %v1838, %v1834
    %v2295 = vpack.c.b16 %v1839, %v1835
    %v2296 = vpack.c.b16 %v1844, %v1840
    %v2297 = vpack.c.b16 %v1845, %v1841
    %v2298 = vpack.c.b16 %v1846, %v1842
    %v2299 = vpack.c.b16 %v1847, %v1843
    %v2300 = vpack.c.b16 %v1852, %v1848
    %v2301 = vpack.c.b16 %v1853, %v1849
    %v2302 = vpack.c.b16 %v1854, %v1850
    %v2303 = vpack.c.b16 %v1855, %v1851
    %v2304 = vpack.c.b16 %v1860, %v1856
    %v2305 = vpack.c.b16 %v1861, %v1857
    %v2306 = vpack.c.b16 %v1862, %v1858
    %v2307 = vpack.c.b16 %v1863, %v1859
    %v2308 = vpack.c.b16 %v1868, %v1864
    %v2309 = vpack.c.b16 %v1869, %v1865
    %v2310 = vpack.c.b16 %v1870, %v1866
    %v2311 = vpack.c.b16 %v1871, %v1867
    %v2312 = vpack.c.b16 %v1876, %v1872
    %v2313 = vpack.c.b16 %v1877, %v1873
    %v2314 = vpack.c.b16 %v1878, %v1874
    %v2315 = vpack.c.b16 %v1879, %v1875
    %v2316 = vpack.c.b16 %v1884, %v1880
    %v2317 = vpack.c.b16 %v1885, %v1881
    %v2318 = vpack.c.b16 %v1886, %v1882
    %v2319 = vpack.c.b16 %v1887, %v1883
    %v2320 = vpack.c.b16 %v1892, %v1888
    %v2321 = vpack.c.b16 %v1893, %v1889
    %v2322 = vpack.c.b16 %v1894, %v1890
    %v2323 = vpack.c.b16 %v1895, %v1891
    %v2324 = vpack.c.b16 %v1900, %v1896
    %v2325 = vpack.c.b16 %v1901, %v1897
    %v2326 = vpack.c.b16 %v1902, %v1898
    %v2327 = vpack.c.b16 %v1903, %v1899
    %v2328 = vpack.c.b16 %v1908, %v1904
    %v2329 = vpack.c.b16 %v1909, %v1905
    %v2330 = vpack.c.b16 %v1910, %v1906
    %v2331 = vpack.c.b16 %v1911, %v1907
    %v2332 = vpack.c.b16 %v1916, %v1912
    %v2333 = vpack.c.b16 %v1917, %v1913
    %v2334 = vpack.c.b16 %v1918, %v1914
    %v2335 = vpack.c.b16 %v1919, %v1915
    %v2336 = vpack.c.b16 %v1924, %v1920
    %v2337 = vpack.c.b16 %v1925, %v1921
    %v2338 = vpack.c.b16 %v1926, %v1922
    %v2339 = vpack.c.b16 %v1927, %v1923
    %v2340 = vpack.c.b16 %v1932, %v1928
    %v2341 = vpack.c.b16 %v1933, %v1929
    %v2342 = vpack.c.b16 %v1934, %v1930
    %v2343 = vpack.c.b16 %v1935, %v1931
    %v2344 = vpack.c.b16 %v1940, %v1936
    %v2345 = vpack.c.b16 %v1941, %v1937
    %v2346 = vpack.c.b16 %v1942, %v1938
    %v2347 = vpack.c.b16 %v1943, %v1939
    %v2348 = vpack.c.b16 %v1948, %v1944
    %v2349 = vpack.c.b16 %v1949, %v1945
    %v2350 = vpack.c.b16 %v1950, %v1946
    %v2351 = vpack.c.b16 %v1951, %v1947
    %v2352 = vpack.c.b16 %v1956, %v1952
    %v2353 = vpack.c.b16 %v1957, %v1953
    %v2354 = vpack.c.b16 %v1958, %v1954
    %v2355 = vpack.c.b16 %v1959, %v1955
    %v2356 = vpack.c.b16 %v1964, %v1960
    %v2357 = vpack.c.b16 %v1965, %v1961
    %v2358 = vpack.c.b16 %v1966, %v1962
    %v2359 = vpack.c.b16 %v1967, %v1963
    %v2360 = vpack.c.b16 %v1972, %v1968
    %v2361 = vpack.c.b16 %v1973, %v1969
    %v2362 = vpack.c.b16 %v1974, %v1970
    %v2363 = vpack.c.b16 %v1975, %v1971
    %v2364 = vpack.c.b16 %v1980, %v1976
    %v2365 = vpack.c.b16 %v1981, %v1977
    %v2366 = vpack.c.b16 %v1982, %v1978
    %v2367 = vpack.c.b16 %v1983, %v1979
    %v2368 = vpack.c.b16 %v1988, %v1984
    %v2369 = vpack.c.b16 %v1989, %v1985
    %v2370 = vpack.c.b16 %v1990, %v1986
    %v2371 = vpack.c.b16 %v1991, %v1987
    %v2372 = vpack.c.b16 %v1996, %v1992
    %v2373 = vpack.c.b16 %v1997, %v1993
    %v2374 = vpack.c.b16 %v1998, %v1994
    %v2375 = vpack.c.b16 %v1999, %v1995
    %v2376 = vpack.c.b16 %v2004, %v2000
    %v2377 = vpack.c.b16 %v2005, %v2001
    %v2378 = vpack.c.b16 %v2006, %v2002
    %v2379 = vpack.c.b16 %v2007, %v2003
    %v2380 = vpack.c.b16 %v2012, %v2008
    %v2381 = vpack.c.b16 %v2013, %v2009
    %v2382 = vpack.c.b16 %v2014, %v2010
    %v2383 = vpack.c.b16 %v2015, %v2011
    %v2384 = vpack.c.b16 %v2020, %v2016
    %v2385 = vpack.c.b16 %v2021, %v2017
    %v2386 = vpack.c.b16 %v2022, %v2018
    %v2387 = vpack.c.b16 %v2023, %v2019
    %v2388 = vpack.c.b16 %v2028, %v2024
    %v2389 = vpack.c.b16 %v2029, %v2025
    %v2390 = vpack.c.b16 %v2030, %v2026
    %v2391 = vpack.c.b16 %v2031, %v2027
    %v2392 = vpack.c.b16 %v2036, %v2032
    %v2393 = vpack.c.b16 %v2037, %v2033
    %v2394 = vpack.c.b16 %v2038, %v2034
    %v2395 = vpack.c.b16 %v2039, %v2035
    %v2396 = vpack.c.b16 %v2044, %v2040
    %v2397 = vpack.c.b16 %v2045, %v2041
    %v2398 = vpack.c.b16 %v2046, %v2042
    %v2399 = vpack.c.b16 %v2047, %v2043
    %v2400 = vpack.c.b16 %v2052, %v2048
    %v2401 = vpack.c.b16 %v2053, %v2049
    %v2402 = vpack.c.b16 %v2054, %v2050
    %v2403 = vpack.c.b16 %v2055, %v2051
    %v2404 = vpack.c.b16 %v2060, %v2056
    %v2405 = vpack.c.b16 %v2061, %v2057
    %v2406 = vpack.c.b16 %v2062, %v2058
    %v2407 = vpack.c.b16 %v2063, %v2059
    %v2408 = vpack.c.b16 %v2068, %v2064
    %v2409 = vpack.c.b16 %v2069, %v2065
    %v2410 = vpack.c.b16 %v2070, %v2066
    %v2411 = vpack.c.b16 %v2071, %v2067
    %v2412 = vpack.c.b16 %v2076, %v2072
    %v2413 = vpack.c.b16 %v2077, %v2073
    %v2414 = vpack.c.b16 %v2078, %v2074
    %v2415 = vpack.c.b16 %v2079, %v2075
    %v2416 = vpack.c.b16 %v2084, %v2080
    %v2417 = vpack.c.b16 %v2085, %v2081
    %v2418 = vpack.c.b16 %v2086, %v2082
    %v2419 = vpack.c.b16 %v2087, %v2083
    %v2420 = vpack.c.b16 %v2092, %v2088
    %v2421 = vpack.c.b16 %v2093, %v2089
    %v2422 = vpack.c.b16 %v2094, %v2090
    %v2423 = vpack.c.b16 %v2095, %v2091
    %v2424 = vpack.c.b16 %v2100, %v2096
    %v2425 = vpack.c.b16 %v2101, %v2097
    %v2426 = vpack.c.b16 %v2102, %v2098
    %v2427 = vpack.c.b16 %v2103, %v2099
    %v2428 = vpack.c.b16 %v2108, %v2104
    %v2429 = vpack.c.b16 %v2109, %v2105
    %v2430 = vpack.c.b16 %v2110, %v2106
    %v2431 = vpack.c.b16 %v2111, %v2107
    %v2432 = vpack.c.b16 %v2116, %v2112
    %v2433 = vpack.c.b16 %v2117, %v2113
    %v2434 = vpack.c.b16 %v2118, %v2114
    %v2435 = vpack.c.b16 %v2119, %v2115
    %v2436 = vpack.c.b16 %v2124, %v2120
    %v2437 = vpack.c.b16 %v2125, %v2121
    %v2438 = vpack.c.b16 %v2126, %v2122
    %v2439 = vpack.c.b16 %v2127, %v2123
    %v2440 = vpack.c.b16 %v2132, %v2128
    %v2441 = vpack.c.b16 %v2133, %v2129
    %v2442 = vpack.c.b16 %v2134, %v2130
    %v2443 = vpack.c.b16 %v2135, %v2131
    %v2444 = vpack.c.b16 %v2140, %v2136
    %v2445 = vpack.c.b16 %v2141, %v2137
    %v2446 = vpack.c.b16 %v2142, %v2138
    %v2447 = vpack.c.b16 %v2143, %v2139
    %v2448 = vpack.c.b16 %v2148, %v2144
    %v2449 = vpack.c.b16 %v2149, %v2145
    %v2450 = vpack.c.b16 %v2150, %v2146
    %v2451 = vpack.c.b16 %v2151, %v2147
    %v2452 = vpack.c.b16 %v2156, %v2152
    %v2453 = vpack.c.b16 %v2157, %v2153
    %v2454 = vpack.c.b16 %v2158, %v2154
    %v2455 = vpack.c.b16 %v2159, %v2155
    %v2456 = vpack.c.b16 %v2164, %v2160
    %v2457 = vpack.c.b16 %v2165, %v2161
    %v2458 = vpack.c.b16 %v2166, %v2162
    %v2459 = vpack.c.b16 %v2167, %v2163
    %v2460 = vpack.c.b16 %v2172, %v2168
    %v2461 = vpack.c.b16 %v2173, %v2169
    %v2462 = vpack.c.b16 %v2174, %v2170
    %v2463 = vpack.c.b16 %v2175, %v2171
    %v2464 = vpack.c.b16 %v2180, %v2176
    %v2465 = vpack.c.b16 %v2181, %v2177
    %v2466 = vpack.c.b16 %v2182, %v2178
    %v2467 = vpack.c.b16 %v2183, %v2179
    %v2468 = vpack.c.b16 %v2188, %v2184
    %v2469 = vpack.c.b16 %v2189, %v2185
    %v2470 = vpack.c.b16 %v2190, %v2186
    %v2471 = vpack.c.b16 %v2191, %v2187
    %v2472 = vpack.c.b16 %v2196, %v2192
    %v2473 = vpack.c.b16 %v2197, %v2193
    %v2474 = vpack.c.b16 %v2198, %v2194
    %v2475 = vpack.c.b16 %v2199, %v2195
    %v2476 = vpack.c.b16 %v2204, %v2200
    %v2477 = vpack.c.b16 %v2205, %v2201
    %v2478 = vpack.c.b16 %v2206, %v2202
    %v2479 = vpack.c.b16 %v2207, %v2203
    %v2480 = vpack.c.b16 %v2212, %v2208
    %v2481 = vpack.c.b16 %v2213, %v2209
    %v2482 = vpack.c.b16 %v2214, %v2210
    %v2483 = vpack.c.b16 %v2215, %v2211
    %v2484 = vpack.c.b16 %v2220, %v2216
    %v2485 = vpack.c.b16 %v2221, %v2217
    %v2486 = vpack.c.b16 %v2222, %v2218
    %v2487 = vpack.c.b16 %v2223, %v2219
    %v2488 = vpack.c.b16 %v2228, %v2224
    %v2489 = vpack.c.b16 %v2229, %v2225
    %v2490 = vpack.c.b16 %v2230, %v2226
    %v2491 = vpack.c.b16 %v2231, %v2227
    %v2492 = vpack.c.b16 %v2236, %v2232
    %v2493 = vpack.c.b16 %v2237, %v2233
    %v2494 = vpack.c.b16 %v2238, %v2234
    %v2495 = vpack.c.b16 %v2239, %v2235
    %2752 = vmatprep.subr.bf16.mxu0 %v2241
    %2753 = vmatpush1.bf16.msra.mxu0 %v2240
    %2754 = vmatprep.subr.bf16.mxu0 %v2245
    %2755 = vmatpush1.bf16.msra.mxu0 %v2244
    %2756 = vmatprep.subr.bf16.mxu0 %v2249
    %2757 = vmatpush1.bf16.msra.mxu0 %v2248
    %2758 = vmatprep.subr.bf16.mxu0 %v2253
    %2759 = vmatpush1.bf16.msra.mxu0 %v2252
    %2760 = vmatprep.subr.bf16.mxu0 %v2257
    %2761 = vmatpush1.bf16.msra.mxu0 %v2256
    %2762 = vmatprep.subr.bf16.mxu0 %v2261
    %2763 = vmatpush1.bf16.msra.mxu0 %v2260
    %2764 = vmatprep.subr.bf16.mxu0 %v2265
    %2765 = vmatpush1.bf16.msra.mxu0 %v2264
    %2766 = vmatprep.subr.bf16.mxu0 %v2269
    %2767 = vmatpush1.bf16.msra.mxu0 %v2268
    %2768 = vmatprep.subr.bf16.mxu0 %v2273
    %2769 = vmatpush1.bf16.msra.mxu0 %v2272
    %2770 = vmatprep.subr.bf16.mxu0 %v2277
    %2771 = vmatpush1.bf16.msra.mxu0 %v2276
    %2772 = vmatprep.subr.bf16.mxu0 %v2281
    %2773 = vmatpush1.bf16.msra.mxu0 %v2280
    %2774 = vmatprep.subr.bf16.mxu0 %v2285
    %2775 = vmatpush1.bf16.msra.mxu0 %v2284
    %2776 = vmatprep.subr.bf16.mxu0 %v2289
    %2777 = vmatpush1.bf16.msra.mxu0 %v2288
    %2778 = vmatprep.subr.bf16.mxu0 %v2293
    %2779 = vmatpush1.bf16.msra.mxu0 %v2292
    %2780 = vmatprep.subr.bf16.mxu0 %v2297
    %2781 = vmatpush1.bf16.msra.mxu0 %v2296
    %2782 = vmatprep.subr.bf16.mxu0 %v2301
    %2783 = vmatpush1.bf16.msra.mxu0 %v2300
    %2784 = vmatprep.mubr.bf16.mxu0 %v1187
    %2785 = vmatmul.mubr.bf16.gmra.mrb[0].mxu0 %v1186
    %v2786 = vpop.f32.mrb[0].mxu0
    %v2787 = vadd.f32 %v1455, %v2786
    %v2788 = vpop.f32.mrb[0].mxu0
    %v2789 = vadd.f32 %v1459, %v2788
    %v2790 = vpop.f32.mrb[0].mxu0
    %v2791 = vpop.f32.mrb[0].mxu0
    %2792 = vdwg.mxu0
    %2793 = vmatprep.subr.bf16.mxu0 %v2305
    %2794 = vmatpush1.bf16.msra.mxu0 %v2304
    %2795 = vmatprep.subr.bf16.mxu0 %v2309
    %2796 = vmatpush1.bf16.msra.mxu0 %v2308
    %2797 = vmatprep.subr.bf16.mxu0 %v2313
    %2798 = vmatpush1.bf16.msra.mxu0 %v2312
    %2799 = vmatprep.subr.bf16.mxu0 %v2317
    %2800 = vmatpush1.bf16.msra.mxu0 %v2316
    %2801 = vmatprep.subr.bf16.mxu0 %v2321
    %2802 = vmatpush1.bf16.msra.mxu0 %v2320
    %2803 = vmatprep.subr.bf16.mxu0 %v2325
    %2804 = vmatpush1.bf16.msra.mxu0 %v2324
    %2805 = vmatprep.subr.bf16.mxu0 %v2329
    %2806 = vmatpush1.bf16.msra.mxu0 %v2328
    %2807 = vmatprep.subr.bf16.mxu0 %v2333
    %2808 = vmatpush1.bf16.msra.mxu0 %v2332
    %2809 = vmatprep.subr.bf16.mxu0 %v2337
    %2810 = vmatpush1.bf16.msra.mxu0 %v2336
    %2811 = vmatprep.subr.bf16.mxu0 %v2341
    %2812 = vmatpush1.bf16.msra.mxu0 %v2340
    %2813 = vmatprep.subr.bf16.mxu0 %v2345
    %2814 = vmatpush1.bf16.msra.mxu0 %v2344
    %2815 = vmatprep.subr.bf16.mxu0 %v2349
    %2816 = vmatpush1.bf16.msra.mxu0 %v2348
    %2817 = vmatprep.subr.bf16.mxu0 %v2353
    %2818 = vmatpush1.bf16.msra.mxu0 %v2352
    %2819 = vmatprep.subr.bf16.mxu0 %v2357
    %2820 = vmatpush1.bf16.msra.mxu0 %v2356
    %2821 = vmatprep.subr.bf16.mxu0 %v2361
    %2822 = vmatpush1.bf16.msra.mxu0 %v2360
    %2823 = vmatprep.subr.bf16.mxu0 %v2365
    %2824 = vmatpush1.bf16.msra.mxu0 %v2364
    %2825 = vmatprep.mubr.bf16.mxu0 %v1189
    %2826 = vmatmul.mubr.bf16.gmra.mrb[0].mxu0 %v1188
    %v2827 = vpop.f32.mrb[0].mxu0
    %v2828 = vadd.f32 %v2787, %v2827
    %v2829 = vpop.f32.mrb[0].mxu0
    %v2830 = vadd.f32 %v2789, %v2829
    %v2831 = vpop.f32.mrb[0].mxu0
    %v2832 = vpop.f32.mrb[0].mxu0
    %2833 = vdwg.mxu0
    %2834 = vmatprep.subr.bf16.mxu0 %v2369
    %2835 = vmatpush1.bf16.msra.mxu0 %v2368
    %2836 = vmatprep.subr.bf16.mxu0 %v2373
    %2837 = vmatpush1.bf16.msra.mxu0 %v2372
    %2838 = vmatprep.subr.bf16.mxu0 %v2377
    %2839 = vmatpush1.bf16.msra.mxu0 %v2376
    %2840 = vmatprep.subr.bf16.mxu0 %v2381
    %2841 = vmatpush1.bf16.msra.mxu0 %v2380
    %2842 = vmatprep.subr.bf16.mxu0 %v2385
    %2843 = vmatpush1.bf16.msra.mxu0 %v2384
    %2844 = vmatprep.subr.bf16.mxu0 %v2389
    %2845 = vmatpush1.bf16.msra.mxu0 %v2388
    %2846 = vmatprep.subr.bf16.mxu0 %v2393
    %2847 = vmatpush1.bf16.msra.mxu0 %v2392
    %2848 = vmatprep.subr.bf16.mxu0 %v2397
    %2849 = vmatpush1.bf16.msra.mxu0 %v2396
    %2850 = vmatprep.subr.bf16.mxu0 %v2401
    %2851 = vmatpush1.bf16.msra.mxu0 %v2400
    %2852 = vmatprep.subr.bf16.mxu0 %v2405
    %2853 = vmatpush1.bf16.msra.mxu0 %v2404
    %2854 = vmatprep.subr.bf16.mxu0 %v2409
    %2855 = vmatpush1.bf16.msra.mxu0 %v2408
    %2856 = vmatprep.subr.bf16.mxu0 %v2413
    %2857 = vmatpush1.bf16.msra.mxu0 %v2412
    %2858 = vmatprep.subr.bf16.mxu0 %v2417
    %2859 = vmatpush1.bf16.msra.mxu0 %v2416
    %2860 = vmatprep.subr.bf16.mxu0 %v2421
    %2861 = vmatpush1.bf16.msra.mxu0 %v2420
    %2862 = vmatprep.subr.bf16.mxu0 %v2425
    %2863 = vmatpush1.bf16.msra.mxu0 %v2424
    %2864 = vmatprep.subr.bf16.mxu0 %v2429
    %2865 = vmatpush1.bf16.msra.mxu0 %v2428
    %2866 = vmatprep.mubr.bf16.mxu0 %v1191
    %2867 = vmatmul.mubr.bf16.gmra.mrb[0].mxu0 %v1190
    %v2868 = vpop.f32.mrb[0].mxu0
    %v2869 = vadd.f32 %v2828, %v2868
    %v2870 = vpop.f32.mrb[0].mxu0
    %v2871 = vadd.f32 %v2830, %v2870
    %v2872 = vpop.f32.mrb[0].mxu0
    %v2873 = vpop.f32.mrb[0].mxu0
    %2874 = vdwg.mxu0
    %2875 = vmatprep.subr.bf16.mxu0 %v2433
    %2876 = vmatpush1.bf16.msra.mxu0 %v2432
    %2877 = vmatprep.subr.bf16.mxu0 %v2437
    %2878 = vmatpush1.bf16.msra.mxu0 %v2436
    %2879 = vmatprep.subr.bf16.mxu0 %v2441
    %2880 = vmatpush1.bf16.msra.mxu0 %v2440
    %2881 = vmatprep.subr.bf16.mxu0 %v2445
    %2882 = vmatpush1.bf16.msra.mxu0 %v2444
    %2883 = vmatprep.subr.bf16.mxu0 %v2449
    %2884 = vmatpush1.bf16.msra.mxu0 %v2448
    %2885 = vmatprep.subr.bf16.mxu0 %v2453
    %2886 = vmatpush1.bf16.msra.mxu0 %v2452
    %2887 = vmatprep.subr.bf16.mxu0 %v2457
    %2888 = vmatpush1.bf16.msra.mxu0 %v2456
    %2889 = vmatprep.subr.bf16.mxu0 %v2461
    %2890 = vmatpush1.bf16.msra.mxu0 %v2460
    %2891 = vmatprep.subr.bf16.mxu0 %v2465
    %2892 = vmatpush1.bf16.msra.mxu0 %v2464
    %2893 = vmatprep.subr.bf16.mxu0 %v2469
    %2894 = vmatpush1.bf16.msra.mxu0 %v2468
    %2895 = vmatprep.subr.bf16.mxu0 %v2473
    %2896 = vmatpush1.bf16.msra.mxu0 %v2472
    %2897 = vmatprep.subr.bf16.mxu0 %v2477
    %2898 = vmatpush1.bf16.msra.mxu0 %v2476
    %2899 = vmatprep.subr.bf16.mxu0 %v2481
    %2900 = vmatpush1.bf16.msra.mxu0 %v2480
    %2901 = vmatprep.subr.bf16.mxu0 %v2485
    %2902 = vmatpush1.bf16.msra.mxu0 %v2484
    %2903 = vmatprep.subr.bf16.mxu0 %v2489
    %2904 = vmatpush1.bf16.msra.mxu0 %v2488
    %2905 = vmatprep.subr.bf16.mxu0 %v2493
    %2906 = vmatpush1.bf16.msra.mxu0 %v2492
    %2907 = vmatprep.mubr.bf16.mxu0 %v1193
    %2908 = vmatmul.mubr.bf16.gmra.mrb[0].mxu0 %v1192
    %v2909 = vpop.f32.mrb[0].mxu0
    %v2910 = vadd.f32 %v2869, %v2909
    %v2911 = vpop.f32.mrb[0].mxu0
    %v2912 = vadd.f32 %v2871, %v2911
    %v2913 = vpop.f32.mrb[0].mxu0
    %v2914 = vpop.f32.mrb[0].mxu0
    %2915 = vdwg.mxu0
    %2916 = vmatprep.subr.bf16.mxu0 %v2243
    %2917 = vmatpush1.bf16.msra.mxu0 %v2242
    %2918 = vmatprep.subr.bf16.mxu0 %v2247
    %2919 = vmatpush1.bf16.msra.mxu0 %v2246
    %2920 = vmatprep.subr.bf16.mxu0 %v2251
    %2921 = vmatpush1.bf16.msra.mxu0 %v2250
    %2922 = vmatprep.subr.bf16.mxu0 %v2255
    %2923 = vmatpush1.bf16.msra.mxu0 %v2254
    %2924 = vmatprep.subr.bf16.mxu0 %v2259
    %2925 = vmatpush1.bf16.msra.mxu0 %v2258
    %2926 = vmatprep.subr.bf16.mxu0 %v2263
    %2927 = vmatpush1.bf16.msra.mxu0 %v2262
    %2928 = vmatprep.subr.bf16.mxu0 %v2267
    %2929 = vmatpush1.bf16.msra.mxu0 %v2266
    %2930 = vmatprep.subr.bf16.mxu0 %v2271
    %2931 = vmatpush1.bf16.msra.mxu0 %v2270
    %2932 = vmatprep.subr.bf16.mxu0 %v2275
    %2933 = vmatpush1.bf16.msra.mxu0 %v2274
    %2934 = vmatprep.subr.bf16.mxu0 %v2279
    %2935 = vmatpush1.bf16.msra.mxu0 %v2278
    %2936 = vmatprep.subr.bf16.mxu0 %v2283
    %2937 = vmatpush1.bf16.msra.mxu0 %v2282
    %2938 = vmatprep.subr.bf16.mxu0 %v2287
    %2939 = vmatpush1.bf16.msra.mxu0 %v2286
    %2940 = vmatprep.subr.bf16.mxu0 %v2291
    %2941 = vmatpush1.bf16.msra.mxu0 %v2290
    %2942 = vmatprep.subr.bf16.mxu0 %v2295
    %2943 = vmatpush1.bf16.msra.mxu0 %v2294
    %2944 = vmatprep.subr.bf16.mxu0 %v2299
    %2945 = vmatpush1.bf16.msra.mxu0 %v2298
    %2946 = vmatprep.subr.bf16.mxu0 %v2303
    %2947 = vmatpush1.bf16.msra.mxu0 %v2302
    %2948 = vmatprep.mubr.bf16.mxu0 %v1187
    %2949 = vmatmul.mubr.bf16.gmra.mrb[0].mxu0 %v1186
    %v2950 = vpop.f32.mrb[0].mxu0
    %v2951 = vadd.f32 %v1463, %v2950
    %v2952 = vpop.f32.mrb[0].mxu0
    %v2953 = vadd.f32 %v1467, %v2952
    %v2954 = vpop.f32.mrb[0].mxu0
    %v2955 = vpop.f32.mrb[0].mxu0
    %2956 = vdwg.mxu0
    %2957 = vmatprep.subr.bf16.mxu0 %v2307
    %2958 = vmatpush1.bf16.msra.mxu0 %v2306
    %2959 = vmatprep.subr.bf16.mxu0 %v2311
    %2960 = vmatpush1.bf16.msra.mxu0 %v2310
    %2961 = vmatprep.subr.bf16.mxu0 %v2315
    %2962 = vmatpush1.bf16.msra.mxu0 %v2314
    %2963 = vmatprep.subr.bf16.mxu0 %v2319
    %2964 = vmatpush1.bf16.msra.mxu0 %v2318
    %2965 = vmatprep.subr.bf16.mxu0 %v2323
    %2966 = vmatpush1.bf16.msra.mxu0 %v2322
    %2967 = vmatprep.subr.bf16.mxu0 %v2327
    %2968 = vmatpush1.bf16.msra.mxu0 %v2326
    %2969 = vmatprep.subr.bf16.mxu0 %v2331
    %2970 = vmatpush1.bf16.msra.mxu0 %v2330
    %2971 = vmatprep.subr.bf16.mxu0 %v2335
    %2972 = vmatpush1.bf16.msra.mxu0 %v2334
    %2973 = vmatprep.subr.bf16.mxu0 %v2339
    %2974 = vmatpush1.bf16.msra.mxu0 %v2338
    %2975 = vmatprep.subr.bf16.mxu0 %v2343
    %2976 = vmatpush1.bf16.msra.mxu0 %v2342
    %2977 = vmatprep.subr.bf16.mxu0 %v2347
    %2978 = vmatpush1.bf16.msra.mxu0 %v2346
    %2979 = vmatprep.subr.bf16.mxu0 %v2351
    %2980 = vmatpush1.bf16.msra.mxu0 %v2350
    %2981 = vmatprep.subr.bf16.mxu0 %v2355
    %2982 = vmatpush1.bf16.msra.mxu0 %v2354
    %2983 = vmatprep.subr.bf16.mxu0 %v2359
    %2984 = vmatpush1.bf16.msra.mxu0 %v2358
    %2985 = vmatprep.subr.bf16.mxu0 %v2363
    %2986 = vmatpush1.bf16.msra.mxu0 %v2362
    %2987 = vmatprep.subr.bf16.mxu0 %v2367
    %2988 = vmatpush1.bf16.msra.mxu0 %v2366
    %2989 = vmatprep.mubr.bf16.mxu0 %v1189
    %2990 = vmatmul.mubr.bf16.gmra.mrb[0].mxu0 %v1188
    %v2991 = vpop.f32.mrb[0].mxu0
    %v2992 = vadd.f32 %v2951, %v2991
    %v2993 = vpop.f32.mrb[0].mxu0
    %v2994 = vadd.f32 %v2953, %v2993
    %v2995 = vpop.f32.mrb[0].mxu0
    %v2996 = vpop.f32.mrb[0].mxu0
    %2997 = vdwg.mxu0
    %2998 = vmatprep.subr.bf16.mxu0 %v2371
    %2999 = vmatpush1.bf16.msra.mxu0 %v2370
    %3000 = vmatprep.subr.bf16.mxu0 %v2375
    %3001 = vmatpush1.bf16.msra.mxu0 %v2374
    %3002 = vmatprep.subr.bf16.mxu0 %v2379
    %3003 = vmatpush1.bf16.msra.mxu0 %v2378
    %3004 = vmatprep.subr.bf16.mxu0 %v2383
    %3005 = vmatpush1.bf16.msra.mxu0 %v2382
    %3006 = vmatprep.subr.bf16.mxu0 %v2387
    %3007 = vmatpush1.bf16.msra.mxu0 %v2386
    %3008 = vmatprep.subr.bf16.mxu0 %v2391
    %3009 = vmatpush1.bf16.msra.mxu0 %v2390
    %3010 = vmatprep.subr.bf16.mxu0 %v2395
    %3011 = vmatpush1.bf16.msra.mxu0 %v2394
    %3012 = vmatprep.subr.bf16.mxu0 %v2399
    %3013 = vmatpush1.bf16.msra.mxu0 %v2398
    %3014 = vmatprep.subr.bf16.mxu0 %v2403
    %3015 = vmatpush1.bf16.msra.mxu0 %v2402
    %3016 = vmatprep.subr.bf16.mxu0 %v2407
    %3017 = vmatpush1.bf16.msra.mxu0 %v2406
    %3018 = vmatprep.subr.bf16.mxu0 %v2411
    %3019 = vmatpush1.bf16.msra.mxu0 %v2410
    %3020 = vmatprep.subr.bf16.mxu0 %v2415
    %3021 = vmatpush1.bf16.msra.mxu0 %v2414
    %3022 = vmatprep.subr.bf16.mxu0 %v2419
    %3023 = vmatpush1.bf16.msra.mxu0 %v2418
    %3024 = vmatprep.subr.bf16.mxu0 %v2423
    %3025 = vmatpush1.bf16.msra.mxu0 %v2422
    %3026 = vmatprep.subr.bf16.mxu0 %v2427
    %3027 = vmatpush1.bf16.msra.mxu0 %v2426
    %3028 = vmatprep.subr.bf16.mxu0 %v2431
    %3029 = vmatpush1.bf16.msra.mxu0 %v2430
    %3030 = vmatprep.mubr.bf16.mxu0 %v1191
    %3031 = vmatmul.mubr.bf16.gmra.mrb[0].mxu0 %v1190
    %v3032 = vpop.f32.mrb[0].mxu0
    %v3033 = vadd.f32 %v2992, %v3032
    %v3034 = vpop.f32.mrb[0].mxu0
    %v3035 = vadd.f32 %v2994, %v3034
    %v3036 = vpop.f32.mrb[0].mxu0
    %v3037 = vpop.f32.mrb[0].mxu0
    %3038 = vdwg.mxu0
    %3039 = vmatprep.subr.bf16.mxu0 %v2435
    %3040 = vmatpush1.bf16.msra.mxu0 %v2434
    %3041 = vmatprep.subr.bf16.mxu0 %v2439
    %3042 = vmatpush1.bf16.msra.mxu0 %v2438
    %3043 = vmatprep.subr.bf16.mxu0 %v2443
    %3044 = vmatpush1.bf16.msra.mxu0 %v2442
    %3045 = vmatprep.subr.bf16.mxu0 %v2447
    %3046 = vmatpush1.bf16.msra.mxu0 %v2446
    %3047 = vmatprep.subr.bf16.mxu0 %v2451
    %3048 = vmatpush1.bf16.msra.mxu0 %v2450
    %3049 = vmatprep.subr.bf16.mxu0 %v2455
    %3050 = vmatpush1.bf16.msra.mxu0 %v2454
    %3051 = vmatprep.subr.bf16.mxu0 %v2459
    %3052 = vmatpush1.bf16.msra.mxu0 %v2458
    %3053 = vmatprep.subr.bf16.mxu0 %v2463
    %3054 = vmatpush1.bf16.msra.mxu0 %v2462
    %3055 = vmatprep.subr.bf16.mxu0 %v2467
    %3056 = vmatpush1.bf16.msra.mxu0 %v2466
    %3057 = vmatprep.subr.bf16.mxu0 %v2471
    %3058 = vmatpush1.bf16.msra.mxu0 %v2470
    %3059 = vmatprep.subr.bf16.mxu0 %v2475
    %3060 = vmatpush1.bf16.msra.mxu0 %v2474
    %3061 = vmatprep.subr.bf16.mxu0 %v2479
    %3062 = vmatpush1.bf16.msra.mxu0 %v2478
    %3063 = vmatprep.subr.bf16.mxu0 %v2483
    %3064 = vmatpush1.bf16.msra.mxu0 %v2482
    %3065 = vmatprep.subr.bf16.mxu0 %v2487
    %3066 = vmatpush1.bf16.msra.mxu0 %v2486
    %3067 = vmatprep.subr.bf16.mxu0 %v2491
    %3068 = vmatpush1.bf16.msra.mxu0 %v2490
    %3069 = vmatprep.subr.bf16.mxu0 %v2495
    %3070 = vmatpush1.bf16.msra.mxu0 %v2494
    %3071 = vmatprep.mubr.bf16.mxu0 %v1193
    %3072 = vmatmul.mubr.bf16.gmra.mrb[0].mxu0 %v1192
    %v3073 = vpop.f32.mrb[0].mxu0
    %v3074 = vadd.f32 %v3033, %v3073
    %v3075 = vpop.f32.mrb[0].mxu0
    %v3076 = vadd.f32 %v3035, %v3075
    %v3077 = vpop.f32.mrb[0].mxu0
    %v3078 = vpop.f32.mrb[0].mxu0
    %3079 = vdwg.mxu0
    %v3080 = vmax.f32 %v2910, 0.0
    %v3081 = vmax.f32 %v2912, 0.0
    %v3082 = vmax.f32 %v3074, 0.0
    %v3083 = vmax.f32 %v3076, 0.0
    %v3084 = vpack.c.bf16 %v3080, %v3080
    %v3085 = vpack.c.bf16 %v3081, %v3081
    %v3086 = vpack.c.bf16 %v3082, %v3082
    %v3087 = vpack.c.bf16 %v3083, %v3083
    %v3088 = vld [vmem:[%s9] sm:$0xff]
    %v3089 = vld [vmem:[%s9 + $0x8] sm:$0xff]
    %v3090 = vld [vmem:[%s9 + $0x10] sm:$0xff]
    %v3091 = vld [vmem:[%s9 + $0x18] sm:$0xff]
    %v3092 = vld [vmem:[%s9 + $0x20] sm:$0xff]
    %v3093 = vld [vmem:[%s9 + $0x28] sm:$0xff]
    %v3094 = vld [vmem:[%s9 + $0x30] sm:$0xff]
    %v3095 = vld [vmem:[%s9 + $0x38] sm:$0xff]
    %v3096 = vld [vmem:[%s9 + $0x40] sm:$0xff]
    %v3097 = vld [vmem:[%s9 + $0x48] sm:$0xff]
    %v3098 = vld [vmem:[%s9 + $0x50] sm:$0xff]
    %v3099 = vld [vmem:[%s9 + $0x58] sm:$0xff]
    %v3100 = vld [vmem:[%s9 + $0x60] sm:$0xff]
    %v3101 = vld [vmem:[%s9 + $0x68] sm:$0xff]
    %v3102 = vld [vmem:[%s9 + $0x70] sm:$0xff]
    %v3103 = vld [vmem:[%s9 + $0x78] sm:$0xff]
    %v3104 = vld [vmem:[%s9 + $0x80] sm:$0xff]
    %v3105 = vld [vmem:[%s9 + $0x88] sm:$0xff]
    %v3106 = vld [vmem:[%s9 + $0x90] sm:$0xff]
    %v3107 = vld [vmem:[%s9 + $0x98] sm:$0xff]
    %v3108 = vld [vmem:[%s9 + $0xa0] sm:$0xff]
    %v3109 = vld [vmem:[%s9 + $0xa8] sm:$0xff]
    %v3110 = vld [vmem:[%s9 + $0xb0] sm:$0xff]
    %v3111 = vld [vmem:[%s9 + $0xb8] sm:$0xff]
    %v3112 = vld [vmem:[%s9 + $0xc0] sm:$0xff]
    %v3113 = vld [vmem:[%s9 + $0xc8] sm:$0xff]
    %v3114 = vld [vmem:[%s9 + $0xd0] sm:$0xff]
    %v3115 = vld [vmem:[%s9 + $0xd8] sm:$0xff]
    %v3116 = vld [vmem:[%s9 + $0xe0] sm:$0xff]
    %v3117 = vld [vmem:[%s9 + $0xe8] sm:$0xff]
    %v3118 = vld [vmem:[%s9 + $0xf0] sm:$0xff]
    %v3119 = vld [vmem:[%s9 + $0xf8] sm:$0xff]
    %v3120 = vld [vmem:[%s9 + $0x100] sm:$0xff]
    %v3121 = vld [vmem:[%s9 + $0x108] sm:$0xff]
    %v3122 = vld [vmem:[%s9 + $0x110] sm:$0xff]
    %v3123 = vld [vmem:[%s9 + $0x118] sm:$0xff]
    %v3124 = vld [vmem:[%s9 + $0x120] sm:$0xff]
    %v3125 = vld [vmem:[%s9 + $0x128] sm:$0xff]
    %v3126 = vld [vmem:[%s9 + $0x130] sm:$0xff]
    %v3127 = vld [vmem:[%s9 + $0x138] sm:$0xff]
    %v3128 = vld [vmem:[%s9 + $0x140] sm:$0xff]
    %v3129 = vld [vmem:[%s9 + $0x148] sm:$0xff]
    %v3130 = vld [vmem:[%s9 + $0x150] sm:$0xff]
    %v3131 = vld [vmem:[%s9 + $0x158] sm:$0xff]
    %v3132 = vld [vmem:[%s9 + $0x160] sm:$0xff]
    %v3133 = vld [vmem:[%s9 + $0x168] sm:$0xff]
    %v3134 = vld [vmem:[%s9 + $0x170] sm:$0xff]
    %v3135 = vld [vmem:[%s9 + $0x178] sm:$0xff]
    %v3136 = vld [vmem:[%s9 + $0x180] sm:$0xff]
    %v3137 = vld [vmem:[%s9 + $0x188] sm:$0xff]
    %v3138 = vld [vmem:[%s9 + $0x190] sm:$0xff]
    %v3139 = vld [vmem:[%s9 + $0x198] sm:$0xff]
    %v3140 = vld [vmem:[%s9 + $0x1a0] sm:$0xff]
    %v3141 = vld [vmem:[%s9 + $0x1a8] sm:$0xff]
    %v3142 = vld [vmem:[%s9 + $0x1b0] sm:$0xff]
    %v3143 = vld [vmem:[%s9 + $0x1b8] sm:$0xff]
    %v3144 = vld [vmem:[%s9 + $0x1c0] sm:$0xff]
    %v3145 = vld [vmem:[%s9 + $0x1c8] sm:$0xff]
    %v3146 = vld [vmem:[%s9 + $0x1d0] sm:$0xff]
    %v3147 = vld [vmem:[%s9 + $0x1d8] sm:$0xff]
    %v3148 = vld [vmem:[%s9 + $0x1e0] sm:$0xff]
    %v3149 = vld [vmem:[%s9 + $0x1e8] sm:$0xff]
    %v3150 = vld [vmem:[%s9 + $0x1f0] sm:$0xff]
    %v3151 = vld [vmem:[%s9 + $0x1f8] sm:$0xff]
    %v3152 = vld [vmem:[%s10] sm:$0x3]
    %v3154 = vlaneseq
    %v3155 = vshrl.u32 %v3154, 7
    %v3156 = vsub.s32 0, %v3155
    %v3157 = vrot.slane %v3152, %v3156
    %v3158 = vlaneseq
    %v3159 = vshrl.u32 %v3158, 7
    %v3160 = vsub.s32 1, %v3159
    %v3161 = vrot.slane %v3152, %v3160
    %v3228 = vunpack.c.l.b16 %v3088
    %v3229 = vunpack.c.h.b16 %v3088
    %v3230 = vunpack.c.l.b16 %v3089
    %v3231 = vunpack.c.h.b16 %v3089
    %v3232 = vunpack.c.l.b16 %v3090
    %v3233 = vunpack.c.h.b16 %v3090
    %v3234 = vunpack.c.l.b16 %v3091
    %v3235 = vunpack.c.h.b16 %v3091
    %v3236 = vunpack.c.l.b16 %v3092
    %v3237 = vunpack.c.h.b16 %v3092
    %v3238 = vunpack.c.l.b16 %v3093
    %v3239 = vunpack.c.h.b16 %v3093
    %v3240 = vunpack.c.l.b16 %v3094
    %v3241 = vunpack.c.h.b16 %v3094
    %v3242 = vunpack.c.l.b16 %v3095
    %v3243 = vunpack.c.h.b16 %v3095
    %v3244 = vunpack.c.l.b16 %v3096
    %v3245 = vunpack.c.h.b16 %v3096
    %v3246 = vunpack.c.l.b16 %v3097
    %v3247 = vunpack.c.h.b16 %v3097
    %v3248 = vunpack.c.l.b16 %v3098
    %v3249 = vunpack.c.h.b16 %v3098
    %v3250 = vunpack.c.l.b16 %v3099
    %v3251 = vunpack.c.h.b16 %v3099
    %v3252 = vunpack.c.l.b16 %v3100
    %v3253 = vunpack.c.h.b16 %v3100
    %v3254 = vunpack.c.l.b16 %v3101
    %v3255 = vunpack.c.h.b16 %v3101
    %v3256 = vunpack.c.l.b16 %v3102
    %v3257 = vunpack.c.h.b16 %v3102
    %v3258 = vunpack.c.l.b16 %v3103
    %v3259 = vunpack.c.h.b16 %v3103
    %v3260 = vunpack.c.l.b16 %v3104
    %v3261 = vunpack.c.h.b16 %v3104
    %v3262 = vunpack.c.l.b16 %v3105
    %v3263 = vunpack.c.h.b16 %v3105
    %v3264 = vunpack.c.l.b16 %v3106
    %v3265 = vunpack.c.h.b16 %v3106
    %v3266 = vunpack.c.l.b16 %v3107
    %v3267 = vunpack.c.h.b16 %v3107
    %v3268 = vunpack.c.l.b16 %v3108
    %v3269 = vunpack.c.h.b16 %v3108
    %v3270 = vunpack.c.l.b16 %v3109
    %v3271 = vunpack.c.h.b16 %v3109
    %v3272 = vunpack.c.l.b16 %v3110
    %v3273 = vunpack.c.h.b16 %v3110
    %v3274 = vunpack.c.l.b16 %v3111
    %v3275 = vunpack.c.h.b16 %v3111
    %v3276 = vunpack.c.l.b16 %v3112
    %v3277 = vunpack.c.h.b16 %v3112
    %v3278 = vunpack.c.l.b16 %v3113
    %v3279 = vunpack.c.h.b16 %v3113
    %v3280 = vunpack.c.l.b16 %v3114
    %v3281 = vunpack.c.h.b16 %v3114
    %v3282 = vunpack.c.l.b16 %v3115
    %v3283 = vunpack.c.h.b16 %v3115
    %v3284 = vunpack.c.l.b16 %v3116
    %v3285 = vunpack.c.h.b16 %v3116
    %v3286 = vunpack.c.l.b16 %v3117
    %v3287 = vunpack.c.h.b16 %v3117
    %v3288 = vunpack.c.l.b16 %v3118
    %v3289 = vunpack.c.h.b16 %v3118
    %v3290 = vunpack.c.l.b16 %v3119
    %v3291 = vunpack.c.h.b16 %v3119
    %v3292 = vunpack.c.l.b16 %v3120
    %v3293 = vunpack.c.h.b16 %v3120
    %v3294 = vunpack.c.l.b16 %v3121
    %v3295 = vunpack.c.h.b16 %v3121
    %v3296 = vunpack.c.l.b16 %v3122
    %v3297 = vunpack.c.h.b16 %v3122
    %v3298 = vunpack.c.l.b16 %v3123
    %v3299 = vunpack.c.h.b16 %v3123
    %v3300 = vunpack.c.l.b16 %v3124
    %v3301 = vunpack.c.h.b16 %v3124
    %v3302 = vunpack.c.l.b16 %v3125
    %v3303 = vunpack.c.h.b16 %v3125
    %v3304 = vunpack.c.l.b16 %v3126
    %v3305 = vunpack.c.h.b16 %v3126
    %v3306 = vunpack.c.l.b16 %v3127
    %v3307 = vunpack.c.h.b16 %v3127
    %v3308 = vunpack.c.l.b16 %v3128
    %v3309 = vunpack.c.h.b16 %v3128
    %v3310 = vunpack.c.l.b16 %v3129
    %v3311 = vunpack.c.h.b16 %v3129
    %v3312 = vunpack.c.l.b16 %v3130
    %v3313 = vunpack.c.h.b16 %v3130
    %v3314 = vunpack.c.l.b16 %v3131
    %v3315 = vunpack.c.h.b16 %v3131
    %v3316 = vunpack.c.l.b16 %v3132
    %v3317 = vunpack.c.h.b16 %v3132
    %v3318 = vunpack.c.l.b16 %v3133
    %v3319 = vunpack.c.h.b16 %v3133
    %v3320 = vunpack.c.l.b16 %v3134
    %v3321 = vunpack.c.h.b16 %v3134
    %v3322 = vunpack.c.l.b16 %v3135
    %v3323 = vunpack.c.h.b16 %v3135
    %v3324 = vunpack.c.l.b16 %v3136
    %v3325 = vunpack.c.h.b16 %v3136
    %v3326 = vunpack.c.l.b16 %v3137
    %v3327 = vunpack.c.h.b16 %v3137
    %v3328 = vunpack.c.l.b16 %v3138
    %v3329 = vunpack.c.h.b16 %v3138
    %v3330 = vunpack.c.l.b16 %v3139
    %v3331 = vunpack.c.h.b16 %v3139
    %v3332 = vunpack.c.l.b16 %v3140
    %v3333 = vunpack.c.h.b16 %v3140
    %v3334 = vunpack.c.l.b16 %v3141
    %v3335 = vunpack.c.h.b16 %v3141
    %v3336 = vunpack.c.l.b16 %v3142
    %v3337 = vunpack.c.h.b16 %v3142
    %v3338 = vunpack.c.l.b16 %v3143
    %v3339 = vunpack.c.h.b16 %v3143
    %v3340 = vunpack.c.l.b16 %v3144
    %v3341 = vunpack.c.h.b16 %v3144
    %v3342 = vunpack.c.l.b16 %v3145
    %v3343 = vunpack.c.h.b16 %v3145
    %v3344 = vunpack.c.l.b16 %v3146
    %v3345 = vunpack.c.h.b16 %v3146
    %v3346 = vunpack.c.l.b16 %v3147
    %v3347 = vunpack.c.h.b16 %v3147
    %v3348 = vunpack.c.l.b16 %v3148
    %v3349 = vunpack.c.h.b16 %v3148
    %v3350 = vunpack.c.l.b16 %v3149
    %v3351 = vunpack.c.h.b16 %v3149
    %v3352 = vunpack.c.l.b16 %v3150
    %v3353 = vunpack.c.h.b16 %v3150
    %v3354 = vunpack.c.l.b16 %v3151
    %v3355 = vunpack.c.h.b16 %v3151
    %v3356 = vpack.c.b16 %v3230, %v3228
    %v3357 = vpack.c.b16 %v3231, %v3229
    %v3358 = vpack.c.b16 %v3234, %v3232
    %v3359 = vpack.c.b16 %v3235, %v3233
    %v3360 = vpack.c.b16 %v3238, %v3236
    %v3361 = vpack.c.b16 %v3239, %v3237
    %v3362 = vpack.c.b16 %v3242, %v3240
    %v3363 = vpack.c.b16 %v3243, %v3241
    %v3364 = vpack.c.b16 %v3246, %v3244
    %v3365 = vpack.c.b16 %v3247, %v3245
    %v3366 = vpack.c.b16 %v3250, %v3248
    %v3367 = vpack.c.b16 %v3251, %v3249
    %v3368 = vpack.c.b16 %v3254, %v3252
    %v3369 = vpack.c.b16 %v3255, %v3253
    %v3370 = vpack.c.b16 %v3258, %v3256
    %v3371 = vpack.c.b16 %v3259, %v3257
    %v3372 = vpack.c.b16 %v3262, %v3260
    %v3373 = vpack.c.b16 %v3263, %v3261
    %v3374 = vpack.c.b16 %v3266, %v3264
    %v3375 = vpack.c.b16 %v3267, %v3265
    %v3376 = vpack.c.b16 %v3270, %v3268
    %v3377 = vpack.c.b16 %v3271, %v3269
    %v3378 = vpack.c.b16 %v3274, %v3272
    %v3379 = vpack.c.b16 %v3275, %v3273
    %v3380 = vpack.c.b16 %v3278, %v3276
    %v3381 = vpack.c.b16 %v3279, %v3277
    %v3382 = vpack.c.b16 %v3282, %v3280
    %v3383 = vpack.c.b16 %v3283, %v3281
    %v3384 = vpack.c.b16 %v3286, %v3284
    %v3385 = vpack.c.b16 %v3287, %v3285
    %v3386 = vpack.c.b16 %v3290, %v3288
    %v3387 = vpack.c.b16 %v3291, %v3289
    %v3388 = vpack.c.b16 %v3294, %v3292
    %v3389 = vpack.c.b16 %v3295, %v3293
    %v3390 = vpack.c.b16 %v3298, %v3296
    %v3391 = vpack.c.b16 %v3299, %v3297
    %v3392 = vpack.c.b16 %v3302, %v3300
    %v3393 = vpack.c.b16 %v3303, %v3301
    %v3394 = vpack.c.b16 %v3306, %v3304
    %v3395 = vpack.c.b16 %v3307, %v3305
    %v3396 = vpack.c.b16 %v3310, %v3308
    %v3397 = vpack.c.b16 %v3311, %v3309
    %v3398 = vpack.c.b16 %v3314, %v3312
    %v3399 = vpack.c.b16 %v3315, %v3313
    %v3400 = vpack.c.b16 %v3318, %v3316
    %v3401 = vpack.c.b16 %v3319, %v3317
    %v3402 = vpack.c.b16 %v3322, %v3320
    %v3403 = vpack.c.b16 %v3323, %v3321
    %v3404 = vpack.c.b16 %v3326, %v3324
    %v3405 = vpack.c.b16 %v3327, %v3325
    %v3406 = vpack.c.b16 %v3330, %v3328
    %v3407 = vpack.c.b16 %v3331, %v3329
    %v3408 = vpack.c.b16 %v3334, %v3332
    %v3409 = vpack.c.b16 %v3335, %v3333
    %v3410 = vpack.c.b16 %v3338, %v3336
    %v3411 = vpack.c.b16 %v3339, %v3337
    %v3412 = vpack.c.b16 %v3342, %v3340
    %v3413 = vpack.c.b16 %v3343, %v3341
    %v3414 = vpack.c.b16 %v3346, %v3344
    %v3415 = vpack.c.b16 %v3347, %v3345
    %v3416 = vpack.c.b16 %v3350, %v3348
    %v3417 = vpack.c.b16 %v3351, %v3349
    %v3418 = vpack.c.b16 %v3354, %v3352
    %v3419 = vpack.c.b16 %v3355, %v3353
    %3484 = vmatprep.subr.bf16.mxu0 %v3357
    %3485 = vmatpush1.bf16.msra.mxu0 %v3356
    %3486 = vmatprep.subr.bf16.mxu0 %v3359
    %3487 = vmatpush1.bf16.msra.mxu0 %v3358
    %3488 = vmatprep.subr.bf16.mxu0 %v3361
    %3489 = vmatpush1.bf16.msra.mxu0 %v3360
    %3490 = vmatprep.subr.bf16.mxu0 %v3363
    %3491 = vmatpush1.bf16.msra.mxu0 %v3362
    %3492 = vmatprep.subr.bf16.mxu0 %v3365
    %3493 = vmatpush1.bf16.msra.mxu0 %v3364
    %3494 = vmatprep.subr.bf16.mxu0 %v3367
    %3495 = vmatpush1.bf16.msra.mxu0 %v3366
    %3496 = vmatprep.subr.bf16.mxu0 %v3369
    %3497 = vmatpush1.bf16.msra.mxu0 %v3368
    %3498 = vmatprep.subr.bf16.mxu0 %v3371
    %3499 = vmatpush1.bf16.msra.mxu0 %v3370
    %3500 = vmatprep.subr.bf16.mxu0 %v3373
    %3501 = vmatpush1.bf16.msra.mxu0 %v3372
    %3502 = vmatprep.subr.bf16.mxu0 %v3375
    %3503 = vmatpush1.bf16.msra.mxu0 %v3374
    %3504 = vmatprep.subr.bf16.mxu0 %v3377
    %3505 = vmatpush1.bf16.msra.mxu0 %v3376
    %3506 = vmatprep.subr.bf16.mxu0 %v3379
    %3507 = vmatpush1.bf16.msra.mxu0 %v3378
    %3508 = vmatprep.subr.bf16.mxu0 %v3381
    %3509 = vmatpush1.bf16.msra.mxu0 %v3380
    %3510 = vmatprep.subr.bf16.mxu0 %v3383
    %3511 = vmatpush1.bf16.msra.mxu0 %v3382
    %3512 = vmatprep.subr.bf16.mxu0 %v3385
    %3513 = vmatpush1.bf16.msra.mxu0 %v3384
    %3514 = vmatprep.subr.bf16.mxu0 %v3387
    %3515 = vmatpush1.bf16.msra.mxu0 %v3386
    %3516 = vmatprep.mubr.bf16.mxu0 %v3085
    %3517 = vmatmul.mubr.bf16.gmra.mrb[0].mxu0 %v3084
    %v3518 = vpop.f32.mrb[0].mxu0
    %v3519 = vadd.f32 %v3157, %v3518
    %v3520 = vpop.f32.mrb[0].mxu0
    %v3521 = vadd.f32 %v3161, %v3520
    %v3522 = vpop.f32.mrb[0].mxu0
    %v3523 = vpop.f32.mrb[0].mxu0
    %3524 = vdwg.mxu0
    %3525 = vmatprep.subr.bf16.mxu0 %v3389
    %3526 = vmatpush1.bf16.msra.mxu0 %v3388
    %3527 = vmatprep.subr.bf16.mxu0 %v3391
    %3528 = vmatpush1.bf16.msra.mxu0 %v3390
    %3529 = vmatprep.subr.bf16.mxu0 %v3393
    %3530 = vmatpush1.bf16.msra.mxu0 %v3392
    %3531 = vmatprep.subr.bf16.mxu0 %v3395
    %3532 = vmatpush1.bf16.msra.mxu0 %v3394
    %3533 = vmatprep.subr.bf16.mxu0 %v3397
    %3534 = vmatpush1.bf16.msra.mxu0 %v3396
    %3535 = vmatprep.subr.bf16.mxu0 %v3399
    %3536 = vmatpush1.bf16.msra.mxu0 %v3398
    %3537 = vmatprep.subr.bf16.mxu0 %v3401
    %3538 = vmatpush1.bf16.msra.mxu0 %v3400
    %3539 = vmatprep.subr.bf16.mxu0 %v3403
    %3540 = vmatpush1.bf16.msra.mxu0 %v3402
    %3541 = vmatprep.subr.bf16.mxu0 %v3405
    %3542 = vmatpush1.bf16.msra.mxu0 %v3404
    %3543 = vmatprep.subr.bf16.mxu0 %v3407
    %3544 = vmatpush1.bf16.msra.mxu0 %v3406
    %3545 = vmatprep.subr.bf16.mxu0 %v3409
    %3546 = vmatpush1.bf16.msra.mxu0 %v3408
    %3547 = vmatprep.subr.bf16.mxu0 %v3411
    %3548 = vmatpush1.bf16.msra.mxu0 %v3410
    %3549 = vmatprep.subr.bf16.mxu0 %v3413
    %3550 = vmatpush1.bf16.msra.mxu0 %v3412
    %3551 = vmatprep.subr.bf16.mxu0 %v3415
    %3552 = vmatpush1.bf16.msra.mxu0 %v3414
    %3553 = vmatprep.subr.bf16.mxu0 %v3417
    %3554 = vmatpush1.bf16.msra.mxu0 %v3416
    %3555 = vmatprep.subr.bf16.mxu0 %v3419
    %3556 = vmatpush1.bf16.msra.mxu0 %v3418
    %3557 = vmatprep.mubr.bf16.mxu0 %v3087
    %3558 = vmatmul.mubr.bf16.gmra.mrb[0].mxu0 %v3086
    %v3559 = vpop.f32.mrb[0].mxu0
    %v3560 = vadd.f32 %v3519, %v3559
    %v3561 = vpop.f32.mrb[0].mxu0
    %v3562 = vadd.f32 %v3521, %v3561
    %v3563 = vpop.f32.mrb[0].mxu0
    %v3564 = vpop.f32.mrb[0].mxu0
    %3565 = vdwg.mxu0
    %v3566 = vmax.f32 %v3560, 0.0
    %v3567 = vmax.f32 %v3562, 0.0
    %v3568 = vpack.c.bf16 %v3566, %v3566
    %v3569 = vpack.c.bf16 %v3567, %v3567
    %v3570 = vld [vmem:[%s11] sm:$0xf]
    %v3571 = vld [vmem:[%s11 + $0x4] sm:$0xf]
    %v3572 = vld [vmem:[%s11 + $0x8] sm:$0xf]
    %v3573 = vld [vmem:[%s11 + $0xc] sm:$0xf]
    %v3574 = vld [vmem:[%s11 + $0x10] sm:$0xf]
    %v3575 = vld [vmem:[%s11 + $0x14] sm:$0xf]
    %v3576 = vld [vmem:[%s11 + $0x18] sm:$0xf]
    %v3577 = vld [vmem:[%s11 + $0x1c] sm:$0xf]
    %v3578 = vld [vmem:[%s11 + $0x20] sm:$0xf]
    %v3579 = vld [vmem:[%s11 + $0x24] sm:$0xf]
    %v3580 = vld [vmem:[%s11 + $0x28] sm:$0xf]
    %v3581 = vld [vmem:[%s11 + $0x2c] sm:$0xf]
    %v3582 = vld [vmem:[%s11 + $0x30] sm:$0xf]
    %v3583 = vld [vmem:[%s11 + $0x34] sm:$0xf]
    %v3584 = vld [vmem:[%s11 + $0x38] sm:$0xf]
    %v3585 = vld [vmem:[%s11 + $0x3c] sm:$0xf]
    %v3586 = vld [vmem:[%s11 + $0x40] sm:$0xf]
    %v3587 = vld [vmem:[%s11 + $0x44] sm:$0xf]
    %v3588 = vld [vmem:[%s11 + $0x48] sm:$0xf]
    %v3589 = vld [vmem:[%s11 + $0x4c] sm:$0xf]
    %v3590 = vld [vmem:[%s11 + $0x50] sm:$0xf]
    %v3591 = vld [vmem:[%s11 + $0x54] sm:$0xf]
    %v3592 = vld [vmem:[%s11 + $0x58] sm:$0xf]
    %v3593 = vld [vmem:[%s11 + $0x5c] sm:$0xf]
    %v3594 = vld [vmem:[%s11 + $0x60] sm:$0xf]
    %v3595 = vld [vmem:[%s11 + $0x64] sm:$0xf]
    %v3596 = vld [vmem:[%s11 + $0x68] sm:$0xf]
    %v3597 = vld [vmem:[%s11 + $0x6c] sm:$0xf]
    %v3598 = vld [vmem:[%s11 + $0x70] sm:$0xf]
    %v3599 = vld [vmem:[%s11 + $0x74] sm:$0xf]
    %v3600 = vld [vmem:[%s11 + $0x78] sm:$0xf]
    %v3601 = vld [vmem:[%s11 + $0x7c] sm:$0xf]
    %v3602 = vld [vmem:[%s12] sm:$0x1]
    %v3604 = vlaneseq
    %v3605 = vshrl.u32 %v3604, 7
    %v3606 = vsub.s32 0, %v3605
    %v3607 = vrot.slane %v3602, %v3606
    %v3641 = vunpack.c.l.b16 %v3570
    %v3642 = vunpack.c.l.b16 %v3571
    %v3643 = vunpack.c.l.b16 %v3572
    %v3644 = vunpack.c.l.b16 %v3573
    %v3645 = vunpack.c.l.b16 %v3574
    %v3646 = vunpack.c.l.b16 %v3575
    %v3647 = vunpack.c.l.b16 %v3576
    %v3648 = vunpack.c.l.b16 %v3577
    %v3649 = vunpack.c.l.b16 %v3578
    %v3650 = vunpack.c.l.b16 %v3579
    %v3651 = vunpack.c.l.b16 %v3580
    %v3652 = vunpack.c.l.b16 %v3581
    %v3653 = vunpack.c.l.b16 %v3582
    %v3654 = vunpack.c.l.b16 %v3583
    %v3655 = vunpack.c.l.b16 %v3584
    %v3656 = vunpack.c.l.b16 %v3585
    %v3657 = vunpack.c.l.b16 %v3586
    %v3658 = vunpack.c.l.b16 %v3587
    %v3659 = vunpack.c.l.b16 %v3588
    %v3660 = vunpack.c.l.b16 %v3589
    %v3661 = vunpack.c.l.b16 %v3590
    %v3662 = vunpack.c.l.b16 %v3591
    %v3663 = vunpack.c.l.b16 %v3592
    %v3664 = vunpack.c.l.b16 %v3593
    %v3665 = vunpack.c.l.b16 %v3594
    %v3666 = vunpack.c.l.b16 %v3595
    %v3667 = vunpack.c.l.b16 %v3596
    %v3668 = vunpack.c.l.b16 %v3597
    %v3669 = vunpack.c.l.b16 %v3598
    %v3670 = vunpack.c.l.b16 %v3599
    %v3671 = vunpack.c.l.b16 %v3600
    %v3672 = vunpack.c.l.b16 %v3601
    %v3673 = vpack.c.b16 %v3642, %v3641
    %v3674 = vpack.c.b16 %v3644, %v3643
    %v3675 = vpack.c.b16 %v3646, %v3645
    %v3676 = vpack.c.b16 %v3648, %v3647
    %v3677 = vpack.c.b16 %v3650, %v3649
    %v3678 = vpack.c.b16 %v3652, %v3651
    %v3679 = vpack.c.b16 %v3654, %v3653
    %v3680 = vpack.c.b16 %v3656, %v3655
    %v3681 = vpack.c.b16 %v3658, %v3657
    %v3682 = vpack.c.b16 %v3660, %v3659
    %v3683 = vpack.c.b16 %v3662, %v3661
    %v3684 = vpack.c.b16 %v3664, %v3663
    %v3685 = vpack.c.b16 %v3666, %v3665
    %v3686 = vpack.c.b16 %v3668, %v3667
    %v3687 = vpack.c.b16 %v3670, %v3669
    %v3688 = vpack.c.b16 %v3672, %v3671
    %3705 = vmatprep.subr.bf16.mxu0 0
    %3706 = vmatpush1.bf16.msra.mxu0 %v3673
    %3707 = vmatprep.subr.bf16.mxu0 0
    %3708 = vmatpush1.bf16.msra.mxu0 %v3674
    %3709 = vmatprep.subr.bf16.mxu0 0
    %3710 = vmatpush1.bf16.msra.mxu0 %v3675
    %3711 = vmatprep.subr.bf16.mxu0 0
    %3712 = vmatpush1.bf16.msra.mxu0 %v3676
    %3713 = vmatprep.subr.bf16.mxu0 0
    %3714 = vmatpush1.bf16.msra.mxu0 %v3677
    %3715 = vmatprep.subr.bf16.mxu0 0
    %3716 = vmatpush1.bf16.msra.mxu0 %v3678
    %3717 = vmatprep.subr.bf16.mxu0 0
    %3718 = vmatpush1.bf16.msra.mxu0 %v3679
    %3719 = vmatprep.subr.bf16.mxu0 0
    %3720 = vmatpush1.bf16.msra.mxu0 %v3680
    %3721 = vmatprep.subr.bf16.mxu0 0
    %3722 = vmatpush1.bf16.msra.mxu0 %v3681
    %3723 = vmatprep.subr.bf16.mxu0 0
    %3724 = vmatpush1.bf16.msra.mxu0 %v3682
    %3725 = vmatprep.subr.bf16.mxu0 0
    %3726 = vmatpush1.bf16.msra.mxu0 %v3683
    %3727 = vmatprep.subr.bf16.mxu0 0
    %3728 = vmatpush1.bf16.msra.mxu0 %v3684
    %3729 = vmatprep.subr.bf16.mxu0 0
    %3730 = vmatpush1.bf16.msra.mxu0 %v3685
    %3731 = vmatprep.subr.bf16.mxu0 0
    %3732 = vmatpush1.bf16.msra.mxu0 %v3686
    %3733 = vmatprep.subr.bf16.mxu0 0
    %3734 = vmatpush1.bf16.msra.mxu0 %v3687
    %3735 = vmatprep.subr.bf16.mxu0 0
    %3736 = vmatpush1.bf16.msra.mxu0 %v3688
    %3737 = vmatprep.mubr.bf16.mxu0 %v3569
    %3738 = vmatmul.mubr.bf16.gmra.mrb[0].mxu0 %v3568
    %v3739 = vpop.f32.mrb[0].mxu0
    %v3740 = vadd.f32 %v3607, %v3739
    %v3741 = vpop.f32.mrb[0].mxu0
    %v3742 = vpop.f32.mrb[0].mxu0
    %v3743 = vpop.f32.mrb[0].mxu0
    %3744 = vdwg.mxu0
    %v3745 = vld [vmem:[%s13] sm:$0x1]
    %v3747 = vlaneseq
    %v3748 = vshrl.u32 %v3747, 7
    %v3749 = vsub.s32 0, %v3748
    %v3750 = vrot.slane %v3745, %v3749
    %v3752 = vadd.f32 %v3740, %v3750
    %3753 = vst [vmem:[%s14] sm:$0x3] %v3752
  $region65: #{_stnkd_impl.1} parent=0 // pred_fallthru
    _
  // Predicated region
  $region66: #{_stnkd_impl.1} parent=0 // pred_check
    _
  $region67: #{_stnkd_impl.1} parent=0 // pred_check_branch
    %3755 = sbr.rel (0) target = $region69
  $region68: #{_stnkd_impl.1} parent=0 // pred_region
    _
  $region69: #{_stnkd_impl.1} parent=0 // pred_fallthru
    _
  // Predicated region
  $region70: #{_stnkd_impl.1} parent=0 // pred_check
    _
  $region71: #{_stnkd_impl.1} parent=0 // pred_check_branch
    %3757 = sbr.rel (0) target = $region73
  $region72: #{_stnkd_impl.1} parent=0 // pred_region
    _
  $region73: #{_stnkd_impl.1} parent=0 // pred_fallthru
    _

</llo_original>
